<compile_context>
chip_gen: v7x
topology: tpu7x:2x2x1
jax: 0.10.0
libtpu: 0.0.40
codegen_flags: <defaults>
</compile_context>

<pallas_src>
import jax
import jax.numpy as jnp
from jax.experimental import pallas as pl
from jax.experimental.pallas import tpu as pltpu

H_DIM = 400   # logical hidden size (matches PyTorch h_dim)
H_PAD = 512   # hidden size zero-padded to a multiple of 128 lanes
TB_MAX = 256  # max batch tile (batch lives on lanes); multiple of 128


def _discriminator_kernel(zT_ref,
                          w1_ref, b1_ref,
                          w2_ref, b2_ref,
                          w3_ref, b3_ref,
                          w4_ref, b4_ref,
                          out_ref):
    """One batch tile. Activations are (H_PAD, TB): hidden on sublanes, batch on lanes."""
    zT = zT_ref[...]            # (2, TB) f32
    z0 = zT[0:1, :]             # (1, TB)
    z1 = zT[1:2, :]             # (1, TB)

    # Layer 1 (K=2): broadcast FMAs on the VPU instead of a nearly-empty MXU pass.
    h = w1_ref[:, 0:1] * z0 + w1_ref[:, 1:2] * z1 + b1_ref[...]   # (H_PAD, TB) f32
    h = jnp.maximum(h, 0.0)

    # Layer 2: full (H_PAD x H_PAD) MXU matmul, f32 accumulation.
    h = jnp.dot(w2_ref[...], h.astype(w2_ref.dtype),
                preferred_element_type=jnp.float32)
    h = jnp.maximum(h + b2_ref[...], 0.0)

    # Layer 3: same.
    h = jnp.dot(w3_ref[...], h.astype(w3_ref.dtype),
                preferred_element_type=jnp.float32)
    h = jnp.maximum(h + b3_ref[...], 0.0)

    # Layer 4 (N=1): VPU multiply + sublane reduction (XLU slot), not the MXU.
    logits = jnp.sum(h * w4_ref[...], axis=0, keepdims=True) + b4_ref[...]  # (1, TB)
    out_ref[...] = jax.nn.sigmoid(logits)   # lane-dense (1, TB) store


def _pad_params(params, matmul_dtype):
    """Zero-pad PyTorch-layout params ((out,in) weights, (out,) biases) to H_PAD."""
    (w1, b1), (w2, b2), (w3, b3), (w4, b4) = params
    f32 = jnp.float32
    w1p = jnp.zeros((H_PAD, 2), f32).at[:H_DIM, :].set(w1.astype(f32))
    b1p = jnp.zeros((H_PAD, 1), f32).at[:H_DIM, 0].set(b1.astype(f32))
    w2p = jnp.zeros((H_PAD, H_PAD), f32).at[:H_DIM, :H_DIM].set(w2.astype(f32)).astype(matmul_dtype)
    b2p = jnp.zeros((H_PAD, 1), f32).at[:H_DIM, 0].set(b2.astype(f32))
    w3p = jnp.zeros((H_PAD, H_PAD), f32).at[:H_DIM, :H_DIM].set(w3.astype(f32)).astype(matmul_dtype)
    b3p = jnp.zeros((H_PAD, 1), f32).at[:H_DIM, 0].set(b3.astype(f32))
    w4p = jnp.zeros((H_PAD, 1), f32).at[:H_DIM, 0].set(w4.reshape(-1).astype(f32))
    b4p = b4.reshape(1, 1).astype(f32)
    return w1p, b1p, w2p, b2p, w3p, b3p, w4p, b4p


def discriminator_forward(z, params, *, tb=None, matmul_dtype=jnp.float32):
    """z: (B, 2) float32; params in PyTorch nn.Linear layout.  Returns (B,) float32."""
    B = z.shape[0]
    if tb is None:
        # Adaptive batch tile: a single 128-lane tile for tiny batches,
        # otherwise 256-wide lane-dense tiles.
        tb = min(TB_MAX, max(128, ((B + 127) // 128) * 128))
    w1p, b1p, w2p, b2p, w3p, b3p, w4p, b4p = _pad_params(params, matmul_dtype)

    n_tiles = pl.cdiv(B, tb)
    b_pad = n_tiles * tb
    # Batch along lanes; zero-pad to a whole number of tiles (extra cols trimmed below).
    zT = jnp.zeros((2, b_pad), jnp.float32).at[:, :B].set(z.T.astype(jnp.float32))

    def full(shape):
        # Weights: full-array blocks, constant index_map -> DMA'd once, stay resident.
        return pl.BlockSpec(shape, lambda i: (0, 0))

    out = pl.pallas_call(
        _discriminator_kernel,
        out_shape=jax.ShapeDtypeStruct((1, b_pad), jnp.float32),
        grid_spec=pltpu.PrefetchScalarGridSpec(
            num_scalar_prefetch=0,
            grid=(n_tiles,),
            in_specs=[
                pl.BlockSpec((2, tb), lambda i: (0, i)),      # z tile, batch on lanes
                full((H_PAD, 2)),      full((H_PAD, 1)),      # layer 1
                full((H_PAD, H_PAD)),  full((H_PAD, 1)),      # layer 2
                full((H_PAD, H_PAD)),  full((H_PAD, 1)),      # layer 3
                full((H_PAD, 1)),      full((1, 1)),          # layer 4
            ],
            out_specs=pl.BlockSpec((1, tb), lambda i: (0, i)),
        ),
        compiler_params=pltpu.CompilerParams(
            dimension_semantics=("parallel",),     # batch axis shards across TCs on v7x
            vmem_limit_bytes=32 * 1024 * 1024,     # explicit budget (safe on v5e/v6e/v7x)
        ),
    )(zT, w1p, b1p, w2p, b2p, w3p, b3p, w4p, b4p)
    return out[0, :B]


def init_params(key):
    """PyTorch nn.Linear layout: W is (out, in), b is (out,).
    Init mimics torch's default U(-1/sqrt(fan_in), 1/sqrt(fan_in))."""
    dims = [(H_DIM, 2), (H_DIM, H_DIM), (H_DIM, H_DIM), (1, H_DIM)]
    params = []
    for fan_out, fan_in in dims:
        key, kw, kb = jax.random.split(key, 3)
        bound = 1.0 / float(fan_in) ** 0.5
        w = jax.random.uniform(kw, (fan_out, fan_in), jnp.float32, -bound, bound)
        b = jax.random.uniform(kb, (fan_out,), jnp.float32, -bound, bound)
        params.append((w, b))
    return params


def _reference_forward(z, params):
    """Pure-JAX reference matching the PyTorch module (x @ W.T + b)."""
    h = z
    for i, (w, b) in enumerate(params):
        h = jnp.matmul(h, w.T, precision=jax.lax.Precision.HIGHEST) + b
        if i < 3:
            h = jnp.maximum(h, 0.0)
    return jax.nn.sigmoid(h).reshape(-1)


if __name__ == "__main__":
    key = jax.random.PRNGKey(0)
    key, kz = jax.random.split(key)

    B = 8  # small demo batch (padded to one 128-wide lane tile inside the wrapper)
    z = jax.random.normal(kz, (B, 2), jnp.float32)
    params = init_params(key)

    fwd = jax.jit(discriminator_forward)
    out = jax.block_until_ready(fwd(z, params))

    ref = _reference_forward(z, params)
    assert out.shape == (B,)
    assert jnp.allclose(out, ref, atol=1e-4, rtol=1e-4), "mismatch vs reference"

    print("KERNEL_OK")
</pallas_src>

<mosaic_0001>
module attributes {stable_mosaic.version = 11 : i64} {
  func.func @_discriminator_kernel(%arg0: i32, %arg1: memref<2x128xf32, #tpu.memory_space<vmem>>, %arg2: memref<512x2xf32, #tpu.memory_space<vmem>>, %arg3: memref<512x1xf32, #tpu.memory_space<vmem>>, %arg4: memref<512x512xf32, #tpu.memory_space<vmem>>, %arg5: memref<512x1xf32, #tpu.memory_space<vmem>>, %arg6: memref<512x512xf32, #tpu.memory_space<vmem>>, %arg7: memref<512x1xf32, #tpu.memory_space<vmem>>, %arg8: memref<512x1xf32, #tpu.memory_space<vmem>>, %arg9: memref<1x1xf32, #tpu.memory_space<vmem>>, %arg10: memref<1x128xf32, #tpu.memory_space<vmem>>) attributes {dimension_semantics = [#tpu.dimension_semantics<parallel>], iteration_bounds = array<i64: 1>, scalar_prefetch = 0 : i64, scratch_operands = 0 : i64, tpu.core_type = #tpu.core_type<tc>, window_params = [{transform_indices = @transform_0, window_bounds = array<i64: 2, 128>}, {pipeline_mode = #tpu.pipeline_mode<synchronous>, transform_indices = @transform_1, window_bounds = array<i64: 512, 2>}, {pipeline_mode = #tpu.pipeline_mode<synchronous>, transform_indices = @transform_2, window_bounds = array<i64: 512, 1>}, {pipeline_mode = #tpu.pipeline_mode<synchronous>, transform_indices = @transform_3, window_bounds = array<i64: 512, 512>}, {pipeline_mode = #tpu.pipeline_mode<synchronous>, transform_indices = @transform_4, window_bounds = array<i64: 512, 1>}, {pipeline_mode = #tpu.pipeline_mode<synchronous>, transform_indices = @transform_5, window_bounds = array<i64: 512, 512>}, {pipeline_mode = #tpu.pipeline_mode<synchronous>, transform_indices = @transform_6, window_bounds = array<i64: 512, 1>}, {pipeline_mode = #tpu.pipeline_mode<synchronous>, transform_indices = @transform_7, window_bounds = array<i64: 512, 1>}, {pipeline_mode = #tpu.pipeline_mode<synchronous>, transform_indices = @transform_8, window_bounds = array<i64: 1, 1>}, {transform_indices = @transform_9, window_bounds = array<i64: 1, 128>}]} {
    %c0 = arith.constant 0 : index
    %c0_0 = arith.constant 0 : index
    %0 = vector.load %arg1[%c0, %c0_0] : memref<2x128xf32, #tpu.memory_space<vmem>>, vector<2x128xf32>
    %1 = vector.extract_strided_slice %0 {offsets = [0, 0], sizes = [1, 128], strides = [1, 1]} : vector<2x128xf32> to vector<1x128xf32>
    %2 = vector.extract_strided_slice %0 {offsets = [1, 0], sizes = [1, 128], strides = [1, 1]} : vector<2x128xf32> to vector<1x128xf32>
    %c0_1 = arith.constant 0 : index
    %c0_2 = arith.constant 0 : index
    %3 = vector.load %arg2[%c0_1, %c0_2] : memref<512x2xf32, #tpu.memory_space<vmem>>, vector<512x1xf32>
    %4 = vector.broadcast %3 : vector<512x1xf32> to vector<512x128xf32>
    %5 = vector.broadcast %1 : vector<1x128xf32> to vector<512x128xf32>
    %6 = arith.mulf %4, %5 : vector<512x128xf32>
    %c0_3 = arith.constant 0 : index
    %c1 = arith.constant 1 : index
    %7 = vector.load %arg2[%c0_3, %c1] : memref<512x2xf32, #tpu.memory_space<vmem>>, vector<512x1xf32>
    %8 = vector.broadcast %7 : vector<512x1xf32> to vector<512x128xf32>
    %9 = vector.broadcast %2 : vector<1x128xf32> to vector<512x128xf32>
    %10 = arith.mulf %8, %9 : vector<512x128xf32>
    %11 = arith.addf %6, %10 : vector<512x128xf32>
    %c0_4 = arith.constant 0 : index
    %c0_5 = arith.constant 0 : index
    %12 = vector.load %arg3[%c0_4, %c0_5] : memref<512x1xf32, #tpu.memory_space<vmem>>, vector<512x1xf32>
    %13 = vector.broadcast %12 : vector<512x1xf32> to vector<512x128xf32>
    %14 = arith.addf %11, %13 : vector<512x128xf32>
    %cst = arith.constant 0.000000e+00 : f32
    %15 = vector.broadcast %cst : f32 to vector<512x128xf32>
    %16 = arith.maximumf %14, %15 : vector<512x128xf32>
    %c0_6 = arith.constant 0 : index
    %c0_7 = arith.constant 0 : index
    %17 = vector.load %arg4[%c0_6, %c0_7] : memref<512x512xf32, #tpu.memory_space<vmem>>, vector<512x512xf32>
    %cst_8 = arith.constant dense<0.000000e+00> : vector<512x128xf32>
    %18 = tpu.matmul %17, %16, %cst_8 {dimension_numbers = #tpu.dot_dimension_numbers<[1], [0], [0], [1], [0, 0, 1, 1], [], []>} : vector<512x512xf32>, vector<512x128xf32>, vector<512x128xf32> -> vector<512x128xf32>
    %c0_9 = arith.constant 0 : index
    %c0_10 = arith.constant 0 : index
    %19 = vector.load %arg5[%c0_9, %c0_10] : memref<512x1xf32, #tpu.memory_space<vmem>>, vector<512x1xf32>
    %20 = vector.broadcast %19 : vector<512x1xf32> to vector<512x128xf32>
    %21 = arith.addf %18, %20 : vector<512x128xf32>
    %cst_11 = arith.constant 0.000000e+00 : f32
    %22 = vector.broadcast %cst_11 : f32 to vector<512x128xf32>
    %23 = arith.maximumf %21, %22 : vector<512x128xf32>
    %c0_12 = arith.constant 0 : index
    %c0_13 = arith.constant 0 : index
    %24 = vector.load %arg6[%c0_12, %c0_13] : memref<512x512xf32, #tpu.memory_space<vmem>>, vector<512x512xf32>
    %cst_14 = arith.constant dense<0.000000e+00> : vector<512x128xf32>
    %25 = tpu.matmul %24, %23, %cst_14 {dimension_numbers = #tpu.dot_dimension_numbers<[1], [0], [0], [1], [0, 0, 1, 1], [], []>} : vector<512x512xf32>, vector<512x128xf32>, vector<512x128xf32> -> vector<512x128xf32>
    %c0_15 = arith.constant 0 : index
    %c0_16 = arith.constant 0 : index
    %26 = vector.load %arg7[%c0_15, %c0_16] : memref<512x1xf32, #tpu.memory_space<vmem>>, vector<512x1xf32>
    %27 = vector.broadcast %26 : vector<512x1xf32> to vector<512x128xf32>
    %28 = arith.addf %25, %27 : vector<512x128xf32>
    %cst_17 = arith.constant 0.000000e+00 : f32
    %29 = vector.broadcast %cst_17 : f32 to vector<512x128xf32>
    %30 = arith.maximumf %28, %29 : vector<512x128xf32>
    %c0_18 = arith.constant 0 : index
    %c0_19 = arith.constant 0 : index
    %31 = vector.load %arg8[%c0_18, %c0_19] : memref<512x1xf32, #tpu.memory_space<vmem>>, vector<512x1xf32>
    %32 = vector.broadcast %31 : vector<512x1xf32> to vector<512x128xf32>
    %33 = arith.mulf %30, %32 : vector<512x128xf32>
    %cst_20 = arith.constant dense<0.000000e+00> : vector<128xf32>
    %34 = vector.multi_reduction <add>, %33, %cst_20 [0] : vector<512x128xf32> to vector<128xf32>
    %35 = vector.shape_cast %34 : vector<128xf32> to vector<1x128xf32>
    %c0_21 = arith.constant 0 : index
    %c0_22 = arith.constant 0 : index
    %36 = vector.load %arg9[%c0_21, %c0_22] : memref<1x1xf32, #tpu.memory_space<vmem>>, vector<1x1xf32>
    %37 = vector.broadcast %36 : vector<1x1xf32> to vector<1x128xf32>
    %38 = arith.addf %35, %37 : vector<1x128xf32>
    %39 = arith.negf %38 : vector<1x128xf32>
    %40 = math.exp %39 : vector<1x128xf32>
    %cst_23 = arith.constant 1.000000e+00 : f32
    %41 = vector.broadcast %cst_23 : f32 to vector<1x128xf32>
    %42 = arith.addf %41, %40 : vector<1x128xf32>
    %43 = arith.divf %41, %42 : vector<1x128xf32>
    %c0_24 = arith.constant 0 : index
    %c0_25 = arith.constant 0 : index
    %44 = vector.load %arg10[%c0_24, %c0_25] : memref<1x128xf32, #tpu.memory_space<vmem>>, vector<1x128xf32>
    tpu.vector_store %arg10[%c0_24, %c0_25], %43 {strides = array<i32>} : memref<1x128xf32, #tpu.memory_space<vmem>>, vector<1x128xf32>,
    return
  }
  func.func @transform_0(%arg0: i32) -> (i32, i32) {
    %c0_i32 = arith.constant 0 : i32
    %c0_i32_0 = arith.constant 0 : i32
    return %c0_i32, %arg0 : i32, i32
  }
  func.func @transform_1(%arg0: i32) -> (i32, i32) {
    %c0_i32 = arith.constant 0 : i32
    %c0_i32_0 = arith.constant 0 : i32
    %c0_i32_1 = arith.constant 0 : i32
    return %c0_i32, %c0_i32_0 : i32, i32
  }
  func.func @transform_2(%arg0: i32) -> (i32, i32) {
    %c0_i32 = arith.constant 0 : i32
    %c0_i32_0 = arith.constant 0 : i32
    %c0_i32_1 = arith.constant 0 : i32
    return %c0_i32, %c0_i32_0 : i32, i32
  }
  func.func @transform_3(%arg0: i32) -> (i32, i32) {
    %c0_i32 = arith.constant 0 : i32
    %c0_i32_0 = arith.constant 0 : i32
    %c0_i32_1 = arith.constant 0 : i32
    return %c0_i32, %c0_i32_0 : i32, i32
  }
  func.func @transform_4(%arg0: i32) -> (i32, i32) {
    %c0_i32 = arith.constant 0 : i32
    %c0_i32_0 = arith.constant 0 : i32
    %c0_i32_1 = arith.constant 0 : i32
    return %c0_i32, %c0_i32_0 : i32, i32
  }
  func.func @transform_5(%arg0: i32) -> (i32, i32) {
    %c0_i32 = arith.constant 0 : i32
    %c0_i32_0 = arith.constant 0 : i32
    %c0_i32_1 = arith.constant 0 : i32
    return %c0_i32, %c0_i32_0 : i32, i32
  }
  func.func @transform_6(%arg0: i32) -> (i32, i32) {
    %c0_i32 = arith.constant 0 : i32
    %c0_i32_0 = arith.constant 0 : i32
    %c0_i32_1 = arith.constant 0 : i32
    return %c0_i32, %c0_i32_0 : i32, i32
  }
  func.func @transform_7(%arg0: i32) -> (i32, i32) {
    %c0_i32 = arith.constant 0 : i32
    %c0_i32_0 = arith.constant 0 : i32
    %c0_i32_1 = arith.constant 0 : i32
    return %c0_i32, %c0_i32_0 : i32, i32
  }
  func.func @transform_8(%arg0: i32) -> (i32, i32) {
    %c0_i32 = arith.constant 0 : i32
    %c0_i32_0 = arith.constant 0 : i32
    %c0_i32_1 = arith.constant 0 : i32
    return %c0_i32, %c0_i32_0 : i32, i32
  }
  func.func @transform_9(%arg0: i32) -> (i32, i32) {
    %c0_i32 = arith.constant 0 : i32
    %c0_i32_0 = arith.constant 0 : i32
    return %c0_i32, %arg0 : i32, i32
  }
}

</mosaic_0001>

<llo_original>
// kernel: discriminator_forward.1
$region0: #{discriminator_forward.1}
  #allocation0 [shape = 'u32[]', space=smem, size = 0x4, offset = 0x4, fixed_abs, tag = 'smem constant byte address 0x4 - core index']
  #allocation1 [shape = 'u32[144,128]{1,0:T(1,128)}', space=vmem, size = 0x12000, scoped, tag = 'internal scratch']
  #allocation2 [shape = 'f32[1,1]{1,0:T(1,128)S(1)}', space=vmem, size = 0x200, scoped, tag = 'scoped memory for discriminator_forward.1']
  %s0 = inlined_call_operand.vmem [shape: f32[2,128], index: 0, kind: input, shape index: {}]
  %s1 = inlined_call_operand.vmem [shape: f32[512,2], index: 1, kind: input, shape index: {}]
  %s2 = inlined_call_operand.vmem [shape: f32[512,1], index: 2, kind: input, shape index: {}]
  %s3 = inlined_call_operand.vmem [shape: f32[512,512], index: 3, kind: input, shape index: {}]
  %s4 = inlined_call_operand.vmem [shape: f32[512,1], index: 4, kind: input, shape index: {}]
  %s5 = inlined_call_operand.vmem [shape: f32[512,512], index: 5, kind: input, shape index: {}]
  %s6 = inlined_call_operand.vmem [shape: f32[512,1], index: 6, kind: input, shape index: {}]
  %s7 = inlined_call_operand.vmem [shape: f32[512,1], index: 7, kind: input, shape index: {}]
  %s8 = inlined_call_operand.<no memory space> [shape: f32[1,1], index: 8, kind: input, shape index: {}]
  %s9 = inlined_call_operand.vmem [shape: f32[1,128], index: 9, kind: output, shape index: {}]
  %s10 = sld [smem:[#allocation0]]
  $region46: #{discriminator_forward.1} parent=0
    _
  %s12 = ssub.s32 1, %s10
  %s13 = scalar_select 0, %s12, %s10
  %v14 = vstv %s8
  %15 = vst [vmem:[#allocation2] sm:$0x1] %v14
  // Predicated region
  $region2: #{discriminator_forward.1} parent=0 // pred_check
    _
  $region3: #{discriminator_forward.1} parent=0 // pred_check_branch
    %17 = sbr.rel (0) target = $region5
  $region4: #{discriminator_forward.1} parent=0 // pred_region
    _
  $region5: #{discriminator_forward.1} parent=0 // pred_fallthru
    _
  // Predicated region
  $region6: #{discriminator_forward.1} parent=0 // pred_check
    _
  $region7: #{discriminator_forward.1} parent=0 // pred_check_branch
    %19 = sbr.rel (0) target = $region9
  $region8: #{discriminator_forward.1} parent=0 // pred_region
    _
  $region9: #{discriminator_forward.1} parent=0 // pred_fallthru
    _
  // Predicated region
  $region10: #{discriminator_forward.1} parent=0 // pred_check
    _
  $region11: #{discriminator_forward.1} parent=0 // pred_check_branch
    %21 = sbr.rel (0) target = $region13
  $region12: #{discriminator_forward.1} parent=0 // pred_region
    _
  $region13: #{discriminator_forward.1} parent=0 // pred_fallthru
    _
  // Predicated region
  $region14: #{discriminator_forward.1} parent=0 // pred_check
    _
  $region15: #{discriminator_forward.1} parent=0 // pred_check_branch
    %23 = sbr.rel (0) target = $region17
  $region16: #{discriminator_forward.1} parent=0 // pred_region
    _
  $region17: #{discriminator_forward.1} parent=0 // pred_fallthru
    _
  // Predicated region
  $region18: #{discriminator_forward.1} parent=0 // pred_check
    _
  $region19: #{discriminator_forward.1} parent=0 // pred_check_branch
    %25 = sbr.rel (0) target = $region21
  $region20: #{discriminator_forward.1} parent=0 // pred_region
    _
  $region21: #{discriminator_forward.1} parent=0 // pred_fallthru
    _
  // Predicated region
  $region22: #{discriminator_forward.1} parent=0 // pred_check
    _
  $region23: #{discriminator_forward.1} parent=0 // pred_check_branch
    %27 = sbr.rel (0) target = $region25
  $region24: #{discriminator_forward.1} parent=0 // pred_region
    _
  $region25: #{discriminator_forward.1} parent=0 // pred_fallthru
    _
  // Predicated region
  $region26: #{discriminator_forward.1} parent=0 // pred_check
    _
  $region27: #{discriminator_forward.1} parent=0 // pred_check_branch
    %29 = sbr.rel (0) target = $region29
  $region28: #{discriminator_forward.1} parent=0 // pred_region
    _
  $region29: #{discriminator_forward.1} parent=0 // pred_fallthru
    _
  // Predicated region
  $region30: #{discriminator_forward.1} parent=0 // pred_check
    _
  $region31: #{discriminator_forward.1} parent=0 // pred_check_branch
    %31 = sbr.rel (0) target = $region33
  $region32: #{discriminator_forward.1} parent=0 // pred_region
    _
  $region33: #{discriminator_forward.1} parent=0 // pred_fallthru
    _
  // Predicated region
  $region34: #{discriminator_forward.1} parent=0 // pred_check
    _
  $region35: #{discriminator_forward.1} parent=0 // pred_check_branch
    %33 = sbr.rel (0) target = $region37
  $region36: #{discriminator_forward.1} parent=0 // pred_region
    _
  $region37: #{discriminator_forward.1} parent=0 // pred_fallthru
    _
  %v34 = vld [vmem:[%s0] sm:$0x3]
  %v35 = vld [vmem:[%s1] sm:$0xff]
  %v36 = vld [vmem:[%s1 + $0x8] sm:$0xff]
  %v37 = vld [vmem:[%s1 + $0x10] sm:$0xff]
  %v38 = vld [vmem:[%s1 + $0x18] sm:$0xff]
  %v39 = vld [vmem:[%s1 + $0x20] sm:$0xff]
  %v40 = vld [vmem:[%s1 + $0x28] sm:$0xff]
  %v41 = vld [vmem:[%s1 + $0x30] sm:$0xff]
  %v42 = vld [vmem:[%s1 + $0x38] sm:$0xff]
  %v43 = vld [vmem:[%s1 + $0x40] sm:$0xff]
  %v44 = vld [vmem:[%s1 + $0x48] sm:$0xff]
  %v45 = vld [vmem:[%s1 + $0x50] sm:$0xff]
  %v46 = vld [vmem:[%s1 + $0x58] sm:$0xff]
  %v47 = vld [vmem:[%s1 + $0x60] sm:$0xff]
  %v48 = vld [vmem:[%s1 + $0x68] sm:$0xff]
  %v49 = vld [vmem:[%s1 + $0x70] sm:$0xff]
  %v50 = vld [vmem:[%s1 + $0x78] sm:$0xff]
  %v51 = vld [vmem:[%s1 + $0x80] sm:$0xff]
  %v52 = vld [vmem:[%s1 + $0x88] sm:$0xff]
  %v53 = vld [vmem:[%s1 + $0x90] sm:$0xff]
  %v54 = vld [vmem:[%s1 + $0x98] sm:$0xff]
  %v55 = vld [vmem:[%s1 + $0xa0] sm:$0xff]
  %v56 = vld [vmem:[%s1 + $0xa8] sm:$0xff]
  %v57 = vld [vmem:[%s1 + $0xb0] sm:$0xff]
  %v58 = vld [vmem:[%s1 + $0xb8] sm:$0xff]
  %v59 = vld [vmem:[%s1 + $0xc0] sm:$0xff]
  %v60 = vld [vmem:[%s1 + $0xc8] sm:$0xff]
  %v61 = vld [vmem:[%s1 + $0xd0] sm:$0xff]
  %v62 = vld [vmem:[%s1 + $0xd8] sm:$0xff]
  %v63 = vld [vmem:[%s1 + $0xe0] sm:$0xff]
  %v64 = vld [vmem:[%s1 + $0xe8] sm:$0xff]
  %v65 = vld [vmem:[%s1 + $0xf0] sm:$0xff]
  %v66 = vld [vmem:[%s1 + $0xf8] sm:$0xff]
  %v67 = vld [vmem:[%s1 + $0x100] sm:$0xff]
  %v68 = vld [vmem:[%s1 + $0x108] sm:$0xff]
  %v69 = vld [vmem:[%s1 + $0x110] sm:$0xff]
  %v70 = vld [vmem:[%s1 + $0x118] sm:$0xff]
  %v71 = vld [vmem:[%s1 + $0x120] sm:$0xff]
  %v72 = vld [vmem:[%s1 + $0x128] sm:$0xff]
  %v73 = vld [vmem:[%s1 + $0x130] sm:$0xff]
  %v74 = vld [vmem:[%s1 + $0x138] sm:$0xff]
  %v75 = vld [vmem:[%s1 + $0x140] sm:$0xff]
  %v76 = vld [vmem:[%s1 + $0x148] sm:$0xff]
  %v77 = vld [vmem:[%s1 + $0x150] sm:$0xff]
  %v78 = vld [vmem:[%s1 + $0x158] sm:$0xff]
  %v79 = vld [vmem:[%s1 + $0x160] sm:$0xff]
  %v80 = vld [vmem:[%s1 + $0x168] sm:$0xff]
  %v81 = vld [vmem:[%s1 + $0x170] sm:$0xff]
  %v82 = vld [vmem:[%s1 + $0x178] sm:$0xff]
  %v83 = vld [vmem:[%s1 + $0x180] sm:$0xff]
  %v84 = vld [vmem:[%s1 + $0x188] sm:$0xff]
  %v85 = vld [vmem:[%s1 + $0x190] sm:$0xff]
  %v86 = vld [vmem:[%s1 + $0x198] sm:$0xff]
  %v87 = vld [vmem:[%s1 + $0x1a0] sm:$0xff]
  %v88 = vld [vmem:[%s1 + $0x1a8] sm:$0xff]
  %v89 = vld [vmem:[%s1 + $0x1b0] sm:$0xff]
  %v90 = vld [vmem:[%s1 + $0x1b8] sm:$0xff]
  %v91 = vld [vmem:[%s1 + $0x1c0] sm:$0xff]
  %v92 = vld [vmem:[%s1 + $0x1c8] sm:$0xff]
  %v93 = vld [vmem:[%s1 + $0x1d0] sm:$0xff]
  %v94 = vld [vmem:[%s1 + $0x1d8] sm:$0xff]
  %v95 = vld [vmem:[%s1 + $0x1e0] sm:$0xff]
  %v96 = vld [vmem:[%s1 + $0x1e8] sm:$0xff]
  %v97 = vld [vmem:[%s1 + $0x1f0] sm:$0xff]
  %v98 = vld [vmem:[%s1 + $0x1f8] sm:$0xff]
  %100 = vset.pattern.permute.xlu0 0
  %101 = vperm.xlu0 %100, %v35
  %v102 = vpop.permute.xlu0 %101
  %105 = vset.pattern.permute.xlu0 0
  %106 = vperm.xlu0 %105, %v36
  %v107 = vpop.permute.xlu0 %106
  %110 = vset.pattern.permute.xlu0 0
  %111 = vperm.xlu0 %110, %v37
  %v112 = vpop.permute.xlu0 %111
  %115 = vset.pattern.permute.xlu0 0
  %116 = vperm.xlu0 %115, %v38
  %v117 = vpop.permute.xlu0 %116
  %120 = vset.pattern.permute.xlu0 0
  %121 = vperm.xlu0 %120, %v39
  %v122 = vpop.permute.xlu0 %121
  %125 = vset.pattern.permute.xlu0 0
  %126 = vperm.xlu0 %125, %v40
  %v127 = vpop.permute.xlu0 %126
  %130 = vset.pattern.permute.xlu0 0
  %131 = vperm.xlu0 %130, %v41
  %v132 = vpop.permute.xlu0 %131
  %135 = vset.pattern.permute.xlu0 0
  %136 = vperm.xlu0 %135, %v42
  %v137 = vpop.permute.xlu0 %136
  %140 = vset.pattern.permute.xlu0 0
  %141 = vperm.xlu0 %140, %v43
  %v142 = vpop.permute.xlu0 %141
  %145 = vset.pattern.permute.xlu0 0
  %146 = vperm.xlu0 %145, %v44
  %v147 = vpop.permute.xlu0 %146
  %150 = vset.pattern.permute.xlu0 0
  %151 = vperm.xlu0 %150, %v45
  %v152 = vpop.permute.xlu0 %151
  %155 = vset.pattern.permute.xlu0 0
  %156 = vperm.xlu0 %155, %v46
  %v157 = vpop.permute.xlu0 %156
  %160 = vset.pattern.permute.xlu0 0
  %161 = vperm.xlu0 %160, %v47
  %v162 = vpop.permute.xlu0 %161
  %165 = vset.pattern.permute.xlu0 0
  %166 = vperm.xlu0 %165, %v48
  %v167 = vpop.permute.xlu0 %166
  %170 = vset.pattern.permute.xlu0 0
  %171 = vperm.xlu0 %170, %v49
  %v172 = vpop.permute.xlu0 %171
  %175 = vset.pattern.permute.xlu0 0
  %176 = vperm.xlu0 %175, %v50
  %v177 = vpop.permute.xlu0 %176
  %180 = vset.pattern.permute.xlu0 0
  %181 = vperm.xlu0 %180, %v51
  %v182 = vpop.permute.xlu0 %181
  %185 = vset.pattern.permute.xlu0 0
  %186 = vperm.xlu0 %185, %v52
  %v187 = vpop.permute.xlu0 %186
  %190 = vset.pattern.permute.xlu0 0
  %191 = vperm.xlu0 %190, %v53
  %v192 = vpop.permute.xlu0 %191
  %195 = vset.pattern.permute.xlu0 0
  %196 = vperm.xlu0 %195, %v54
  %v197 = vpop.permute.xlu0 %196
  %200 = vset.pattern.permute.xlu0 0
  %201 = vperm.xlu0 %200, %v55
  %v202 = vpop.permute.xlu0 %201
  %205 = vset.pattern.permute.xlu0 0
  %206 = vperm.xlu0 %205, %v56
  %v207 = vpop.permute.xlu0 %206
  %210 = vset.pattern.permute.xlu0 0
  %211 = vperm.xlu0 %210, %v57
  %v212 = vpop.permute.xlu0 %211
  %215 = vset.pattern.permute.xlu0 0
  %216 = vperm.xlu0 %215, %v58
  %v217 = vpop.permute.xlu0 %216
  %220 = vset.pattern.permute.xlu0 0
  %221 = vperm.xlu0 %220, %v59
  %v222 = vpop.permute.xlu0 %221
  %225 = vset.pattern.permute.xlu0 0
  %226 = vperm.xlu0 %225, %v60
  %v227 = vpop.permute.xlu0 %226
  %230 = vset.pattern.permute.xlu0 0
  %231 = vperm.xlu0 %230, %v61
  %v232 = vpop.permute.xlu0 %231
  %235 = vset.pattern.permute.xlu0 0
  %236 = vperm.xlu0 %235, %v62
  %v237 = vpop.permute.xlu0 %236
  %240 = vset.pattern.permute.xlu0 0
  %241 = vperm.xlu0 %240, %v63
  %v242 = vpop.permute.xlu0 %241
  %245 = vset.pattern.permute.xlu0 0
  %246 = vperm.xlu0 %245, %v64
  %v247 = vpop.permute.xlu0 %246
  %250 = vset.pattern.permute.xlu0 0
  %251 = vperm.xlu0 %250, %v65
  %v252 = vpop.permute.xlu0 %251
  %255 = vset.pattern.permute.xlu0 0
  %256 = vperm.xlu0 %255, %v66
  %v257 = vpop.permute.xlu0 %256
  %260 = vset.pattern.permute.xlu0 0
  %261 = vperm.xlu0 %260, %v67
  %v262 = vpop.permute.xlu0 %261
  %265 = vset.pattern.permute.xlu0 0
  %266 = vperm.xlu0 %265, %v68
  %v267 = vpop.permute.xlu0 %266
  %270 = vset.pattern.permute.xlu0 0
  %271 = vperm.xlu0 %270, %v69
  %v272 = vpop.permute.xlu0 %271
  %275 = vset.pattern.permute.xlu0 0
  %276 = vperm.xlu0 %275, %v70
  %v277 = vpop.permute.xlu0 %276
  %280 = vset.pattern.permute.xlu0 0
  %281 = vperm.xlu0 %280, %v71
  %v282 = vpop.permute.xlu0 %281
  %285 = vset.pattern.permute.xlu0 0
  %286 = vperm.xlu0 %285, %v72
  %v287 = vpop.permute.xlu0 %286
  %290 = vset.pattern.permute.xlu0 0
  %291 = vperm.xlu0 %290, %v73
  %v292 = vpop.permute.xlu0 %291
  %295 = vset.pattern.permute.xlu0 0
  %296 = vperm.xlu0 %295, %v74
  %v297 = vpop.permute.xlu0 %296
  %300 = vset.pattern.permute.xlu0 0
  %301 = vperm.xlu0 %300, %v75
  %v302 = vpop.permute.xlu0 %301
  %305 = vset.pattern.permute.xlu0 0
  %306 = vperm.xlu0 %305, %v76
  %v307 = vpop.permute.xlu0 %306
  %310 = vset.pattern.permute.xlu0 0
  %311 = vperm.xlu0 %310, %v77
  %v312 = vpop.permute.xlu0 %311
  %315 = vset.pattern.permute.xlu0 0
  %316 = vperm.xlu0 %315, %v78
  %v317 = vpop.permute.xlu0 %316
  %320 = vset.pattern.permute.xlu0 0
  %321 = vperm.xlu0 %320, %v79
  %v322 = vpop.permute.xlu0 %321
  %325 = vset.pattern.permute.xlu0 0
  %326 = vperm.xlu0 %325, %v80
  %v327 = vpop.permute.xlu0 %326
  %330 = vset.pattern.permute.xlu0 0
  %331 = vperm.xlu0 %330, %v81
  %v332 = vpop.permute.xlu0 %331
  %335 = vset.pattern.permute.xlu0 0
  %336 = vperm.xlu0 %335, %v82
  %v337 = vpop.permute.xlu0 %336
  %340 = vset.pattern.permute.xlu0 0
  %341 = vperm.xlu0 %340, %v83
  %v342 = vpop.permute.xlu0 %341
  %345 = vset.pattern.permute.xlu0 0
  %346 = vperm.xlu0 %345, %v84
  %v347 = vpop.permute.xlu0 %346
  %350 = vset.pattern.permute.xlu0 0
  %351 = vperm.xlu0 %350, %v85
  %v352 = vpop.permute.xlu0 %351
  %355 = vset.pattern.permute.xlu0 0
  %356 = vperm.xlu0 %355, %v86
  %v357 = vpop.permute.xlu0 %356
  %360 = vset.pattern.permute.xlu0 0
  %361 = vperm.xlu0 %360, %v87
  %v362 = vpop.permute.xlu0 %361
  %365 = vset.pattern.permute.xlu0 0
  %366 = vperm.xlu0 %365, %v88
  %v367 = vpop.permute.xlu0 %366
  %370 = vset.pattern.permute.xlu0 0
  %371 = vperm.xlu0 %370, %v89
  %v372 = vpop.permute.xlu0 %371
  %375 = vset.pattern.permute.xlu0 0
  %376 = vperm.xlu0 %375, %v90
  %v377 = vpop.permute.xlu0 %376
  %380 = vset.pattern.permute.xlu0 0
  %381 = vperm.xlu0 %380, %v91
  %v382 = vpop.permute.xlu0 %381
  %385 = vset.pattern.permute.xlu0 0
  %386 = vperm.xlu0 %385, %v92
  %v387 = vpop.permute.xlu0 %386
  %390 = vset.pattern.permute.xlu0 0
  %391 = vperm.xlu0 %390, %v93
  %v392 = vpop.permute.xlu0 %391
  %395 = vset.pattern.permute.xlu0 0
  %396 = vperm.xlu0 %395, %v94
  %v397 = vpop.permute.xlu0 %396
  %400 = vset.pattern.permute.xlu0 0
  %401 = vperm.xlu0 %400, %v95
  %v402 = vpop.permute.xlu0 %401
  %405 = vset.pattern.permute.xlu0 0
  %406 = vperm.xlu0 %405, %v96
  %v407 = vpop.permute.xlu0 %406
  %410 = vset.pattern.permute.xlu0 0
  %411 = vperm.xlu0 %410, %v97
  %v412 = vpop.permute.xlu0 %411
  %415 = vset.pattern.permute.xlu0 0
  %416 = vperm.xlu0 %415, %v98
  %v417 = vpop.permute.xlu0 %416
  %v419 = vlaneseq
  %v420 = vshrl.u32 %v419, 7
  %v421 = vsub.s32 0, %v420
  %v422 = vrot.slane %v34, %v421
  %v423 = vmul.f32 %v102, %v422
  %v424 = vmul.f32 %v107, %v422
  %v425 = vmul.f32 %v112, %v422
  %v426 = vmul.f32 %v117, %v422
  %v427 = vmul.f32 %v122, %v422
  %v428 = vmul.f32 %v127, %v422
  %v429 = vmul.f32 %v132, %v422
  %v430 = vmul.f32 %v137, %v422
  %v431 = vmul.f32 %v142, %v422
  %v432 = vmul.f32 %v147, %v422
  %v433 = vmul.f32 %v152, %v422
  %v434 = vmul.f32 %v157, %v422
  %v435 = vmul.f32 %v162, %v422
  %v436 = vmul.f32 %v167, %v422
  %v437 = vmul.f32 %v172, %v422
  %v438 = vmul.f32 %v177, %v422
  %v439 = vmul.f32 %v182, %v422
  %v440 = vmul.f32 %v187, %v422
  %v441 = vmul.f32 %v192, %v422
  %v442 = vmul.f32 %v197, %v422
  %v443 = vmul.f32 %v202, %v422
  %v444 = vmul.f32 %v207, %v422
  %v445 = vmul.f32 %v212, %v422
  %v446 = vmul.f32 %v217, %v422
  %v447 = vmul.f32 %v222, %v422
  %v448 = vmul.f32 %v227, %v422
  %v449 = vmul.f32 %v232, %v422
  %v450 = vmul.f32 %v237, %v422
  %v451 = vmul.f32 %v242, %v422
  %v452 = vmul.f32 %v247, %v422
  %v453 = vmul.f32 %v252, %v422
  %v454 = vmul.f32 %v257, %v422
  %v455 = vmul.f32 %v262, %v422
  %v456 = vmul.f32 %v267, %v422
  %v457 = vmul.f32 %v272, %v422
  %v458 = vmul.f32 %v277, %v422
  %v459 = vmul.f32 %v282, %v422
  %v460 = vmul.f32 %v287, %v422
  %v461 = vmul.f32 %v292, %v422
  %v462 = vmul.f32 %v297, %v422
  %v463 = vmul.f32 %v302, %v422
  %v464 = vmul.f32 %v307, %v422
  %v465 = vmul.f32 %v312, %v422
  %v466 = vmul.f32 %v317, %v422
  %v467 = vmul.f32 %v322, %v422
  %v468 = vmul.f32 %v327, %v422
  %v469 = vmul.f32 %v332, %v422
  %v470 = vmul.f32 %v337, %v422
  %v471 = vmul.f32 %v342, %v422
  %v472 = vmul.f32 %v347, %v422
  %v473 = vmul.f32 %v352, %v422
  %v474 = vmul.f32 %v357, %v422
  %v475 = vmul.f32 %v362, %v422
  %v476 = vmul.f32 %v367, %v422
  %v477 = vmul.f32 %v372, %v422
  %v478 = vmul.f32 %v377, %v422
  %v479 = vmul.f32 %v382, %v422
  %v480 = vmul.f32 %v387, %v422
  %v481 = vmul.f32 %v392, %v422
  %v482 = vmul.f32 %v397, %v422
  %v483 = vmul.f32 %v402, %v422
  %v484 = vmul.f32 %v407, %v422
  %v485 = vmul.f32 %v412, %v422
  %v486 = vmul.f32 %v417, %v422
  %487 = vset.pattern.permute.xlu0 1
  %488 = vperm.xlu0 %487, %v35
  %v489 = vpop.permute.xlu0 %488
  %491 = vset.pattern.permute.xlu0 1
  %492 = vperm.xlu0 %491, %v36
  %v493 = vpop.permute.xlu0 %492
  %495 = vset.pattern.permute.xlu0 1
  %496 = vperm.xlu0 %495, %v37
  %v497 = vpop.permute.xlu0 %496
  %499 = vset.pattern.permute.xlu0 1
  %500 = vperm.xlu0 %499, %v38
  %v501 = vpop.permute.xlu0 %500
  %503 = vset.pattern.permute.xlu0 1
  %504 = vperm.xlu0 %503, %v39
  %v505 = vpop.permute.xlu0 %504
  %507 = vset.pattern.permute.xlu0 1
  %508 = vperm.xlu0 %507, %v40
  %v509 = vpop.permute.xlu0 %508
  %511 = vset.pattern.permute.xlu0 1
  %512 = vperm.xlu0 %511, %v41
  %v513 = vpop.permute.xlu0 %512
  %515 = vset.pattern.permute.xlu0 1
  %516 = vperm.xlu0 %515, %v42
  %v517 = vpop.permute.xlu0 %516
  %519 = vset.pattern.permute.xlu0 1
  %520 = vperm.xlu0 %519, %v43
  %v521 = vpop.permute.xlu0 %520
  %523 = vset.pattern.permute.xlu0 1
  %524 = vperm.xlu0 %523, %v44
  %v525 = vpop.permute.xlu0 %524
  %527 = vset.pattern.permute.xlu0 1
  %528 = vperm.xlu0 %527, %v45
  %v529 = vpop.permute.xlu0 %528
  %531 = vset.pattern.permute.xlu0 1
  %532 = vperm.xlu0 %531, %v46
  %v533 = vpop.permute.xlu0 %532
  %535 = vset.pattern.permute.xlu0 1
  %536 = vperm.xlu0 %535, %v47
  %v537 = vpop.permute.xlu0 %536
  %539 = vset.pattern.permute.xlu0 1
  %540 = vperm.xlu0 %539, %v48
  %v541 = vpop.permute.xlu0 %540
  %543 = vset.pattern.permute.xlu0 1
  %544 = vperm.xlu0 %543, %v49
  %v545 = vpop.permute.xlu0 %544
  %547 = vset.pattern.permute.xlu0 1
  %548 = vperm.xlu0 %547, %v50
  %v549 = vpop.permute.xlu0 %548
  %551 = vset.pattern.permute.xlu0 1
  %552 = vperm.xlu0 %551, %v51
  %v553 = vpop.permute.xlu0 %552
  %555 = vset.pattern.permute.xlu0 1
  %556 = vperm.xlu0 %555, %v52
  %v557 = vpop.permute.xlu0 %556
  %559 = vset.pattern.permute.xlu0 1
  %560 = vperm.xlu0 %559, %v53
  %v561 = vpop.permute.xlu0 %560
  %563 = vset.pattern.permute.xlu0 1
  %564 = vperm.xlu0 %563, %v54
  %v565 = vpop.permute.xlu0 %564
  %567 = vset.pattern.permute.xlu0 1
  %568 = vperm.xlu0 %567, %v55
  %v569 = vpop.permute.xlu0 %568
  %571 = vset.pattern.permute.xlu0 1
  %572 = vperm.xlu0 %571, %v56
  %v573 = vpop.permute.xlu0 %572
  %575 = vset.pattern.permute.xlu0 1
  %576 = vperm.xlu0 %575, %v57
  %v577 = vpop.permute.xlu0 %576
  %579 = vset.pattern.permute.xlu0 1
  %580 = vperm.xlu0 %579, %v58
  %v581 = vpop.permute.xlu0 %580
  %583 = vset.pattern.permute.xlu0 1
  %584 = vperm.xlu0 %583, %v59
  %v585 = vpop.permute.xlu0 %584
  %587 = vset.pattern.permute.xlu0 1
  %588 = vperm.xlu0 %587, %v60
  %v589 = vpop.permute.xlu0 %588
  %591 = vset.pattern.permute.xlu0 1
  %592 = vperm.xlu0 %591, %v61
  %v593 = vpop.permute.xlu0 %592
  %595 = vset.pattern.permute.xlu0 1
  %596 = vperm.xlu0 %595, %v62
  %v597 = vpop.permute.xlu0 %596
  %599 = vset.pattern.permute.xlu0 1
  %600 = vperm.xlu0 %599, %v63
  %v601 = vpop.permute.xlu0 %600
  %603 = vset.pattern.permute.xlu0 1
  %604 = vperm.xlu0 %603, %v64
  %v605 = vpop.permute.xlu0 %604
  %607 = vset.pattern.permute.xlu0 1
  %608 = vperm.xlu0 %607, %v65
  %v609 = vpop.permute.xlu0 %608
  %611 = vset.pattern.permute.xlu0 1
  %612 = vperm.xlu0 %611, %v66
  %v613 = vpop.permute.xlu0 %612
  %615 = vset.pattern.permute.xlu0 1
  %616 = vperm.xlu0 %615, %v67
  %v617 = vpop.permute.xlu0 %616
  %619 = vset.pattern.permute.xlu0 1
  %620 = vperm.xlu0 %619, %v68
  %v621 = vpop.permute.xlu0 %620
  %623 = vset.pattern.permute.xlu0 1
  %624 = vperm.xlu0 %623, %v69
  %v625 = vpop.permute.xlu0 %624
  %627 = vset.pattern.permute.xlu0 1
  %628 = vperm.xlu0 %627, %v70
  %v629 = vpop.permute.xlu0 %628
  %631 = vset.pattern.permute.xlu0 1
  %632 = vperm.xlu0 %631, %v71
  %v633 = vpop.permute.xlu0 %632
  %635 = vset.pattern.permute.xlu0 1
  %636 = vperm.xlu0 %635, %v72
  %v637 = vpop.permute.xlu0 %636
  %639 = vset.pattern.permute.xlu0 1
  %640 = vperm.xlu0 %639, %v73
  %v641 = vpop.permute.xlu0 %640
  %643 = vset.pattern.permute.xlu0 1
  %644 = vperm.xlu0 %643, %v74
  %v645 = vpop.permute.xlu0 %644
  %647 = vset.pattern.permute.xlu0 1
  %648 = vperm.xlu0 %647, %v75
  %v649 = vpop.permute.xlu0 %648
  %651 = vset.pattern.permute.xlu0 1
  %652 = vperm.xlu0 %651, %v76
  %v653 = vpop.permute.xlu0 %652
  %655 = vset.pattern.permute.xlu0 1
  %656 = vperm.xlu0 %655, %v77
  %v657 = vpop.permute.xlu0 %656
  %659 = vset.pattern.permute.xlu0 1
  %660 = vperm.xlu0 %659, %v78
  %v661 = vpop.permute.xlu0 %660
  %663 = vset.pattern.permute.xlu0 1
  %664 = vperm.xlu0 %663, %v79
  %v665 = vpop.permute.xlu0 %664
  %667 = vset.pattern.permute.xlu0 1
  %668 = vperm.xlu0 %667, %v80
  %v669 = vpop.permute.xlu0 %668
  %671 = vset.pattern.permute.xlu0 1
  %672 = vperm.xlu0 %671, %v81
  %v673 = vpop.permute.xlu0 %672
  %675 = vset.pattern.permute.xlu0 1
  %676 = vperm.xlu0 %675, %v82
  %v677 = vpop.permute.xlu0 %676
  %679 = vset.pattern.permute.xlu0 1
  %680 = vperm.xlu0 %679, %v83
  %v681 = vpop.permute.xlu0 %680
  %683 = vset.pattern.permute.xlu0 1
  %684 = vperm.xlu0 %683, %v84
  %v685 = vpop.permute.xlu0 %684
  %687 = vset.pattern.permute.xlu0 1
  %688 = vperm.xlu0 %687, %v85
  %v689 = vpop.permute.xlu0 %688
  %691 = vset.pattern.permute.xlu0 1
  %692 = vperm.xlu0 %691, %v86
  %v693 = vpop.permute.xlu0 %692
  %695 = vset.pattern.permute.xlu0 1
  %696 = vperm.xlu0 %695, %v87
  %v697 = vpop.permute.xlu0 %696
  %699 = vset.pattern.permute.xlu0 1
  %700 = vperm.xlu0 %699, %v88
  %v701 = vpop.permute.xlu0 %700
  %703 = vset.pattern.permute.xlu0 1
  %704 = vperm.xlu0 %703, %v89
  %v705 = vpop.permute.xlu0 %704
  %707 = vset.pattern.permute.xlu0 1
  %708 = vperm.xlu0 %707, %v90
  %v709 = vpop.permute.xlu0 %708
  %711 = vset.pattern.permute.xlu0 1
  %712 = vperm.xlu0 %711, %v91
  %v713 = vpop.permute.xlu0 %712
  %715 = vset.pattern.permute.xlu0 1
  %716 = vperm.xlu0 %715, %v92
  %v717 = vpop.permute.xlu0 %716
  %719 = vset.pattern.permute.xlu0 1
  %720 = vperm.xlu0 %719, %v93
  %v721 = vpop.permute.xlu0 %720
  %723 = vset.pattern.permute.xlu0 1
  %724 = vperm.xlu0 %723, %v94
  %v725 = vpop.permute.xlu0 %724
  %727 = vset.pattern.permute.xlu0 1
  %728 = vperm.xlu0 %727, %v95
  %v729 = vpop.permute.xlu0 %728
  %731 = vset.pattern.permute.xlu0 1
  %732 = vperm.xlu0 %731, %v96
  %v733 = vpop.permute.xlu0 %732
  %735 = vset.pattern.permute.xlu0 1
  %736 = vperm.xlu0 %735, %v97
  %v737 = vpop.permute.xlu0 %736
  %739 = vset.pattern.permute.xlu0 1
  %740 = vperm.xlu0 %739, %v98
  %v741 = vpop.permute.xlu0 %740
  %v743 = vlaneseq
  %v744 = vshrl.u32 %v743, 7
  %v745 = vsub.s32 1, %v744
  %v746 = vrot.slane %v34, %v745
  %v747 = vmul.f32 %v489, %v746
  %v748 = vmul.f32 %v493, %v746
  %v749 = vmul.f32 %v497, %v746
  %v750 = vmul.f32 %v501, %v746
  %v751 = vmul.f32 %v505, %v746
  %v752 = vmul.f32 %v509, %v746
  %v753 = vmul.f32 %v513, %v746
  %v754 = vmul.f32 %v517, %v746
  %v755 = vmul.f32 %v521, %v746
  %v756 = vmul.f32 %v525, %v746
  %v757 = vmul.f32 %v529, %v746
  %v758 = vmul.f32 %v533, %v746
  %v759 = vmul.f32 %v537, %v746
  %v760 = vmul.f32 %v541, %v746
  %v761 = vmul.f32 %v545, %v746
  %v762 = vmul.f32 %v549, %v746
  %v763 = vmul.f32 %v553, %v746
  %v764 = vmul.f32 %v557, %v746
  %v765 = vmul.f32 %v561, %v746
  %v766 = vmul.f32 %v565, %v746
  %v767 = vmul.f32 %v569, %v746
  %v768 = vmul.f32 %v573, %v746
  %v769 = vmul.f32 %v577, %v746
  %v770 = vmul.f32 %v581, %v746
  %v771 = vmul.f32 %v585, %v746
  %v772 = vmul.f32 %v589, %v746
  %v773 = vmul.f32 %v593, %v746
  %v774 = vmul.f32 %v597, %v746
  %v775 = vmul.f32 %v601, %v746
  %v776 = vmul.f32 %v605, %v746
  %v777 = vmul.f32 %v609, %v746
  %v778 = vmul.f32 %v613, %v746
  %v779 = vmul.f32 %v617, %v746
  %v780 = vmul.f32 %v621, %v746
  %v781 = vmul.f32 %v625, %v746
  %v782 = vmul.f32 %v629, %v746
  %v783 = vmul.f32 %v633, %v746
  %v784 = vmul.f32 %v637, %v746
  %v785 = vmul.f32 %v641, %v746
  %v786 = vmul.f32 %v645, %v746
  %v787 = vmul.f32 %v649, %v746
  %v788 = vmul.f32 %v653, %v746
  %v789 = vmul.f32 %v657, %v746
  %v790 = vmul.f32 %v661, %v746
  %v791 = vmul.f32 %v665, %v746
  %v792 = vmul.f32 %v669, %v746
  %v793 = vmul.f32 %v673, %v746
  %v794 = vmul.f32 %v677, %v746
  %v795 = vmul.f32 %v681, %v746
  %v796 = vmul.f32 %v685, %v746
  %v797 = vmul.f32 %v689, %v746
  %v798 = vmul.f32 %v693, %v746
  %v799 = vmul.f32 %v697, %v746
  %v800 = vmul.f32 %v701, %v746
  %v801 = vmul.f32 %v705, %v746
  %v802 = vmul.f32 %v709, %v746
  %v803 = vmul.f32 %v713, %v746
  %v804 = vmul.f32 %v717, %v746
  %v805 = vmul.f32 %v721, %v746
  %v806 = vmul.f32 %v725, %v746
  %v807 = vmul.f32 %v729, %v746
  %v808 = vmul.f32 %v733, %v746
  %v809 = vmul.f32 %v737, %v746
  %v810 = vmul.f32 %v741, %v746
  %v811 = vadd.f32 %v423, %v747
  %v812 = vadd.f32 %v424, %v748
  %v813 = vadd.f32 %v425, %v749
  %v814 = vadd.f32 %v426, %v750
  %v815 = vadd.f32 %v427, %v751
  %v816 = vadd.f32 %v428, %v752
  %v817 = vadd.f32 %v429, %v753
  %v818 = vadd.f32 %v430, %v754
  %v819 = vadd.f32 %v431, %v755
  %v820 = vadd.f32 %v432, %v756
  %v821 = vadd.f32 %v433, %v757
  %v822 = vadd.f32 %v434, %v758
  %v823 = vadd.f32 %v435, %v759
  %v824 = vadd.f32 %v436, %v760
  %v825 = vadd.f32 %v437, %v761
  %v826 = vadd.f32 %v438, %v762
  %v827 = vadd.f32 %v439, %v763
  %v828 = vadd.f32 %v440, %v764
  %v829 = vadd.f32 %v441, %v765
  %v830 = vadd.f32 %v442, %v766
  %v831 = vadd.f32 %v443, %v767
  %v832 = vadd.f32 %v444, %v768
  %v833 = vadd.f32 %v445, %v769
  %v834 = vadd.f32 %v446, %v770
  %v835 = vadd.f32 %v447, %v771
  %v836 = vadd.f32 %v448, %v772
  %v837 = vadd.f32 %v449, %v773
  %v838 = vadd.f32 %v450, %v774
  %v839 = vadd.f32 %v451, %v775
  %v840 = vadd.f32 %v452, %v776
  %v841 = vadd.f32 %v453, %v777
  %v842 = vadd.f32 %v454, %v778
  %v843 = vadd.f32 %v455, %v779
  %v844 = vadd.f32 %v456, %v780
  %v845 = vadd.f32 %v457, %v781
  %v846 = vadd.f32 %v458, %v782
  %v847 = vadd.f32 %v459, %v783
  %v848 = vadd.f32 %v460, %v784
  %v849 = vadd.f32 %v461, %v785
  %v850 = vadd.f32 %v462, %v786
  %v851 = vadd.f32 %v463, %v787
  %v852 = vadd.f32 %v464, %v788
  %v853 = vadd.f32 %v465, %v789
  %v854 = vadd.f32 %v466, %v790
  %v855 = vadd.f32 %v467, %v791
  %v856 = vadd.f32 %v468, %v792
  %v857 = vadd.f32 %v469, %v793
  %v858 = vadd.f32 %v470, %v794
  %v859 = vadd.f32 %v471, %v795
  %v860 = vadd.f32 %v472, %v796
  %v861 = vadd.f32 %v473, %v797
  %v862 = vadd.f32 %v474, %v798
  %v863 = vadd.f32 %v475, %v799
  %v864 = vadd.f32 %v476, %v800
  %v865 = vadd.f32 %v477, %v801
  %v866 = vadd.f32 %v478, %v802
  %v867 = vadd.f32 %v479, %v803
  %v868 = vadd.f32 %v480, %v804
  %v869 = vadd.f32 %v481, %v805
  %v870 = vadd.f32 %v482, %v806
  %v871 = vadd.f32 %v483, %v807
  %v872 = vadd.f32 %v484, %v808
  %v873 = vadd.f32 %v485, %v809
  %v874 = vadd.f32 %v486, %v810
  %v875 = vld [vmem:[%s2] sm:$0xff]
  %v876 = vld [vmem:[%s2 + $0x8] sm:$0xff]
  %v877 = vld [vmem:[%s2 + $0x10] sm:$0xff]
  %v878 = vld [vmem:[%s2 + $0x18] sm:$0xff]
  %v879 = vld [vmem:[%s2 + $0x20] sm:$0xff]
  %v880 = vld [vmem:[%s2 + $0x28] sm:$0xff]
  %v881 = vld [vmem:[%s2 + $0x30] sm:$0xff]
  %v882 = vld [vmem:[%s2 + $0x38] sm:$0xff]
  %v883 = vld [vmem:[%s2 + $0x40] sm:$0xff]
  %v884 = vld [vmem:[%s2 + $0x48] sm:$0xff]
  %v885 = vld [vmem:[%s2 + $0x50] sm:$0xff]
  %v886 = vld [vmem:[%s2 + $0x58] sm:$0xff]
  %v887 = vld [vmem:[%s2 + $0x60] sm:$0xff]
  %v888 = vld [vmem:[%s2 + $0x68] sm:$0xff]
  %v889 = vld [vmem:[%s2 + $0x70] sm:$0xff]
  %v890 = vld [vmem:[%s2 + $0x78] sm:$0xff]
  %v891 = vld [vmem:[%s2 + $0x80] sm:$0xff]
  %v892 = vld [vmem:[%s2 + $0x88] sm:$0xff]
  %v893 = vld [vmem:[%s2 + $0x90] sm:$0xff]
  %v894 = vld [vmem:[%s2 + $0x98] sm:$0xff]
  %v895 = vld [vmem:[%s2 + $0xa0] sm:$0xff]
  %v896 = vld [vmem:[%s2 + $0xa8] sm:$0xff]
  %v897 = vld [vmem:[%s2 + $0xb0] sm:$0xff]
  %v898 = vld [vmem:[%s2 + $0xb8] sm:$0xff]
  %v899 = vld [vmem:[%s2 + $0xc0] sm:$0xff]
  %v900 = vld [vmem:[%s2 + $0xc8] sm:$0xff]
  %v901 = vld [vmem:[%s2 + $0xd0] sm:$0xff]
  %v902 = vld [vmem:[%s2 + $0xd8] sm:$0xff]
  %v903 = vld [vmem:[%s2 + $0xe0] sm:$0xff]
  %v904 = vld [vmem:[%s2 + $0xe8] sm:$0xff]
  %v905 = vld [vmem:[%s2 + $0xf0] sm:$0xff]
  %v906 = vld [vmem:[%s2 + $0xf8] sm:$0xff]
  %v907 = vld [vmem:[%s2 + $0x100] sm:$0xff]
  %v908 = vld [vmem:[%s2 + $0x108] sm:$0xff]
  %v909 = vld [vmem:[%s2 + $0x110] sm:$0xff]
  %v910 = vld [vmem:[%s2 + $0x118] sm:$0xff]
  %v911 = vld [vmem:[%s2 + $0x120] sm:$0xff]
  %v912 = vld [vmem:[%s2 + $0x128] sm:$0xff]
  %v913 = vld [vmem:[%s2 + $0x130] sm:$0xff]
  %v914 = vld [vmem:[%s2 + $0x138] sm:$0xff]
  %v915 = vld [vmem:[%s2 + $0x140] sm:$0xff]
  %v916 = vld [vmem:[%s2 + $0x148] sm:$0xff]
  %v917 = vld [vmem:[%s2 + $0x150] sm:$0xff]
  %v918 = vld [vmem:[%s2 + $0x158] sm:$0xff]
  %v919 = vld [vmem:[%s2 + $0x160] sm:$0xff]
  %v920 = vld [vmem:[%s2 + $0x168] sm:$0xff]
  %v921 = vld [vmem:[%s2 + $0x170] sm:$0xff]
  %v922 = vld [vmem:[%s2 + $0x178] sm:$0xff]
  %v923 = vld [vmem:[%s2 + $0x180] sm:$0xff]
  %v924 = vld [vmem:[%s2 + $0x188] sm:$0xff]
  %v925 = vld [vmem:[%s2 + $0x190] sm:$0xff]
  %v926 = vld [vmem:[%s2 + $0x198] sm:$0xff]
  %v927 = vld [vmem:[%s2 + $0x1a0] sm:$0xff]
  %v928 = vld [vmem:[%s2 + $0x1a8] sm:$0xff]
  %v929 = vld [vmem:[%s2 + $0x1b0] sm:$0xff]
  %v930 = vld [vmem:[%s2 + $0x1b8] sm:$0xff]
  %v931 = vld [vmem:[%s2 + $0x1c0] sm:$0xff]
  %v932 = vld [vmem:[%s2 + $0x1c8] sm:$0xff]
  %v933 = vld [vmem:[%s2 + $0x1d0] sm:$0xff]
  %v934 = vld [vmem:[%s2 + $0x1d8] sm:$0xff]
  %v935 = vld [vmem:[%s2 + $0x1e0] sm:$0xff]
  %v936 = vld [vmem:[%s2 + $0x1e8] sm:$0xff]
  %v937 = vld [vmem:[%s2 + $0x1f0] sm:$0xff]
  %v938 = vld [vmem:[%s2 + $0x1f8] sm:$0xff]
  %940 = vset.pattern.permute.xlu0 0
  %941 = vperm.xlu0 %940, %v875
  %v942 = vpop.permute.xlu0 %941
  %945 = vset.pattern.permute.xlu0 0
  %946 = vperm.xlu0 %945, %v876
  %v947 = vpop.permute.xlu0 %946
  %950 = vset.pattern.permute.xlu0 0
  %951 = vperm.xlu0 %950, %v877
  %v952 = vpop.permute.xlu0 %951
  %955 = vset.pattern.permute.xlu0 0
  %956 = vperm.xlu0 %955, %v878
  %v957 = vpop.permute.xlu0 %956
  %960 = vset.pattern.permute.xlu0 0
  %961 = vperm.xlu0 %960, %v879
  %v962 = vpop.permute.xlu0 %961
  %965 = vset.pattern.permute.xlu0 0
  %966 = vperm.xlu0 %965, %v880
  %v967 = vpop.permute.xlu0 %966
  %970 = vset.pattern.permute.xlu0 0
  %971 = vperm.xlu0 %970, %v881
  %v972 = vpop.permute.xlu0 %971
  %975 = vset.pattern.permute.xlu0 0
  %976 = vperm.xlu0 %975, %v882
  %v977 = vpop.permute.xlu0 %976
  %980 = vset.pattern.permute.xlu0 0
  %981 = vperm.xlu0 %980, %v883
  %v982 = vpop.permute.xlu0 %981
  %985 = vset.pattern.permute.xlu0 0
  %986 = vperm.xlu0 %985, %v884
  %v987 = vpop.permute.xlu0 %986
  %990 = vset.pattern.permute.xlu0 0
  %991 = vperm.xlu0 %990, %v885
  %v992 = vpop.permute.xlu0 %991
  %995 = vset.pattern.permute.xlu0 0
  %996 = vperm.xlu0 %995, %v886
  %v997 = vpop.permute.xlu0 %996
  %1000 = vset.pattern.permute.xlu0 0
  %1001 = vperm.xlu0 %1000, %v887
  %v1002 = vpop.permute.xlu0 %1001
  %1005 = vset.pattern.permute.xlu0 0
  %1006 = vperm.xlu0 %1005, %v888
  %v1007 = vpop.permute.xlu0 %1006
  %1010 = vset.pattern.permute.xlu0 0
  %1011 = vperm.xlu0 %1010, %v889
  %v1012 = vpop.permute.xlu0 %1011
  %1015 = vset.pattern.permute.xlu0 0
  %1016 = vperm.xlu0 %1015, %v890
  %v1017 = vpop.permute.xlu0 %1016
  %1020 = vset.pattern.permute.xlu0 0
  %1021 = vperm.xlu0 %1020, %v891
  %v1022 = vpop.permute.xlu0 %1021
  %1025 = vset.pattern.permute.xlu0 0
  %1026 = vperm.xlu0 %1025, %v892
  %v1027 = vpop.permute.xlu0 %1026
  %1030 = vset.pattern.permute.xlu0 0
  %1031 = vperm.xlu0 %1030, %v893
  %v1032 = vpop.permute.xlu0 %1031
  %1035 = vset.pattern.permute.xlu0 0
  %1036 = vperm.xlu0 %1035, %v894
  %v1037 = vpop.permute.xlu0 %1036
  %1040 = vset.pattern.permute.xlu0 0
  %1041 = vperm.xlu0 %1040, %v895
  %v1042 = vpop.permute.xlu0 %1041
  %1045 = vset.pattern.permute.xlu0 0
  %1046 = vperm.xlu0 %1045, %v896
  %v1047 = vpop.permute.xlu0 %1046
  %1050 = vset.pattern.permute.xlu0 0
  %1051 = vperm.xlu0 %1050, %v897
  %v1052 = vpop.permute.xlu0 %1051
  %1055 = vset.pattern.permute.xlu0 0
  %1056 = vperm.xlu0 %1055, %v898
  %v1057 = vpop.permute.xlu0 %1056
  %1060 = vset.pattern.permute.xlu0 0
  %1061 = vperm.xlu0 %1060, %v899
  %v1062 = vpop.permute.xlu0 %1061
  %1065 = vset.pattern.permute.xlu0 0
  %1066 = vperm.xlu0 %1065, %v900
  %v1067 = vpop.permute.xlu0 %1066
  %1070 = vset.pattern.permute.xlu0 0
  %1071 = vperm.xlu0 %1070, %v901
  %v1072 = vpop.permute.xlu0 %1071
  %1075 = vset.pattern.permute.xlu0 0
  %1076 = vperm.xlu0 %1075, %v902
  %v1077 = vpop.permute.xlu0 %1076
  %1080 = vset.pattern.permute.xlu0 0
  %1081 = vperm.xlu0 %1080, %v903
  %v1082 = vpop.permute.xlu0 %1081
  %1085 = vset.pattern.permute.xlu0 0
  %1086 = vperm.xlu0 %1085, %v904
  %v1087 = vpop.permute.xlu0 %1086
  %1090 = vset.pattern.permute.xlu0 0
  %1091 = vperm.xlu0 %1090, %v905
  %v1092 = vpop.permute.xlu0 %1091
  %1095 = vset.pattern.permute.xlu0 0
  %1096 = vperm.xlu0 %1095, %v906
  %v1097 = vpop.permute.xlu0 %1096
  %1100 = vset.pattern.permute.xlu0 0
  %1101 = vperm.xlu0 %1100, %v907
  %v1102 = vpop.permute.xlu0 %1101
  %1105 = vset.pattern.permute.xlu0 0
  %1106 = vperm.xlu0 %1105, %v908
  %v1107 = vpop.permute.xlu0 %1106
  %1110 = vset.pattern.permute.xlu0 0
  %1111 = vperm.xlu0 %1110, %v909
  %v1112 = vpop.permute.xlu0 %1111
  %1115 = vset.pattern.permute.xlu0 0
  %1116 = vperm.xlu0 %1115, %v910
  %v1117 = vpop.permute.xlu0 %1116
  %1120 = vset.pattern.permute.xlu0 0
  %1121 = vperm.xlu0 %1120, %v911
  %v1122 = vpop.permute.xlu0 %1121
  %1125 = vset.pattern.permute.xlu0 0
  %1126 = vperm.xlu0 %1125, %v912
  %v1127 = vpop.permute.xlu0 %1126
  %1130 = vset.pattern.permute.xlu0 0
  %1131 = vperm.xlu0 %1130, %v913
  %v1132 = vpop.permute.xlu0 %1131
  %1135 = vset.pattern.permute.xlu0 0
  %1136 = vperm.xlu0 %1135, %v914
  %v1137 = vpop.permute.xlu0 %1136
  %1140 = vset.pattern.permute.xlu0 0
  %1141 = vperm.xlu0 %1140, %v915
  %v1142 = vpop.permute.xlu0 %1141
  %1145 = vset.pattern.permute.xlu0 0
  %1146 = vperm.xlu0 %1145, %v916
  %v1147 = vpop.permute.xlu0 %1146
  %1150 = vset.pattern.permute.xlu0 0
  %1151 = vperm.xlu0 %1150, %v917
  %v1152 = vpop.permute.xlu0 %1151
  %1155 = vset.pattern.permute.xlu0 0
  %1156 = vperm.xlu0 %1155, %v918
  %v1157 = vpop.permute.xlu0 %1156
  %1160 = vset.pattern.permute.xlu0 0
  %1161 = vperm.xlu0 %1160, %v919
  %v1162 = vpop.permute.xlu0 %1161
  %1165 = vset.pattern.permute.xlu0 0
  %1166 = vperm.xlu0 %1165, %v920
  %v1167 = vpop.permute.xlu0 %1166
  %1170 = vset.pattern.permute.xlu0 0
  %1171 = vperm.xlu0 %1170, %v921
  %v1172 = vpop.permute.xlu0 %1171
  %1175 = vset.pattern.permute.xlu0 0
  %1176 = vperm.xlu0 %1175, %v922
  %v1177 = vpop.permute.xlu0 %1176
  %1180 = vset.pattern.permute.xlu0 0
  %1181 = vperm.xlu0 %1180, %v923
  %v1182 = vpop.permute.xlu0 %1181
  %1185 = vset.pattern.permute.xlu0 0
  %1186 = vperm.xlu0 %1185, %v924
  %v1187 = vpop.permute.xlu0 %1186
  %1190 = vset.pattern.permute.xlu0 0
  %1191 = vperm.xlu0 %1190, %v925
  %v1192 = vpop.permute.xlu0 %1191
  %1195 = vset.pattern.permute.xlu0 0
  %1196 = vperm.xlu0 %1195, %v926
  %v1197 = vpop.permute.xlu0 %1196
  %1200 = vset.pattern.permute.xlu0 0
  %1201 = vperm.xlu0 %1200, %v927
  %v1202 = vpop.permute.xlu0 %1201
  %1205 = vset.pattern.permute.xlu0 0
  %1206 = vperm.xlu0 %1205, %v928
  %v1207 = vpop.permute.xlu0 %1206
  %1210 = vset.pattern.permute.xlu0 0
  %1211 = vperm.xlu0 %1210, %v929
  %v1212 = vpop.permute.xlu0 %1211
  %1215 = vset.pattern.permute.xlu0 0
  %1216 = vperm.xlu0 %1215, %v930
  %v1217 = vpop.permute.xlu0 %1216
  %1220 = vset.pattern.permute.xlu0 0
  %1221 = vperm.xlu0 %1220, %v931
  %v1222 = vpop.permute.xlu0 %1221
  %1225 = vset.pattern.permute.xlu0 0
  %1226 = vperm.xlu0 %1225, %v932
  %v1227 = vpop.permute.xlu0 %1226
  %1230 = vset.pattern.permute.xlu0 0
  %1231 = vperm.xlu0 %1230, %v933
  %v1232 = vpop.permute.xlu0 %1231
  %1235 = vset.pattern.permute.xlu0 0
  %1236 = vperm.xlu0 %1235, %v934
  %v1237 = vpop.permute.xlu0 %1236
  %1240 = vset.pattern.permute.xlu0 0
  %1241 = vperm.xlu0 %1240, %v935
  %v1242 = vpop.permute.xlu0 %1241
  %1245 = vset.pattern.permute.xlu0 0
  %1246 = vperm.xlu0 %1245, %v936
  %v1247 = vpop.permute.xlu0 %1246
  %1250 = vset.pattern.permute.xlu0 0
  %1251 = vperm.xlu0 %1250, %v937
  %v1252 = vpop.permute.xlu0 %1251
  %1255 = vset.pattern.permute.xlu0 0
  %1256 = vperm.xlu0 %1255, %v938
  %v1257 = vpop.permute.xlu0 %1256
  %v1259 = vadd.f32 %v811, %v942
  %v1260 = vadd.f32 %v812, %v947
  %v1261 = vadd.f32 %v813, %v952
  %v1262 = vadd.f32 %v814, %v957
  %v1263 = vadd.f32 %v815, %v962
  %v1264 = vadd.f32 %v816, %v967
  %v1265 = vadd.f32 %v817, %v972
  %v1266 = vadd.f32 %v818, %v977
  %v1267 = vadd.f32 %v819, %v982
  %v1268 = vadd.f32 %v820, %v987
  %v1269 = vadd.f32 %v821, %v992
  %v1270 = vadd.f32 %v822, %v997
  %v1271 = vadd.f32 %v823, %v1002
  %v1272 = vadd.f32 %v824, %v1007
  %v1273 = vadd.f32 %v825, %v1012
  %v1274 = vadd.f32 %v826, %v1017
  %v1275 = vadd.f32 %v827, %v1022
  %v1276 = vadd.f32 %v828, %v1027
  %v1277 = vadd.f32 %v829, %v1032
  %v1278 = vadd.f32 %v830, %v1037
  %v1279 = vadd.f32 %v831, %v1042
  %v1280 = vadd.f32 %v832, %v1047
  %v1281 = vadd.f32 %v833, %v1052
  %v1282 = vadd.f32 %v834, %v1057
  %v1283 = vadd.f32 %v835, %v1062
  %v1284 = vadd.f32 %v836, %v1067
  %v1285 = vadd.f32 %v837, %v1072
  %v1286 = vadd.f32 %v838, %v1077
  %v1287 = vadd.f32 %v839, %v1082
  %v1288 = vadd.f32 %v840, %v1087
  %v1289 = vadd.f32 %v841, %v1092
  %v1290 = vadd.f32 %v842, %v1097
  %v1291 = vadd.f32 %v843, %v1102
  %v1292 = vadd.f32 %v844, %v1107
  %v1293 = vadd.f32 %v845, %v1112
  %v1294 = vadd.f32 %v846, %v1117
  %v1295 = vadd.f32 %v847, %v1122
  %v1296 = vadd.f32 %v848, %v1127
  %v1297 = vadd.f32 %v849, %v1132
  %v1298 = vadd.f32 %v850, %v1137
  %v1299 = vadd.f32 %v851, %v1142
  %v1300 = vadd.f32 %v852, %v1147
  %v1301 = vadd.f32 %v853, %v1152
  %v1302 = vadd.f32 %v854, %v1157
  %v1303 = vadd.f32 %v855, %v1162
  %v1304 = vadd.f32 %v856, %v1167
  %v1305 = vadd.f32 %v857, %v1172
  %v1306 = vadd.f32 %v858, %v1177
  %v1307 = vadd.f32 %v859, %v1182
  %v1308 = vadd.f32 %v860, %v1187
  %v1309 = vadd.f32 %v861, %v1192
  %v1310 = vadd.f32 %v862, %v1197
  %v1311 = vadd.f32 %v863, %v1202
  %v1312 = vadd.f32 %v864, %v1207
  %v1313 = vadd.f32 %v865, %v1212
  %v1314 = vadd.f32 %v866, %v1217
  %v1315 = vadd.f32 %v867, %v1222
  %v1316 = vadd.f32 %v868, %v1227
  %v1317 = vadd.f32 %v869, %v1232
  %v1318 = vadd.f32 %v870, %v1237
  %v1319 = vadd.f32 %v871, %v1242
  %v1320 = vadd.f32 %v872, %v1247
  %v1321 = vadd.f32 %v873, %v1252
  %v1322 = vadd.f32 %v874, %v1257
  %v1323 = vmax.f32 %v1259, 0.0
  %v1324 = vmax.f32 %v1260, 0.0
  %v1325 = vmax.f32 %v1261, 0.0
  %v1326 = vmax.f32 %v1262, 0.0
  %v1327 = vmax.f32 %v1263, 0.0
  %v1328 = vmax.f32 %v1264, 0.0
  %v1329 = vmax.f32 %v1265, 0.0
  %v1330 = vmax.f32 %v1266, 0.0
  %v1331 = vmax.f32 %v1267, 0.0
  %v1332 = vmax.f32 %v1268, 0.0
  %v1333 = vmax.f32 %v1269, 0.0
  %v1334 = vmax.f32 %v1270, 0.0
  %v1335 = vmax.f32 %v1271, 0.0
  %v1336 = vmax.f32 %v1272, 0.0
  %v1337 = vmax.f32 %v1273, 0.0
  %v1338 = vmax.f32 %v1274, 0.0
  %v1339 = vmax.f32 %v1275, 0.0
  %v1340 = vmax.f32 %v1276, 0.0
  %v1341 = vmax.f32 %v1277, 0.0
  %v1342 = vmax.f32 %v1278, 0.0
  %v1343 = vmax.f32 %v1279, 0.0
  %v1344 = vmax.f32 %v1280, 0.0
  %v1345 = vmax.f32 %v1281, 0.0
  %v1346 = vmax.f32 %v1282, 0.0
  %v1347 = vmax.f32 %v1283, 0.0
  %v1348 = vmax.f32 %v1284, 0.0
  %v1349 = vmax.f32 %v1285, 0.0
  %v1350 = vmax.f32 %v1286, 0.0
  %v1351 = vmax.f32 %v1287, 0.0
  %v1352 = vmax.f32 %v1288, 0.0
  %v1353 = vmax.f32 %v1289, 0.0
  %v1354 = vmax.f32 %v1290, 0.0
  %v1355 = vmax.f32 %v1291, 0.0
  %v1356 = vmax.f32 %v1292, 0.0
  %v1357 = vmax.f32 %v1293, 0.0
  %v1358 = vmax.f32 %v1294, 0.0
  %v1359 = vmax.f32 %v1295, 0.0
  %v1360 = vmax.f32 %v1296, 0.0
  %v1361 = vmax.f32 %v1297, 0.0
  %v1362 = vmax.f32 %v1298, 0.0
  %v1363 = vmax.f32 %v1299, 0.0
  %v1364 = vmax.f32 %v1300, 0.0
  %v1365 = vmax.f32 %v1301, 0.0
  %v1366 = vmax.f32 %v1302, 0.0
  %v1367 = vmax.f32 %v1303, 0.0
  %v1368 = vmax.f32 %v1304, 0.0
  %v1369 = vmax.f32 %v1305, 0.0
  %v1370 = vmax.f32 %v1306, 0.0
  %v1371 = vmax.f32 %v1307, 0.0
  %v1372 = vmax.f32 %v1308, 0.0
  %v1373 = vmax.f32 %v1309, 0.0
  %v1374 = vmax.f32 %v1310, 0.0
  %v1375 = vmax.f32 %v1311, 0.0
  %v1376 = vmax.f32 %v1312, 0.0
  %v1377 = vmax.f32 %v1313, 0.0
  %v1378 = vmax.f32 %v1314, 0.0
  %v1379 = vmax.f32 %v1315, 0.0
  %v1380 = vmax.f32 %v1316, 0.0
  %v1381 = vmax.f32 %v1317, 0.0
  %v1382 = vmax.f32 %v1318, 0.0
  %v1383 = vmax.f32 %v1319, 0.0
  %v1384 = vmax.f32 %v1320, 0.0
  %v1385 = vmax.f32 %v1321, 0.0
  %v1386 = vmax.f32 %v1322, 0.0
  %v1387 = vld [vmem:[%s3] sm:$0xff]
  %v1388 = vld [vmem:[%s3 + $0x8] sm:$0xff]
  %v1389 = vld [vmem:[%s3 + $0x10] sm:$0xff]
  %v1390 = vld [vmem:[%s3 + $0x18] sm:$0xff]
  %v1391 = vld [vmem:[%s3 + $0x20] sm:$0xff]
  %v1392 = vld [vmem:[%s3 + $0x28] sm:$0xff]
  %v1393 = vld [vmem:[%s3 + $0x30] sm:$0xff]
  %v1394 = vld [vmem:[%s3 + $0x38] sm:$0xff]
  %v1395 = vld [vmem:[%s3 + $0x40] sm:$0xff]
  %v1396 = vld [vmem:[%s3 + $0x48] sm:$0xff]
  %v1397 = vld [vmem:[%s3 + $0x50] sm:$0xff]
  %v1398 = vld [vmem:[%s3 + $0x58] sm:$0xff]
  %v1399 = vld [vmem:[%s3 + $0x60] sm:$0xff]
  %v1400 = vld [vmem:[%s3 + $0x68] sm:$0xff]
  %v1401 = vld [vmem:[%s3 + $0x70] sm:$0xff]
  %v1402 = vld [vmem:[%s3 + $0x78] sm:$0xff]
  %v1403 = vld [vmem:[%s3 + $0x80] sm:$0xff]
  %v1404 = vld [vmem:[%s3 + $0x88] sm:$0xff]
  %v1405 = vld [vmem:[%s3 + $0x90] sm:$0xff]
  %v1406 = vld [vmem:[%s3 + $0x98] sm:$0xff]
  %v1407 = vld [vmem:[%s3 + $0xa0] sm:$0xff]
  %v1408 = vld [vmem:[%s3 + $0xa8] sm:$0xff]
  %v1409 = vld [vmem:[%s3 + $0xb0] sm:$0xff]
  %v1410 = vld [vmem:[%s3 + $0xb8] sm:$0xff]
  %v1411 = vld [vmem:[%s3 + $0xc0] sm:$0xff]
  %v1412 = vld [vmem:[%s3 + $0xc8] sm:$0xff]
  %v1413 = vld [vmem:[%s3 + $0xd0] sm:$0xff]
  %v1414 = vld [vmem:[%s3 + $0xd8] sm:$0xff]
  %v1415 = vld [vmem:[%s3 + $0xe0] sm:$0xff]
  %v1416 = vld [vmem:[%s3 + $0xe8] sm:$0xff]
  %v1417 = vld [vmem:[%s3 + $0xf0] sm:$0xff]
  %v1418 = vld [vmem:[%s3 + $0xf8] sm:$0xff]
  %v1419 = vld [vmem:[%s3 + $0x100] sm:$0xff]
  %v1420 = vld [vmem:[%s3 + $0x108] sm:$0xff]
  %v1421 = vld [vmem:[%s3 + $0x110] sm:$0xff]
  %v1422 = vld [vmem:[%s3 + $0x118] sm:$0xff]
  %v1423 = vld [vmem:[%s3 + $0x120] sm:$0xff]
  %v1424 = vld [vmem:[%s3 + $0x128] sm:$0xff]
  %v1425 = vld [vmem:[%s3 + $0x130] sm:$0xff]
  %v1426 = vld [vmem:[%s3 + $0x138] sm:$0xff]
  %v1427 = vld [vmem:[%s3 + $0x140] sm:$0xff]
  %v1428 = vld [vmem:[%s3 + $0x148] sm:$0xff]
  %v1429 = vld [vmem:[%s3 + $0x150] sm:$0xff]
  %v1430 = vld [vmem:[%s3 + $0x158] sm:$0xff]
  %v1431 = vld [vmem:[%s3 + $0x160] sm:$0xff]
  %v1432 = vld [vmem:[%s3 + $0x168] sm:$0xff]
  %v1433 = vld [vmem:[%s3 + $0x170] sm:$0xff]
  %v1434 = vld [vmem:[%s3 + $0x178] sm:$0xff]
  %v1435 = vld [vmem:[%s3 + $0x180] sm:$0xff]
  %v1436 = vld [vmem:[%s3 + $0x188] sm:$0xff]
  %v1437 = vld [vmem:[%s3 + $0x190] sm:$0xff]
  %v1438 = vld [vmem:[%s3 + $0x198] sm:$0xff]
  %v1439 = vld [vmem:[%s3 + $0x1a0] sm:$0xff]
  %v1440 = vld [vmem:[%s3 + $0x1a8] sm:$0xff]
  %v1441 = vld [vmem:[%s3 + $0x1b0] sm:$0xff]
  %v1442 = vld [vmem:[%s3 + $0x1b8] sm:$0xff]
  %v1443 = vld [vmem:[%s3 + $0x1c0] sm:$0xff]
  %v1444 = vld [vmem:[%s3 + $0x1c8] sm:$0xff]
  %v1445 = vld [vmem:[%s3 + $0x1d0] sm:$0xff]
  %v1446 = vld [vmem:[%s3 + $0x1d8] sm:$0xff]
  %v1447 = vld [vmem:[%s3 + $0x1e0] sm:$0xff]
  %v1448 = vld [vmem:[%s3 + $0x1e8] sm:$0xff]
  %v1449 = vld [vmem:[%s3 + $0x1f0] sm:$0xff]
  %v1450 = vld [vmem:[%s3 + $0x1f8] sm:$0xff]
  %v1451 = vld [vmem:[%s3 + $0x200] sm:$0xff]
  %v1452 = vld [vmem:[%s3 + $0x208] sm:$0xff]
  %v1453 = vld [vmem:[%s3 + $0x210] sm:$0xff]
  %v1454 = vld [vmem:[%s3 + $0x218] sm:$0xff]
  %v1455 = vld [vmem:[%s3 + $0x220] sm:$0xff]
  %v1456 = vld [vmem:[%s3 + $0x228] sm:$0xff]
  %v1457 = vld [vmem:[%s3 + $0x230] sm:$0xff]
  %v1458 = vld [vmem:[%s3 + $0x238] sm:$0xff]
  %v1459 = vld [vmem:[%s3 + $0x240] sm:$0xff]
  %v1460 = vld [vmem:[%s3 + $0x248] sm:$0xff]
  %v1461 = vld [vmem:[%s3 + $0x250] sm:$0xff]
  %v1462 = vld [vmem:[%s3 + $0x258] sm:$0xff]
  %v1463 = vld [vmem:[%s3 + $0x260] sm:$0xff]
  %v1464 = vld [vmem:[%s3 + $0x268] sm:$0xff]
  %v1465 = vld [vmem:[%s3 + $0x270] sm:$0xff]
  %v1466 = vld [vmem:[%s3 + $0x278] sm:$0xff]
  %v1467 = vld [vmem:[%s3 + $0x280] sm:$0xff]
  %v1468 = vld [vmem:[%s3 + $0x288] sm:$0xff]
  %v1469 = vld [vmem:[%s3 + $0x290] sm:$0xff]
  %v1470 = vld [vmem:[%s3 + $0x298] sm:$0xff]
  %v1471 = vld [vmem:[%s3 + $0x2a0] sm:$0xff]
  %v1472 = vld [vmem:[%s3 + $0x2a8] sm:$0xff]
  %v1473 = vld [vmem:[%s3 + $0x2b0] sm:$0xff]
  %v1474 = vld [vmem:[%s3 + $0x2b8] sm:$0xff]
  %v1475 = vld [vmem:[%s3 + $0x2c0] sm:$0xff]
  %v1476 = vld [vmem:[%s3 + $0x2c8] sm:$0xff]
  %v1477 = vld [vmem:[%s3 + $0x2d0] sm:$0xff]
  %v1478 = vld [vmem:[%s3 + $0x2d8] sm:$0xff]
  %v1479 = vld [vmem:[%s3 + $0x2e0] sm:$0xff]
  %v1480 = vld [vmem:[%s3 + $0x2e8] sm:$0xff]
  %v1481 = vld [vmem:[%s3 + $0x2f0] sm:$0xff]
  %v1482 = vld [vmem:[%s3 + $0x2f8] sm:$0xff]
  %v1483 = vld [vmem:[%s3 + $0x300] sm:$0xff]
  %v1484 = vld [vmem:[%s3 + $0x308] sm:$0xff]
  %v1485 = vld [vmem:[%s3 + $0x310] sm:$0xff]
  %v1486 = vld [vmem:[%s3 + $0x318] sm:$0xff]
  %v1487 = vld [vmem:[%s3 + $0x320] sm:$0xff]
  %v1488 = vld [vmem:[%s3 + $0x328] sm:$0xff]
  %v1489 = vld [vmem:[%s3 + $0x330] sm:$0xff]
  %v1490 = vld [vmem:[%s3 + $0x338] sm:$0xff]
  %v1491 = vld [vmem:[%s3 + $0x340] sm:$0xff]
  %v1492 = vld [vmem:[%s3 + $0x348] sm:$0xff]
  %v1493 = vld [vmem:[%s3 + $0x350] sm:$0xff]
  %v1494 = vld [vmem:[%s3 + $0x358] sm:$0xff]
  %v1495 = vld [vmem:[%s3 + $0x360] sm:$0xff]
  %v1496 = vld [vmem:[%s3 + $0x368] sm:$0xff]
  %v1497 = vld [vmem:[%s3 + $0x370] sm:$0xff]
  %v1498 = vld [vmem:[%s3 + $0x378] sm:$0xff]
  %v1499 = vld [vmem:[%s3 + $0x380] sm:$0xff]
  %v1500 = vld [vmem:[%s3 + $0x388] sm:$0xff]
  %v1501 = vld [vmem:[%s3 + $0x390] sm:$0xff]
  %v1502 = vld [vmem:[%s3 + $0x398] sm:$0xff]
  %v1503 = vld [vmem:[%s3 + $0x3a0] sm:$0xff]
  %v1504 = vld [vmem:[%s3 + $0x3a8] sm:$0xff]
  %v1505 = vld [vmem:[%s3 + $0x3b0] sm:$0xff]
  %v1506 = vld [vmem:[%s3 + $0x3b8] sm:$0xff]
  %v1507 = vld [vmem:[%s3 + $0x3c0] sm:$0xff]
  %v1508 = vld [vmem:[%s3 + $0x3c8] sm:$0xff]
  %v1509 = vld [vmem:[%s3 + $0x3d0] sm:$0xff]
  %v1510 = vld [vmem:[%s3 + $0x3d8] sm:$0xff]
  %v1511 = vld [vmem:[%s3 + $0x3e0] sm:$0xff]
  %v1512 = vld [vmem:[%s3 + $0x3e8] sm:$0xff]
  %v1513 = vld [vmem:[%s3 + $0x3f0] sm:$0xff]
  %v1514 = vld [vmem:[%s3 + $0x3f8] sm:$0xff]
  %v1515 = vld [vmem:[%s3 + $0x400] sm:$0xff]
  %v1516 = vld [vmem:[%s3 + $0x408] sm:$0xff]
  %v1517 = vld [vmem:[%s3 + $0x410] sm:$0xff]
  %v1518 = vld [vmem:[%s3 + $0x418] sm:$0xff]
  %v1519 = vld [vmem:[%s3 + $0x420] sm:$0xff]
  %v1520 = vld [vmem:[%s3 + $0x428] sm:$0xff]
  %v1521 = vld [vmem:[%s3 + $0x430] sm:$0xff]
  %v1522 = vld [vmem:[%s3 + $0x438] sm:$0xff]
  %v1523 = vld [vmem:[%s3 + $0x440] sm:$0xff]
  %v1524 = vld [vmem:[%s3 + $0x448] sm:$0xff]
  %v1525 = vld [vmem:[%s3 + $0x450] sm:$0xff]
  %v1526 = vld [vmem:[%s3 + $0x458] sm:$0xff]
  %v1527 = vld [vmem:[%s3 + $0x460] sm:$0xff]
  %v1528 = vld [vmem:[%s3 + $0x468] sm:$0xff]
  %v1529 = vld [vmem:[%s3 + $0x470] sm:$0xff]
  %v1530 = vld [vmem:[%s3 + $0x478] sm:$0xff]
  %v1531 = vld [vmem:[%s3 + $0x480] sm:$0xff]
  %v1532 = vld [vmem:[%s3 + $0x488] sm:$0xff]
  %v1533 = vld [vmem:[%s3 + $0x490] sm:$0xff]
  %v1534 = vld [vmem:[%s3 + $0x498] sm:$0xff]
  %v1535 = vld [vmem:[%s3 + $0x4a0] sm:$0xff]
  %v1536 = vld [vmem:[%s3 + $0x4a8] sm:$0xff]
  %v1537 = vld [vmem:[%s3 + $0x4b0] sm:$0xff]
  %v1538 = vld [vmem:[%s3 + $0x4b8] sm:$0xff]
  %v1539 = vld [vmem:[%s3 + $0x4c0] sm:$0xff]
  %v1540 = vld [vmem:[%s3 + $0x4c8] sm:$0xff]
  %v1541 = vld [vmem:[%s3 + $0x4d0] sm:$0xff]
  %v1542 = vld [vmem:[%s3 + $0x4d8] sm:$0xff]
  %v1543 = vld [vmem:[%s3 + $0x4e0] sm:$0xff]
  %v1544 = vld [vmem:[%s3 + $0x4e8] sm:$0xff]
  %v1545 = vld [vmem:[%s3 + $0x4f0] sm:$0xff]
  %v1546 = vld [vmem:[%s3 + $0x4f8] sm:$0xff]
  %v1547 = vld [vmem:[%s3 + $0x500] sm:$0xff]
  %v1548 = vld [vmem:[%s3 + $0x508] sm:$0xff]
  %v1549 = vld [vmem:[%s3 + $0x510] sm:$0xff]
  %v1550 = vld [vmem:[%s3 + $0x518] sm:$0xff]
  %v1551 = vld [vmem:[%s3 + $0x520] sm:$0xff]
  %v1552 = vld [vmem:[%s3 + $0x528] sm:$0xff]
  %v1553 = vld [vmem:[%s3 + $0x530] sm:$0xff]
  %v1554 = vld [vmem:[%s3 + $0x538] sm:$0xff]
  %v1555 = vld [vmem:[%s3 + $0x540] sm:$0xff]
  %v1556 = vld [vmem:[%s3 + $0x548] sm:$0xff]
  %v1557 = vld [vmem:[%s3 + $0x550] sm:$0xff]
  %v1558 = vld [vmem:[%s3 + $0x558] sm:$0xff]
  %v1559 = vld [vmem:[%s3 + $0x560] sm:$0xff]
  %v1560 = vld [vmem:[%s3 + $0x568] sm:$0xff]
  %v1561 = vld [vmem:[%s3 + $0x570] sm:$0xff]
  %v1562 = vld [vmem:[%s3 + $0x578] sm:$0xff]
  %v1563 = vld [vmem:[%s3 + $0x580] sm:$0xff]
  %v1564 = vld [vmem:[%s3 + $0x588] sm:$0xff]
  %v1565 = vld [vmem:[%s3 + $0x590] sm:$0xff]
  %v1566 = vld [vmem:[%s3 + $0x598] sm:$0xff]
  %v1567 = vld [vmem:[%s3 + $0x5a0] sm:$0xff]
  %v1568 = vld [vmem:[%s3 + $0x5a8] sm:$0xff]
  %v1569 = vld [vmem:[%s3 + $0x5b0] sm:$0xff]
  %v1570 = vld [vmem:[%s3 + $0x5b8] sm:$0xff]
  %v1571 = vld [vmem:[%s3 + $0x5c0] sm:$0xff]
  %v1572 = vld [vmem:[%s3 + $0x5c8] sm:$0xff]
  %v1573 = vld [vmem:[%s3 + $0x5d0] sm:$0xff]
  %v1574 = vld [vmem:[%s3 + $0x5d8] sm:$0xff]
  %v1575 = vld [vmem:[%s3 + $0x5e0] sm:$0xff]
  %v1576 = vld [vmem:[%s3 + $0x5e8] sm:$0xff]
  %v1577 = vld [vmem:[%s3 + $0x5f0] sm:$0xff]
  %v1578 = vld [vmem:[%s3 + $0x5f8] sm:$0xff]
  %v1579 = vld [vmem:[%s3 + $0x600] sm:$0xff]
  %v1580 = vld [vmem:[%s3 + $0x608] sm:$0xff]
  %v1581 = vld [vmem:[%s3 + $0x610] sm:$0xff]
  %v1582 = vld [vmem:[%s3 + $0x618] sm:$0xff]
  %v1583 = vld [vmem:[%s3 + $0x620] sm:$0xff]
  %v1584 = vld [vmem:[%s3 + $0x628] sm:$0xff]
  %v1585 = vld [vmem:[%s3 + $0x630] sm:$0xff]
  %v1586 = vld [vmem:[%s3 + $0x638] sm:$0xff]
  %v1587 = vld [vmem:[%s3 + $0x640] sm:$0xff]
  %v1588 = vld [vmem:[%s3 + $0x648] sm:$0xff]
  %v1589 = vld [vmem:[%s3 + $0x650] sm:$0xff]
  %v1590 = vld [vmem:[%s3 + $0x658] sm:$0xff]
  %v1591 = vld [vmem:[%s3 + $0x660] sm:$0xff]
  %v1592 = vld [vmem:[%s3 + $0x668] sm:$0xff]
  %v1593 = vld [vmem:[%s3 + $0x670] sm:$0xff]
  %v1594 = vld [vmem:[%s3 + $0x678] sm:$0xff]
  %v1595 = vld [vmem:[%s3 + $0x680] sm:$0xff]
  %v1596 = vld [vmem:[%s3 + $0x688] sm:$0xff]
  %v1597 = vld [vmem:[%s3 + $0x690] sm:$0xff]
  %v1598 = vld [vmem:[%s3 + $0x698] sm:$0xff]
  %v1599 = vld [vmem:[%s3 + $0x6a0] sm:$0xff]
  %v1600 = vld [vmem:[%s3 + $0x6a8] sm:$0xff]
  %v1601 = vld [vmem:[%s3 + $0x6b0] sm:$0xff]
  %v1602 = vld [vmem:[%s3 + $0x6b8] sm:$0xff]
  %v1603 = vld [vmem:[%s3 + $0x6c0] sm:$0xff]
  %v1604 = vld [vmem:[%s3 + $0x6c8] sm:$0xff]
  %v1605 = vld [vmem:[%s3 + $0x6d0] sm:$0xff]
  %v1606 = vld [vmem:[%s3 + $0x6d8] sm:$0xff]
  %v1607 = vld [vmem:[%s3 + $0x6e0] sm:$0xff]
  %v1608 = vld [vmem:[%s3 + $0x6e8] sm:$0xff]
  %v1609 = vld [vmem:[%s3 + $0x6f0] sm:$0xff]
  %v1610 = vld [vmem:[%s3 + $0x6f8] sm:$0xff]
  %v1611 = vld [vmem:[%s3 + $0x700] sm:$0xff]
  %v1612 = vld [vmem:[%s3 + $0x708] sm:$0xff]
  %v1613 = vld [vmem:[%s3 + $0x710] sm:$0xff]
  %v1614 = vld [vmem:[%s3 + $0x718] sm:$0xff]
  %v1615 = vld [vmem:[%s3 + $0x720] sm:$0xff]
  %v1616 = vld [vmem:[%s3 + $0x728] sm:$0xff]
  %v1617 = vld [vmem:[%s3 + $0x730] sm:$0xff]
  %v1618 = vld [vmem:[%s3 + $0x738] sm:$0xff]
  %v1619 = vld [vmem:[%s3 + $0x740] sm:$0xff]
  %v1620 = vld [vmem:[%s3 + $0x748] sm:$0xff]
  %v1621 = vld [vmem:[%s3 + $0x750] sm:$0xff]
  %v1622 = vld [vmem:[%s3 + $0x758] sm:$0xff]
  %v1623 = vld [vmem:[%s3 + $0x760] sm:$0xff]
  %v1624 = vld [vmem:[%s3 + $0x768] sm:$0xff]
  %v1625 = vld [vmem:[%s3 + $0x770] sm:$0xff]
  %v1626 = vld [vmem:[%s3 + $0x778] sm:$0xff]
  %v1627 = vld [vmem:[%s3 + $0x780] sm:$0xff]
  %v1628 = vld [vmem:[%s3 + $0x788] sm:$0xff]
  %v1629 = vld [vmem:[%s3 + $0x790] sm:$0xff]
  %v1630 = vld [vmem:[%s3 + $0x798] sm:$0xff]
  %v1631 = vld [vmem:[%s3 + $0x7a0] sm:$0xff]
  %v1632 = vld [vmem:[%s3 + $0x7a8] sm:$0xff]
  %v1633 = vld [vmem:[%s3 + $0x7b0] sm:$0xff]
  %v1634 = vld [vmem:[%s3 + $0x7b8] sm:$0xff]
  %v1635 = vld [vmem:[%s3 + $0x7c0] sm:$0xff]
  %v1636 = vld [vmem:[%s3 + $0x7c8] sm:$0xff]
  %v1637 = vld [vmem:[%s3 + $0x7d0] sm:$0xff]
  %v1638 = vld [vmem:[%s3 + $0x7d8] sm:$0xff]
  %v1639 = vld [vmem:[%s3 + $0x7e0] sm:$0xff]
  %v1640 = vld [vmem:[%s3 + $0x7e8] sm:$0xff]
  %v1641 = vld [vmem:[%s3 + $0x7f0] sm:$0xff]
  %v1642 = vld [vmem:[%s3 + $0x7f8] sm:$0xff]
  %v1643 = vld [vmem:[%s4] sm:$0xff]
  %v1644 = vld [vmem:[%s4 + $0x8] sm:$0xff]
  %v1645 = vld [vmem:[%s4 + $0x10] sm:$0xff]
  %v1646 = vld [vmem:[%s4 + $0x18] sm:$0xff]
  %v1647 = vld [vmem:[%s4 + $0x20] sm:$0xff]
  %v1648 = vld [vmem:[%s4 + $0x28] sm:$0xff]
  %v1649 = vld [vmem:[%s4 + $0x30] sm:$0xff]
  %v1650 = vld [vmem:[%s4 + $0x38] sm:$0xff]
  %v1651 = vld [vmem:[%s4 + $0x40] sm:$0xff]
  %v1652 = vld [vmem:[%s4 + $0x48] sm:$0xff]
  %v1653 = vld [vmem:[%s4 + $0x50] sm:$0xff]
  %v1654 = vld [vmem:[%s4 + $0x58] sm:$0xff]
  %v1655 = vld [vmem:[%s4 + $0x60] sm:$0xff]
  %v1656 = vld [vmem:[%s4 + $0x68] sm:$0xff]
  %v1657 = vld [vmem:[%s4 + $0x70] sm:$0xff]
  %v1658 = vld [vmem:[%s4 + $0x78] sm:$0xff]
  %v1659 = vld [vmem:[%s4 + $0x80] sm:$0xff]
  %v1660 = vld [vmem:[%s4 + $0x88] sm:$0xff]
  %v1661 = vld [vmem:[%s4 + $0x90] sm:$0xff]
  %v1662 = vld [vmem:[%s4 + $0x98] sm:$0xff]
  %v1663 = vld [vmem:[%s4 + $0xa0] sm:$0xff]
  %v1664 = vld [vmem:[%s4 + $0xa8] sm:$0xff]
  %v1665 = vld [vmem:[%s4 + $0xb0] sm:$0xff]
  %v1666 = vld [vmem:[%s4 + $0xb8] sm:$0xff]
  %v1667 = vld [vmem:[%s4 + $0xc0] sm:$0xff]
  %v1668 = vld [vmem:[%s4 + $0xc8] sm:$0xff]
  %v1669 = vld [vmem:[%s4 + $0xd0] sm:$0xff]
  %v1670 = vld [vmem:[%s4 + $0xd8] sm:$0xff]
  %v1671 = vld [vmem:[%s4 + $0xe0] sm:$0xff]
  %v1672 = vld [vmem:[%s4 + $0xe8] sm:$0xff]
  %v1673 = vld [vmem:[%s4 + $0xf0] sm:$0xff]
  %v1674 = vld [vmem:[%s4 + $0xf8] sm:$0xff]
  %v1675 = vld [vmem:[%s4 + $0x100] sm:$0xff]
  %v1676 = vld [vmem:[%s4 + $0x108] sm:$0xff]
  %v1677 = vld [vmem:[%s4 + $0x110] sm:$0xff]
  %v1678 = vld [vmem:[%s4 + $0x118] sm:$0xff]
  %v1679 = vld [vmem:[%s4 + $0x120] sm:$0xff]
  %v1680 = vld [vmem:[%s4 + $0x128] sm:$0xff]
  %v1681 = vld [vmem:[%s4 + $0x130] sm:$0xff]
  %v1682 = vld [vmem:[%s4 + $0x138] sm:$0xff]
  %v1683 = vld [vmem:[%s4 + $0x140] sm:$0xff]
  %v1684 = vld [vmem:[%s4 + $0x148] sm:$0xff]
  %v1685 = vld [vmem:[%s4 + $0x150] sm:$0xff]
  %v1686 = vld [vmem:[%s4 + $0x158] sm:$0xff]
  %v1687 = vld [vmem:[%s4 + $0x160] sm:$0xff]
  %v1688 = vld [vmem:[%s4 + $0x168] sm:$0xff]
  %v1689 = vld [vmem:[%s4 + $0x170] sm:$0xff]
  %v1690 = vld [vmem:[%s4 + $0x178] sm:$0xff]
  %v1691 = vld [vmem:[%s4 + $0x180] sm:$0xff]
  %v1692 = vld [vmem:[%s4 + $0x188] sm:$0xff]
  %v1693 = vld [vmem:[%s4 + $0x190] sm:$0xff]
  %v1694 = vld [vmem:[%s4 + $0x198] sm:$0xff]
  %v1695 = vld [vmem:[%s4 + $0x1a0] sm:$0xff]
  %v1696 = vld [vmem:[%s4 + $0x1a8] sm:$0xff]
  %v1697 = vld [vmem:[%s4 + $0x1b0] sm:$0xff]
  %v1698 = vld [vmem:[%s4 + $0x1b8] sm:$0xff]
  %v1699 = vld [vmem:[%s4 + $0x1c0] sm:$0xff]
  %v1700 = vld [vmem:[%s4 + $0x1c8] sm:$0xff]
  %v1701 = vld [vmem:[%s4 + $0x1d0] sm:$0xff]
  %v1702 = vld [vmem:[%s4 + $0x1d8] sm:$0xff]
  %v1703 = vld [vmem:[%s4 + $0x1e0] sm:$0xff]
  %v1704 = vld [vmem:[%s4 + $0x1e8] sm:$0xff]
  %v1705 = vld [vmem:[%s4 + $0x1f0] sm:$0xff]
  %v1706 = vld [vmem:[%s4 + $0x1f8] sm:$0xff]
  %1708 = vset.pattern.permute.xlu0 0
  %1709 = vperm.xlu0 %1708, %v1643
  %v1710 = vpop.permute.xlu0 %1709
  %1713 = vset.pattern.permute.xlu0 0
  %1714 = vperm.xlu0 %1713, %v1644
  %v1715 = vpop.permute.xlu0 %1714
  %1718 = vset.pattern.permute.xlu0 0
  %1719 = vperm.xlu0 %1718, %v1645
  %v1720 = vpop.permute.xlu0 %1719
  %1723 = vset.pattern.permute.xlu0 0
  %1724 = vperm.xlu0 %1723, %v1646
  %v1725 = vpop.permute.xlu0 %1724
  %1728 = vset.pattern.permute.xlu0 0
  %1729 = vperm.xlu0 %1728, %v1647
  %v1730 = vpop.permute.xlu0 %1729
  %1733 = vset.pattern.permute.xlu0 0
  %1734 = vperm.xlu0 %1733, %v1648
  %v1735 = vpop.permute.xlu0 %1734
  %1738 = vset.pattern.permute.xlu0 0
  %1739 = vperm.xlu0 %1738, %v1649
  %v1740 = vpop.permute.xlu0 %1739
  %1743 = vset.pattern.permute.xlu0 0
  %1744 = vperm.xlu0 %1743, %v1650
  %v1745 = vpop.permute.xlu0 %1744
  %1748 = vset.pattern.permute.xlu0 0
  %1749 = vperm.xlu0 %1748, %v1651
  %v1750 = vpop.permute.xlu0 %1749
  %1753 = vset.pattern.permute.xlu0 0
  %1754 = vperm.xlu0 %1753, %v1652
  %v1755 = vpop.permute.xlu0 %1754
  %1758 = vset.pattern.permute.xlu0 0
  %1759 = vperm.xlu0 %1758, %v1653
  %v1760 = vpop.permute.xlu0 %1759
  %1763 = vset.pattern.permute.xlu0 0
  %1764 = vperm.xlu0 %1763, %v1654
  %v1765 = vpop.permute.xlu0 %1764
  %1768 = vset.pattern.permute.xlu0 0
  %1769 = vperm.xlu0 %1768, %v1655
  %v1770 = vpop.permute.xlu0 %1769
  %1773 = vset.pattern.permute.xlu0 0
  %1774 = vperm.xlu0 %1773, %v1656
  %v1775 = vpop.permute.xlu0 %1774
  %1778 = vset.pattern.permute.xlu0 0
  %1779 = vperm.xlu0 %1778, %v1657
  %v1780 = vpop.permute.xlu0 %1779
  %1783 = vset.pattern.permute.xlu0 0
  %1784 = vperm.xlu0 %1783, %v1658
  %v1785 = vpop.permute.xlu0 %1784
  %1788 = vset.pattern.permute.xlu0 0
  %1789 = vperm.xlu0 %1788, %v1659
  %v1790 = vpop.permute.xlu0 %1789
  %1793 = vset.pattern.permute.xlu0 0
  %1794 = vperm.xlu0 %1793, %v1660
  %v1795 = vpop.permute.xlu0 %1794
  %1798 = vset.pattern.permute.xlu0 0
  %1799 = vperm.xlu0 %1798, %v1661
  %v1800 = vpop.permute.xlu0 %1799
  %1803 = vset.pattern.permute.xlu0 0
  %1804 = vperm.xlu0 %1803, %v1662
  %v1805 = vpop.permute.xlu0 %1804
  %1808 = vset.pattern.permute.xlu0 0
  %1809 = vperm.xlu0 %1808, %v1663
  %v1810 = vpop.permute.xlu0 %1809
  %1813 = vset.pattern.permute.xlu0 0
  %1814 = vperm.xlu0 %1813, %v1664
  %v1815 = vpop.permute.xlu0 %1814
  %1818 = vset.pattern.permute.xlu0 0
  %1819 = vperm.xlu0 %1818, %v1665
  %v1820 = vpop.permute.xlu0 %1819
  %1823 = vset.pattern.permute.xlu0 0
  %1824 = vperm.xlu0 %1823, %v1666
  %v1825 = vpop.permute.xlu0 %1824
  %1828 = vset.pattern.permute.xlu0 0
  %1829 = vperm.xlu0 %1828, %v1667
  %v1830 = vpop.permute.xlu0 %1829
  %1833 = vset.pattern.permute.xlu0 0
  %1834 = vperm.xlu0 %1833, %v1668
  %v1835 = vpop.permute.xlu0 %1834
  %1838 = vset.pattern.permute.xlu0 0
  %1839 = vperm.xlu0 %1838, %v1669
  %v1840 = vpop.permute.xlu0 %1839
  %1843 = vset.pattern.permute.xlu0 0
  %1844 = vperm.xlu0 %1843, %v1670
  %v1845 = vpop.permute.xlu0 %1844
  %1848 = vset.pattern.permute.xlu0 0
  %1849 = vperm.xlu0 %1848, %v1671
  %v1850 = vpop.permute.xlu0 %1849
  %1853 = vset.pattern.permute.xlu0 0
  %1854 = vperm.xlu0 %1853, %v1672
  %v1855 = vpop.permute.xlu0 %1854
  %1858 = vset.pattern.permute.xlu0 0
  %1859 = vperm.xlu0 %1858, %v1673
  %v1860 = vpop.permute.xlu0 %1859
  %1863 = vset.pattern.permute.xlu0 0
  %1864 = vperm.xlu0 %1863, %v1674
  %v1865 = vpop.permute.xlu0 %1864
  %1868 = vset.pattern.permute.xlu0 0
  %1869 = vperm.xlu0 %1868, %v1675
  %v1870 = vpop.permute.xlu0 %1869
  %1873 = vset.pattern.permute.xlu0 0
  %1874 = vperm.xlu0 %1873, %v1676
  %v1875 = vpop.permute.xlu0 %1874
  %1878 = vset.pattern.permute.xlu0 0
  %1879 = vperm.xlu0 %1878, %v1677
  %v1880 = vpop.permute.xlu0 %1879
  %1883 = vset.pattern.permute.xlu0 0
  %1884 = vperm.xlu0 %1883, %v1678
  %v1885 = vpop.permute.xlu0 %1884
  %1888 = vset.pattern.permute.xlu0 0
  %1889 = vperm.xlu0 %1888, %v1679
  %v1890 = vpop.permute.xlu0 %1889
  %1893 = vset.pattern.permute.xlu0 0
  %1894 = vperm.xlu0 %1893, %v1680
  %v1895 = vpop.permute.xlu0 %1894
  %1898 = vset.pattern.permute.xlu0 0
  %1899 = vperm.xlu0 %1898, %v1681
  %v1900 = vpop.permute.xlu0 %1899
  %1903 = vset.pattern.permute.xlu0 0
  %1904 = vperm.xlu0 %1903, %v1682
  %v1905 = vpop.permute.xlu0 %1904
  %1908 = vset.pattern.permute.xlu0 0
  %1909 = vperm.xlu0 %1908, %v1683
  %v1910 = vpop.permute.xlu0 %1909
  %1913 = vset.pattern.permute.xlu0 0
  %1914 = vperm.xlu0 %1913, %v1684
  %v1915 = vpop.permute.xlu0 %1914
  %1918 = vset.pattern.permute.xlu0 0
  %1919 = vperm.xlu0 %1918, %v1685
  %v1920 = vpop.permute.xlu0 %1919
  %1923 = vset.pattern.permute.xlu0 0
  %1924 = vperm.xlu0 %1923, %v1686
  %v1925 = vpop.permute.xlu0 %1924
  %1928 = vset.pattern.permute.xlu0 0
  %1929 = vperm.xlu0 %1928, %v1687
  %v1930 = vpop.permute.xlu0 %1929
  %1933 = vset.pattern.permute.xlu0 0
  %1934 = vperm.xlu0 %1933, %v1688
  %v1935 = vpop.permute.xlu0 %1934
  %1938 = vset.pattern.permute.xlu0 0
  %1939 = vperm.xlu0 %1938, %v1689
  %v1940 = vpop.permute.xlu0 %1939
  %1943 = vset.pattern.permute.xlu0 0
  %1944 = vperm.xlu0 %1943, %v1690
  %v1945 = vpop.permute.xlu0 %1944
  %1948 = vset.pattern.permute.xlu0 0
  %1949 = vperm.xlu0 %1948, %v1691
  %v1950 = vpop.permute.xlu0 %1949
  %1953 = vset.pattern.permute.xlu0 0
  %1954 = vperm.xlu0 %1953, %v1692
  %v1955 = vpop.permute.xlu0 %1954
  %1958 = vset.pattern.permute.xlu0 0
  %1959 = vperm.xlu0 %1958, %v1693
  %v1960 = vpop.permute.xlu0 %1959
  %1963 = vset.pattern.permute.xlu0 0
  %1964 = vperm.xlu0 %1963, %v1694
  %v1965 = vpop.permute.xlu0 %1964
  %1968 = vset.pattern.permute.xlu0 0
  %1969 = vperm.xlu0 %1968, %v1695
  %v1970 = vpop.permute.xlu0 %1969
  %1973 = vset.pattern.permute.xlu0 0
  %1974 = vperm.xlu0 %1973, %v1696
  %v1975 = vpop.permute.xlu0 %1974
  %1978 = vset.pattern.permute.xlu0 0
  %1979 = vperm.xlu0 %1978, %v1697
  %v1980 = vpop.permute.xlu0 %1979
  %1983 = vset.pattern.permute.xlu0 0
  %1984 = vperm.xlu0 %1983, %v1698
  %v1985 = vpop.permute.xlu0 %1984
  %1988 = vset.pattern.permute.xlu0 0
  %1989 = vperm.xlu0 %1988, %v1699
  %v1990 = vpop.permute.xlu0 %1989
  %1993 = vset.pattern.permute.xlu0 0
  %1994 = vperm.xlu0 %1993, %v1700
  %v1995 = vpop.permute.xlu0 %1994
  %1998 = vset.pattern.permute.xlu0 0
  %1999 = vperm.xlu0 %1998, %v1701
  %v2000 = vpop.permute.xlu0 %1999
  %2003 = vset.pattern.permute.xlu0 0
  %2004 = vperm.xlu0 %2003, %v1702
  %v2005 = vpop.permute.xlu0 %2004
  %2008 = vset.pattern.permute.xlu0 0
  %2009 = vperm.xlu0 %2008, %v1703
  %v2010 = vpop.permute.xlu0 %2009
  %2013 = vset.pattern.permute.xlu0 0
  %2014 = vperm.xlu0 %2013, %v1704
  %v2015 = vpop.permute.xlu0 %2014
  %2018 = vset.pattern.permute.xlu0 0
  %2019 = vperm.xlu0 %2018, %v1705
  %v2020 = vpop.permute.xlu0 %2019
  %2023 = vset.pattern.permute.xlu0 0
  %2024 = vperm.xlu0 %2023, %v1706
  %v2025 = vpop.permute.xlu0 %2024
  %2027 = vmatprep.subr.mxu0 0.0
  %2028 = vmatpush1.msra.mxu0 %v1323
  %2029 = vmatprep.subr.mxu0 0.0
  %2030 = vmatpush1.msra.mxu0 %v1324
  %2031 = vmatprep.subr.mxu0 0.0
  %2032 = vmatpush1.msra.mxu0 %v1325
  %2033 = vmatprep.subr.mxu0 0.0
  %2034 = vmatpush1.msra.mxu0 %v1326
  %2035 = vmatprep.subr.mxu0 0.0
  %2036 = vmatpush1.msra.mxu0 %v1327
  %2037 = vmatprep.subr.mxu0 0.0
  %2038 = vmatpush1.msra.mxu0 %v1328
  %2039 = vmatprep.subr.mxu0 0.0
  %2040 = vmatpush1.msra.mxu0 %v1329
  %2041 = vmatprep.subr.mxu0 0.0
  %2042 = vmatpush1.msra.mxu0 %v1330
  %2043 = vmatprep.subr.mxu0 0.0
  %2044 = vmatpush1.msra.mxu0 %v1331
  %2045 = vmatprep.subr.mxu0 0.0
  %2046 = vmatpush1.msra.mxu0 %v1332
  %2047 = vmatprep.subr.mxu0 0.0
  %2048 = vmatpush1.msra.mxu0 %v1333
  %2049 = vmatprep.subr.mxu0 0.0
  %2050 = vmatpush1.msra.mxu0 %v1334
  %2051 = vmatprep.subr.mxu0 0.0
  %2052 = vmatpush1.msra.mxu0 %v1335
  %2053 = vmatprep.subr.mxu0 0.0
  %2054 = vmatpush1.msra.mxu0 %v1336
  %2055 = vmatprep.subr.mxu0 0.0
  %2056 = vmatpush1.msra.mxu0 %v1337
  %2057 = vmatprep.subr.mxu0 0.0
  %2058 = vmatpush1.msra.mxu0 %v1338
  %2059 = vmatprep.subr.mxu0 0.0
  %2060 = vmatpush1.msra.mxu0 %v1339
  %2061 = vmatprep.subr.mxu0 0.0
  %2062 = vmatpush1.msra.mxu0 %v1340
  %2063 = vmatprep.subr.mxu0 0.0
  %2064 = vmatpush1.msra.mxu0 %v1341
  %2065 = vmatprep.subr.mxu0 0.0
  %2066 = vmatpush1.msra.mxu0 %v1342
  %2067 = vmatprep.subr.mxu0 0.0
  %2068 = vmatpush1.msra.mxu0 %v1343
  %2069 = vmatprep.subr.mxu0 0.0
  %2070 = vmatpush1.msra.mxu0 %v1344
  %2071 = vmatprep.subr.mxu0 0.0
  %2072 = vmatpush1.msra.mxu0 %v1345
  %2073 = vmatprep.subr.mxu0 0.0
  %2074 = vmatpush1.msra.mxu0 %v1346
  %2075 = vmatprep.subr.mxu0 0.0
  %2076 = vmatpush1.msra.mxu0 %v1347
  %2077 = vmatprep.subr.mxu0 0.0
  %2078 = vmatpush1.msra.mxu0 %v1348
  %2079 = vmatprep.subr.mxu0 0.0
  %2080 = vmatpush1.msra.mxu0 %v1349
  %2081 = vmatprep.subr.mxu0 0.0
  %2082 = vmatpush1.msra.mxu0 %v1350
  %2083 = vmatprep.subr.mxu0 0.0
  %2084 = vmatpush1.msra.mxu0 %v1351
  %2085 = vmatprep.subr.mxu0 0.0
  %2086 = vmatpush1.msra.mxu0 %v1352
  %2087 = vmatprep.subr.mxu0 0.0
  %2088 = vmatpush1.msra.mxu0 %v1353
  %2089 = vmatprep.subr.mxu0 0.0
  %2090 = vmatpush1.msra.mxu0 %v1354
  %2091 = vmatprep.mubr.f32.mxu0 %v1388
  %2092 = vmatmul.mubr.f32.gmra.mrb[0].mxu0 %v1387
  %v2093 = vpop.f32.mrb[0].mxu0
  %v2094 = vadd.f32 %v1710, %v2093
  %v2095 = vpop.f32.mrb[0].mxu0
  %2096 = vmatprep.mubr.f32.mxu0 %v1392
  %2097 = vmatmul.mubr.f32.gmra.mrb[0].mxu0 %v1391
  %v2098 = vpop.f32.mrb[0].mxu0
  %v2099 = vadd.f32 %v1715, %v2098
  %v2100 = vpop.f32.mrb[0].mxu0
  %2101 = vmatprep.mubr.f32.mxu0 %v1396
  %2102 = vmatmul.mubr.f32.gmra.mrb[0].mxu0 %v1395
  %v2103 = vpop.f32.mrb[0].mxu0
  %v2104 = vadd.f32 %v1720, %v2103
  %v2105 = vpop.f32.mrb[0].mxu0
  %2106 = vmatprep.mubr.f32.mxu0 %v1400
  %2107 = vmatmul.mubr.f32.gmra.mrb[0].mxu0 %v1399
  %v2108 = vpop.f32.mrb[0].mxu0
  %v2109 = vadd.f32 %v1725, %v2108
  %v2110 = vpop.f32.mrb[0].mxu0
  %2111 = vmatprep.mubr.f32.mxu0 %v1404
  %2112 = vmatmul.mubr.f32.gmra.mrb[0].mxu0 %v1403
  %v2113 = vpop.f32.mrb[0].mxu0
  %v2114 = vadd.f32 %v1730, %v2113
  %v2115 = vpop.f32.mrb[0].mxu0
  %2116 = vmatprep.mubr.f32.mxu0 %v1408
  %2117 = vmatmul.mubr.f32.gmra.mrb[0].mxu0 %v1407
  %v2118 = vpop.f32.mrb[0].mxu0
  %v2119 = vadd.f32 %v1735, %v2118
  %v2120 = vpop.f32.mrb[0].mxu0
  %2121 = vmatprep.mubr.f32.mxu0 %v1412
  %2122 = vmatmul.mubr.f32.gmra.mrb[0].mxu0 %v1411
  %v2123 = vpop.f32.mrb[0].mxu0
  %v2124 = vadd.f32 %v1740, %v2123
  %v2125 = vpop.f32.mrb[0].mxu0
  %2126 = vmatprep.mubr.f32.mxu0 %v1416
  %2127 = vmatmul.mubr.f32.gmra.mrb[0].mxu0 %v1415
  %v2128 = vpop.f32.mrb[0].mxu0
  %v2129 = vadd.f32 %v1745, %v2128
  %v2130 = vpop.f32.mrb[0].mxu0
  %2131 = vmatprep.mubr.f32.mxu0 %v1420
  %2132 = vmatmul.mubr.f32.gmra.mrb[0].mxu0 %v1419
  %v2133 = vpop.f32.mrb[0].mxu0
  %v2134 = vadd.f32 %v1750, %v2133
  %v2135 = vpop.f32.mrb[0].mxu0
  %2136 = vmatprep.mubr.f32.mxu0 %v1424
  %2137 = vmatmul.mubr.f32.gmra.mrb[0].mxu0 %v1423
  %v2138 = vpop.f32.mrb[0].mxu0
  %v2139 = vadd.f32 %v1755, %v2138
  %v2140 = vpop.f32.mrb[0].mxu0
  %2141 = vmatprep.mubr.f32.mxu0 %v1428
  %2142 = vmatmul.mubr.f32.gmra.mrb[0].mxu0 %v1427
  %v2143 = vpop.f32.mrb[0].mxu0
  %v2144 = vadd.f32 %v1760, %v2143
  %v2145 = vpop.f32.mrb[0].mxu0
  %2146 = vmatprep.mubr.f32.mxu0 %v1432
  %2147 = vmatmul.mubr.f32.gmra.mrb[0].mxu0 %v1431
  %v2148 = vpop.f32.mrb[0].mxu0
  %v2149 = vadd.f32 %v1765, %v2148
  %v2150 = vpop.f32.mrb[0].mxu0
  %2151 = vmatprep.mubr.f32.mxu0 %v1436
  %2152 = vmatmul.mubr.f32.gmra.mrb[0].mxu0 %v1435
  %v2153 = vpop.f32.mrb[0].mxu0
  %v2154 = vadd.f32 %v1770, %v2153
  %v2155 = vpop.f32.mrb[0].mxu0
  %2156 = vmatprep.mubr.f32.mxu0 %v1440
  %2157 = vmatmul.mubr.f32.gmra.mrb[0].mxu0 %v1439
  %v2158 = vpop.f32.mrb[0].mxu0
  %v2159 = vadd.f32 %v1775, %v2158
  %v2160 = vpop.f32.mrb[0].mxu0
  %2161 = vmatprep.mubr.f32.mxu0 %v1444
  %2162 = vmatmul.mubr.f32.gmra.mrb[0].mxu0 %v1443
  %v2163 = vpop.f32.mrb[0].mxu0
  %v2164 = vadd.f32 %v1780, %v2163
  %v2165 = vpop.f32.mrb[0].mxu0
  %2166 = vmatprep.mubr.f32.mxu0 %v1448
  %2167 = vmatmul.mubr.f32.gmra.mrb[0].mxu0 %v1447
  %v2168 = vpop.f32.mrb[0].mxu0
  %v2169 = vadd.f32 %v1785, %v2168
  %v2170 = vpop.f32.mrb[0].mxu0
  %2171 = vmatprep.mubr.f32.mxu0 %v1452
  %2172 = vmatmul.mubr.f32.gmra.mrb[0].mxu0 %v1451
  %v2173 = vpop.f32.mrb[0].mxu0
  %v2174 = vadd.f32 %v1790, %v2173
  %v2175 = vpop.f32.mrb[0].mxu0
  %2176 = vmatprep.mubr.f32.mxu0 %v1456
  %2177 = vmatmul.mubr.f32.gmra.mrb[0].mxu0 %v1455
  %v2178 = vpop.f32.mrb[0].mxu0
  %v2179 = vadd.f32 %v1795, %v2178
  %v2180 = vpop.f32.mrb[0].mxu0
  %2181 = vmatprep.mubr.f32.mxu0 %v1460
  %2182 = vmatmul.mubr.f32.gmra.mrb[0].mxu0 %v1459
  %v2183 = vpop.f32.mrb[0].mxu0
  %v2184 = vadd.f32 %v1800, %v2183
  %v2185 = vpop.f32.mrb[0].mxu0
  %2186 = vmatprep.mubr.f32.mxu0 %v1464
  %2187 = vmatmul.mubr.f32.gmra.mrb[0].mxu0 %v1463
  %v2188 = vpop.f32.mrb[0].mxu0
  %v2189 = vadd.f32 %v1805, %v2188
  %v2190 = vpop.f32.mrb[0].mxu0
  %2191 = vmatprep.mubr.f32.mxu0 %v1468
  %2192 = vmatmul.mubr.f32.gmra.mrb[0].mxu0 %v1467
  %v2193 = vpop.f32.mrb[0].mxu0
  %v2194 = vadd.f32 %v1810, %v2193
  %v2195 = vpop.f32.mrb[0].mxu0
  %2196 = vmatprep.mubr.f32.mxu0 %v1472
  %2197 = vmatmul.mubr.f32.gmra.mrb[0].mxu0 %v1471
  %v2198 = vpop.f32.mrb[0].mxu0
  %v2199 = vadd.f32 %v1815, %v2198
  %v2200 = vpop.f32.mrb[0].mxu0
  %2201 = vmatprep.mubr.f32.mxu0 %v1476
  %2202 = vmatmul.mubr.f32.gmra.mrb[0].mxu0 %v1475
  %v2203 = vpop.f32.mrb[0].mxu0
  %v2204 = vadd.f32 %v1820, %v2203
  %v2205 = vpop.f32.mrb[0].mxu0
  %2206 = vmatprep.mubr.f32.mxu0 %v1480
  %2207 = vmatmul.mubr.f32.gmra.mrb[0].mxu0 %v1479
  %v2208 = vpop.f32.mrb[0].mxu0
  %v2209 = vadd.f32 %v1825, %v2208
  %v2210 = vpop.f32.mrb[0].mxu0
  %2211 = vmatprep.mubr.f32.mxu0 %v1484
  %2212 = vmatmul.mubr.f32.gmra.mrb[0].mxu0 %v1483
  %v2213 = vpop.f32.mrb[0].mxu0
  %v2214 = vadd.f32 %v1830, %v2213
  %v2215 = vpop.f32.mrb[0].mxu0
  %2216 = vmatprep.mubr.f32.mxu0 %v1488
  %2217 = vmatmul.mubr.f32.gmra.mrb[0].mxu0 %v1487
  %v2218 = vpop.f32.mrb[0].mxu0
  %v2219 = vadd.f32 %v1835, %v2218
  %v2220 = vpop.f32.mrb[0].mxu0
  %2221 = vmatprep.mubr.f32.mxu0 %v1492
  %2222 = vmatmul.mubr.f32.gmra.mrb[0].mxu0 %v1491
  %v2223 = vpop.f32.mrb[0].mxu0
  %v2224 = vadd.f32 %v1840, %v2223
  %v2225 = vpop.f32.mrb[0].mxu0
  %2226 = vmatprep.mubr.f32.mxu0 %v1496
  %2227 = vmatmul.mubr.f32.gmra.mrb[0].mxu0 %v1495
  %v2228 = vpop.f32.mrb[0].mxu0
  %v2229 = vadd.f32 %v1845, %v2228
  %v2230 = vpop.f32.mrb[0].mxu0
  %2231 = vmatprep.mubr.f32.mxu0 %v1500
  %2232 = vmatmul.mubr.f32.gmra.mrb[0].mxu0 %v1499
  %v2233 = vpop.f32.mrb[0].mxu0
  %v2234 = vadd.f32 %v1850, %v2233
  %v2235 = vpop.f32.mrb[0].mxu0
  %2236 = vmatprep.mubr.f32.mxu0 %v1504
  %2237 = vmatmul.mubr.f32.gmra.mrb[0].mxu0 %v1503
  %v2238 = vpop.f32.mrb[0].mxu0
  %v2239 = vadd.f32 %v1855, %v2238
  %v2240 = vpop.f32.mrb[0].mxu0
  %2241 = vmatprep.mubr.f32.mxu0 %v1508
  %2242 = vmatmul.mubr.f32.gmra.mrb[0].mxu0 %v1507
  %v2243 = vpop.f32.mrb[0].mxu0
  %v2244 = vadd.f32 %v1860, %v2243
  %v2245 = vpop.f32.mrb[0].mxu0
  %2246 = vmatprep.mubr.f32.mxu0 %v1512
  %2247 = vmatmul.mubr.f32.gmra.mrb[0].mxu0 %v1511
  %v2248 = vpop.f32.mrb[0].mxu0
  %v2249 = vadd.f32 %v1865, %v2248
  %v2250 = vpop.f32.mrb[0].mxu0
  %2251 = vmatprep.mubr.f32.mxu0 %v1516
  %2252 = vmatmul.mubr.f32.gmra.mrb[0].mxu0 %v1515
  %v2253 = vpop.f32.mrb[0].mxu0
  %v2254 = vadd.f32 %v1870, %v2253
  %v2255 = vpop.f32.mrb[0].mxu0
  %2256 = vmatprep.mubr.f32.mxu0 %v1520
  %2257 = vmatmul.mubr.f32.gmra.mrb[0].mxu0 %v1519
  %v2258 = vpop.f32.mrb[0].mxu0
  %v2259 = vadd.f32 %v1875, %v2258
  %v2260 = vpop.f32.mrb[0].mxu0
  %2261 = vmatprep.mubr.f32.mxu0 %v1524
  %2262 = vmatmul.mubr.f32.gmra.mrb[0].mxu0 %v1523
  %v2263 = vpop.f32.mrb[0].mxu0
  %v2264 = vadd.f32 %v1880, %v2263
  %v2265 = vpop.f32.mrb[0].mxu0
  %2266 = vmatprep.mubr.f32.mxu0 %v1528
  %2267 = vmatmul.mubr.f32.gmra.mrb[0].mxu0 %v1527
  %v2268 = vpop.f32.mrb[0].mxu0
  %v2269 = vadd.f32 %v1885, %v2268
  %v2270 = vpop.f32.mrb[0].mxu0
  %2271 = vmatprep.mubr.f32.mxu0 %v1532
  %2272 = vmatmul.mubr.f32.gmra.mrb[0].mxu0 %v1531
  %v2273 = vpop.f32.mrb[0].mxu0
  %v2274 = vadd.f32 %v1890, %v2273
  %v2275 = vpop.f32.mrb[0].mxu0
  %2276 = vmatprep.mubr.f32.mxu0 %v1536
  %2277 = vmatmul.mubr.f32.gmra.mrb[0].mxu0 %v1535
  %v2278 = vpop.f32.mrb[0].mxu0
  %v2279 = vadd.f32 %v1895, %v2278
  %v2280 = vpop.f32.mrb[0].mxu0
  %2281 = vmatprep.mubr.f32.mxu0 %v1540
  %2282 = vmatmul.mubr.f32.gmra.mrb[0].mxu0 %v1539
  %v2283 = vpop.f32.mrb[0].mxu0
  %v2284 = vadd.f32 %v1900, %v2283
  %v2285 = vpop.f32.mrb[0].mxu0
  %2286 = vmatprep.mubr.f32.mxu0 %v1544
  %2287 = vmatmul.mubr.f32.gmra.mrb[0].mxu0 %v1543
  %v2288 = vpop.f32.mrb[0].mxu0
  %v2289 = vadd.f32 %v1905, %v2288
  %v2290 = vpop.f32.mrb[0].mxu0
  %2291 = vmatprep.mubr.f32.mxu0 %v1548
  %2292 = vmatmul.mubr.f32.gmra.mrb[0].mxu0 %v1547
  %v2293 = vpop.f32.mrb[0].mxu0
  %v2294 = vadd.f32 %v1910, %v2293
  %v2295 = vpop.f32.mrb[0].mxu0
  %2296 = vmatprep.mubr.f32.mxu0 %v1552
  %2297 = vmatmul.mubr.f32.gmra.mrb[0].mxu0 %v1551
  %v2298 = vpop.f32.mrb[0].mxu0
  %v2299 = vadd.f32 %v1915, %v2298
  %v2300 = vpop.f32.mrb[0].mxu0
  %2301 = vmatprep.mubr.f32.mxu0 %v1556
  %2302 = vmatmul.mubr.f32.gmra.mrb[0].mxu0 %v1555
  %v2303 = vpop.f32.mrb[0].mxu0
  %v2304 = vadd.f32 %v1920, %v2303
  %v2305 = vpop.f32.mrb[0].mxu0
  %2306 = vmatprep.mubr.f32.mxu0 %v1560
  %2307 = vmatmul.mubr.f32.gmra.mrb[0].mxu0 %v1559
  %v2308 = vpop.f32.mrb[0].mxu0
  %v2309 = vadd.f32 %v1925, %v2308
  %v2310 = vpop.f32.mrb[0].mxu0
  %2311 = vmatprep.mubr.f32.mxu0 %v1564
  %2312 = vmatmul.mubr.f32.gmra.mrb[0].mxu0 %v1563
  %v2313 = vpop.f32.mrb[0].mxu0
  %v2314 = vadd.f32 %v1930, %v2313
  %v2315 = vpop.f32.mrb[0].mxu0
  %2316 = vmatprep.mubr.f32.mxu0 %v1568
  %2317 = vmatmul.mubr.f32.gmra.mrb[0].mxu0 %v1567
  %v2318 = vpop.f32.mrb[0].mxu0
  %v2319 = vadd.f32 %v1935, %v2318
  %v2320 = vpop.f32.mrb[0].mxu0
  %2321 = vmatprep.mubr.f32.mxu0 %v1572
  %2322 = vmatmul.mubr.f32.gmra.mrb[0].mxu0 %v1571
  %v2323 = vpop.f32.mrb[0].mxu0
  %v2324 = vadd.f32 %v1940, %v2323
  %v2325 = vpop.f32.mrb[0].mxu0
  %2326 = vmatprep.mubr.f32.mxu0 %v1576
  %2327 = vmatmul.mubr.f32.gmra.mrb[0].mxu0 %v1575
  %v2328 = vpop.f32.mrb[0].mxu0
  %v2329 = vadd.f32 %v1945, %v2328
  %v2330 = vpop.f32.mrb[0].mxu0
  %2331 = vmatprep.mubr.f32.mxu0 %v1580
  %2332 = vmatmul.mubr.f32.gmra.mrb[0].mxu0 %v1579
  %v2333 = vpop.f32.mrb[0].mxu0
  %v2334 = vadd.f32 %v1950, %v2333
  %v2335 = vpop.f32.mrb[0].mxu0
  %2336 = vmatprep.mubr.f32.mxu0 %v1584
  %2337 = vmatmul.mubr.f32.gmra.mrb[0].mxu0 %v1583
  %v2338 = vpop.f32.mrb[0].mxu0
  %v2339 = vadd.f32 %v1955, %v2338
  %v2340 = vpop.f32.mrb[0].mxu0
  %2341 = vmatprep.mubr.f32.mxu0 %v1588
  %2342 = vmatmul.mubr.f32.gmra.mrb[0].mxu0 %v1587
  %v2343 = vpop.f32.mrb[0].mxu0
  %v2344 = vadd.f32 %v1960, %v2343
  %v2345 = vpop.f32.mrb[0].mxu0
  %2346 = vmatprep.mubr.f32.mxu0 %v1592
  %2347 = vmatmul.mubr.f32.gmra.mrb[0].mxu0 %v1591
  %v2348 = vpop.f32.mrb[0].mxu0
  %v2349 = vadd.f32 %v1965, %v2348
  %v2350 = vpop.f32.mrb[0].mxu0
  %2351 = vmatprep.mubr.f32.mxu0 %v1596
  %2352 = vmatmul.mubr.f32.gmra.mrb[0].mxu0 %v1595
  %v2353 = vpop.f32.mrb[0].mxu0
  %v2354 = vadd.f32 %v1970, %v2353
  %v2355 = vpop.f32.mrb[0].mxu0
  %2356 = vmatprep.mubr.f32.mxu0 %v1600
  %2357 = vmatmul.mubr.f32.gmra.mrb[0].mxu0 %v1599
  %v2358 = vpop.f32.mrb[0].mxu0
  %v2359 = vadd.f32 %v1975, %v2358
  %v2360 = vpop.f32.mrb[0].mxu0
  %2361 = vmatprep.mubr.f32.mxu0 %v1604
  %2362 = vmatmul.mubr.f32.gmra.mrb[0].mxu0 %v1603
  %v2363 = vpop.f32.mrb[0].mxu0
  %v2364 = vadd.f32 %v1980, %v2363
  %v2365 = vpop.f32.mrb[0].mxu0
  %2366 = vmatprep.mubr.f32.mxu0 %v1608
  %2367 = vmatmul.mubr.f32.gmra.mrb[0].mxu0 %v1607
  %v2368 = vpop.f32.mrb[0].mxu0
  %v2369 = vadd.f32 %v1985, %v2368
  %v2370 = vpop.f32.mrb[0].mxu0
  %2371 = vmatprep.mubr.f32.mxu0 %v1612
  %2372 = vmatmul.mubr.f32.gmra.mrb[0].mxu0 %v1611
  %v2373 = vpop.f32.mrb[0].mxu0
  %v2374 = vadd.f32 %v1990, %v2373
  %v2375 = vpop.f32.mrb[0].mxu0
  %2376 = vmatprep.mubr.f32.mxu0 %v1616
  %2377 = vmatmul.mubr.f32.gmra.mrb[0].mxu0 %v1615
  %v2378 = vpop.f32.mrb[0].mxu0
  %v2379 = vadd.f32 %v1995, %v2378
  %v2380 = vpop.f32.mrb[0].mxu0
  %2381 = vmatprep.mubr.f32.mxu0 %v1620
  %2382 = vmatmul.mubr.f32.gmra.mrb[0].mxu0 %v1619
  %v2383 = vpop.f32.mrb[0].mxu0
  %v2384 = vadd.f32 %v2000, %v2383
  %v2385 = vpop.f32.mrb[0].mxu0
  %2386 = vmatprep.mubr.f32.mxu0 %v1624
  %2387 = vmatmul.mubr.f32.gmra.mrb[0].mxu0 %v1623
  %v2388 = vpop.f32.mrb[0].mxu0
  %v2389 = vadd.f32 %v2005, %v2388
  %v2390 = vpop.f32.mrb[0].mxu0
  %2391 = vmatprep.mubr.f32.mxu0 %v1628
  %2392 = vmatmul.mubr.f32.gmra.mrb[0].mxu0 %v1627
  %v2393 = vpop.f32.mrb[0].mxu0
  %v2394 = vadd.f32 %v2010, %v2393
  %v2395 = vpop.f32.mrb[0].mxu0
  %2396 = vmatprep.mubr.f32.mxu0 %v1632
  %2397 = vmatmul.mubr.f32.gmra.mrb[0].mxu0 %v1631
  %v2398 = vpop.f32.mrb[0].mxu0
  %v2399 = vadd.f32 %v2015, %v2398
  %v2400 = vpop.f32.mrb[0].mxu0
  %2401 = vmatprep.mubr.f32.mxu0 %v1636
  %2402 = vmatmul.mubr.f32.gmra.mrb[0].mxu0 %v1635
  %v2403 = vpop.f32.mrb[0].mxu0
  %v2404 = vadd.f32 %v2020, %v2403
  %v2405 = vpop.f32.mrb[0].mxu0
  %2406 = vmatprep.mubr.f32.mxu0 %v1640
  %2407 = vmatmul.mubr.f32.gmra.mrb[0].mxu0 %v1639
  %v2408 = vpop.f32.mrb[0].mxu0
  %v2409 = vadd.f32 %v2025, %v2408
  %v2410 = vpop.f32.mrb[0].mxu0
  %2411 = vdwg.mxu0
  %2412 = vmatprep.subr.mxu0 0.0
  %2413 = vmatpush1.msra.mxu0 %v1355
  %2414 = vmatprep.subr.mxu0 0.0
  %2415 = vmatpush1.msra.mxu0 %v1356
  %2416 = vmatprep.subr.mxu0 0.0
  %2417 = vmatpush1.msra.mxu0 %v1357
  %2418 = vmatprep.subr.mxu0 0.0
  %2419 = vmatpush1.msra.mxu0 %v1358
  %2420 = vmatprep.subr.mxu0 0.0
  %2421 = vmatpush1.msra.mxu0 %v1359
  %2422 = vmatprep.subr.mxu0 0.0
  %2423 = vmatpush1.msra.mxu0 %v1360
  %2424 = vmatprep.subr.mxu0 0.0
  %2425 = vmatpush1.msra.mxu0 %v1361
  %2426 = vmatprep.subr.mxu0 0.0
  %2427 = vmatpush1.msra.mxu0 %v1362
  %2428 = vmatprep.subr.mxu0 0.0
  %2429 = vmatpush1.msra.mxu0 %v1363
  %2430 = vmatprep.subr.mxu0 0.0
  %2431 = vmatpush1.msra.mxu0 %v1364
  %2432 = vmatprep.subr.mxu0 0.0
  %2433 = vmatpush1.msra.mxu0 %v1365
  %2434 = vmatprep.subr.mxu0 0.0
  %2435 = vmatpush1.msra.mxu0 %v1366
  %2436 = vmatprep.subr.mxu0 0.0
  %2437 = vmatpush1.msra.mxu0 %v1367
  %2438 = vmatprep.subr.mxu0 0.0
  %2439 = vmatpush1.msra.mxu0 %v1368
  %2440 = vmatprep.subr.mxu0 0.0
  %2441 = vmatpush1.msra.mxu0 %v1369
  %2442 = vmatprep.subr.mxu0 0.0
  %2443 = vmatpush1.msra.mxu0 %v1370
  %2444 = vmatprep.subr.mxu0 0.0
  %2445 = vmatpush1.msra.mxu0 %v1371
  %2446 = vmatprep.subr.mxu0 0.0
  %2447 = vmatpush1.msra.mxu0 %v1372
  %2448 = vmatprep.subr.mxu0 0.0
  %2449 = vmatpush1.msra.mxu0 %v1373
  %2450 = vmatprep.subr.mxu0 0.0
  %2451 = vmatpush1.msra.mxu0 %v1374
  %2452 = vmatprep.subr.mxu0 0.0
  %2453 = vmatpush1.msra.mxu0 %v1375
  %2454 = vmatprep.subr.mxu0 0.0
  %2455 = vmatpush1.msra.mxu0 %v1376
  %2456 = vmatprep.subr.mxu0 0.0
  %2457 = vmatpush1.msra.mxu0 %v1377
  %2458 = vmatprep.subr.mxu0 0.0
  %2459 = vmatpush1.msra.mxu0 %v1378
  %2460 = vmatprep.subr.mxu0 0.0
  %2461 = vmatpush1.msra.mxu0 %v1379
  %2462 = vmatprep.subr.mxu0 0.0
  %2463 = vmatpush1.msra.mxu0 %v1380
  %2464 = vmatprep.subr.mxu0 0.0
  %2465 = vmatpush1.msra.mxu0 %v1381
  %2466 = vmatprep.subr.mxu0 0.0
  %2467 = vmatpush1.msra.mxu0 %v1382
  %2468 = vmatprep.subr.mxu0 0.0
  %2469 = vmatpush1.msra.mxu0 %v1383
  %2470 = vmatprep.subr.mxu0 0.0
  %2471 = vmatpush1.msra.mxu0 %v1384
  %2472 = vmatprep.subr.mxu0 0.0
  %2473 = vmatpush1.msra.mxu0 %v1385
  %2474 = vmatprep.subr.mxu0 0.0
  %2475 = vmatpush1.msra.mxu0 %v1386
  %2476 = vmatprep.mubr.f32.mxu0 %v1390
  %2477 = vmatmul.mubr.f32.gmra.mrb[0].mxu0 %v1389
  %v2478 = vpop.f32.mrb[0].mxu0
  %v2479 = vadd.f32 %v2094, %v2478
  %v2480 = vpop.f32.mrb[0].mxu0
  %2481 = vmatprep.mubr.f32.mxu0 %v1394
  %2482 = vmatmul.mubr.f32.gmra.mrb[0].mxu0 %v1393
  %v2483 = vpop.f32.mrb[0].mxu0
  %v2484 = vadd.f32 %v2099, %v2483
  %v2485 = vpop.f32.mrb[0].mxu0
  %2486 = vmatprep.mubr.f32.mxu0 %v1398
  %2487 = vmatmul.mubr.f32.gmra.mrb[0].mxu0 %v1397
  %v2488 = vpop.f32.mrb[0].mxu0
  %v2489 = vadd.f32 %v2104, %v2488
  %v2490 = vpop.f32.mrb[0].mxu0
  %2491 = vmatprep.mubr.f32.mxu0 %v1402
  %2492 = vmatmul.mubr.f32.gmra.mrb[0].mxu0 %v1401
  %v2493 = vpop.f32.mrb[0].mxu0
  %v2494 = vadd.f32 %v2109, %v2493
  %v2495 = vpop.f32.mrb[0].mxu0
  %2496 = vmatprep.mubr.f32.mxu0 %v1406
  %2497 = vmatmul.mubr.f32.gmra.mrb[0].mxu0 %v1405
  %v2498 = vpop.f32.mrb[0].mxu0
  %v2499 = vadd.f32 %v2114, %v2498
  %v2500 = vpop.f32.mrb[0].mxu0
  %2501 = vmatprep.mubr.f32.mxu0 %v1410
  %2502 = vmatmul.mubr.f32.gmra.mrb[0].mxu0 %v1409
  %v2503 = vpop.f32.mrb[0].mxu0
  %v2504 = vadd.f32 %v2119, %v2503
  %v2505 = vpop.f32.mrb[0].mxu0
  %2506 = vmatprep.mubr.f32.mxu0 %v1414
  %2507 = vmatmul.mubr.f32.gmra.mrb[0].mxu0 %v1413
  %v2508 = vpop.f32.mrb[0].mxu0
  %v2509 = vadd.f32 %v2124, %v2508
  %v2510 = vpop.f32.mrb[0].mxu0
  %2511 = vmatprep.mubr.f32.mxu0 %v1418
  %2512 = vmatmul.mubr.f32.gmra.mrb[0].mxu0 %v1417
  %v2513 = vpop.f32.mrb[0].mxu0
  %v2514 = vadd.f32 %v2129, %v2513
  %v2515 = vpop.f32.mrb[0].mxu0
  %2516 = vmatprep.mubr.f32.mxu0 %v1422
  %2517 = vmatmul.mubr.f32.gmra.mrb[0].mxu0 %v1421
  %v2518 = vpop.f32.mrb[0].mxu0
  %v2519 = vadd.f32 %v2134, %v2518
  %v2520 = vpop.f32.mrb[0].mxu0
  %2521 = vmatprep.mubr.f32.mxu0 %v1426
  %2522 = vmatmul.mubr.f32.gmra.mrb[0].mxu0 %v1425
  %v2523 = vpop.f32.mrb[0].mxu0
  %v2524 = vadd.f32 %v2139, %v2523
  %v2525 = vpop.f32.mrb[0].mxu0
  %2526 = vmatprep.mubr.f32.mxu0 %v1430
  %2527 = vmatmul.mubr.f32.gmra.mrb[0].mxu0 %v1429
  %v2528 = vpop.f32.mrb[0].mxu0
  %v2529 = vadd.f32 %v2144, %v2528
  %v2530 = vpop.f32.mrb[0].mxu0
  %2531 = vmatprep.mubr.f32.mxu0 %v1434
  %2532 = vmatmul.mubr.f32.gmra.mrb[0].mxu0 %v1433
  %v2533 = vpop.f32.mrb[0].mxu0
  %v2534 = vadd.f32 %v2149, %v2533
  %v2535 = vpop.f32.mrb[0].mxu0
  %2536 = vmatprep.mubr.f32.mxu0 %v1438
  %2537 = vmatmul.mubr.f32.gmra.mrb[0].mxu0 %v1437
  %v2538 = vpop.f32.mrb[0].mxu0
  %v2539 = vadd.f32 %v2154, %v2538
  %v2540 = vpop.f32.mrb[0].mxu0
  %2541 = vmatprep.mubr.f32.mxu0 %v1442
  %2542 = vmatmul.mubr.f32.gmra.mrb[0].mxu0 %v1441
  %v2543 = vpop.f32.mrb[0].mxu0
  %v2544 = vadd.f32 %v2159, %v2543
  %v2545 = vpop.f32.mrb[0].mxu0
  %2546 = vmatprep.mubr.f32.mxu0 %v1446
  %2547 = vmatmul.mubr.f32.gmra.mrb[0].mxu0 %v1445
  %v2548 = vpop.f32.mrb[0].mxu0
  %v2549 = vadd.f32 %v2164, %v2548
  %v2550 = vpop.f32.mrb[0].mxu0
  %2551 = vmatprep.mubr.f32.mxu0 %v1450
  %2552 = vmatmul.mubr.f32.gmra.mrb[0].mxu0 %v1449
  %v2553 = vpop.f32.mrb[0].mxu0
  %v2554 = vadd.f32 %v2169, %v2553
  %v2555 = vpop.f32.mrb[0].mxu0
  %2556 = vmatprep.mubr.f32.mxu0 %v1454
  %2557 = vmatmul.mubr.f32.gmra.mrb[0].mxu0 %v1453
  %v2558 = vpop.f32.mrb[0].mxu0
  %v2559 = vadd.f32 %v2174, %v2558
  %v2560 = vpop.f32.mrb[0].mxu0
  %2561 = vmatprep.mubr.f32.mxu0 %v1458
  %2562 = vmatmul.mubr.f32.gmra.mrb[0].mxu0 %v1457
  %v2563 = vpop.f32.mrb[0].mxu0
  %v2564 = vadd.f32 %v2179, %v2563
  %v2565 = vpop.f32.mrb[0].mxu0
  %2566 = vmatprep.mubr.f32.mxu0 %v1462
  %2567 = vmatmul.mubr.f32.gmra.mrb[0].mxu0 %v1461
  %v2568 = vpop.f32.mrb[0].mxu0
  %v2569 = vadd.f32 %v2184, %v2568
  %v2570 = vpop.f32.mrb[0].mxu0
  %2571 = vmatprep.mubr.f32.mxu0 %v1466
  %2572 = vmatmul.mubr.f32.gmra.mrb[0].mxu0 %v1465
  %v2573 = vpop.f32.mrb[0].mxu0
  %v2574 = vadd.f32 %v2189, %v2573
  %v2575 = vpop.f32.mrb[0].mxu0
  %2576 = vmatprep.mubr.f32.mxu0 %v1470
  %2577 = vmatmul.mubr.f32.gmra.mrb[0].mxu0 %v1469
  %v2578 = vpop.f32.mrb[0].mxu0
  %v2579 = vadd.f32 %v2194, %v2578
  %v2580 = vpop.f32.mrb[0].mxu0
  %2581 = vmatprep.mubr.f32.mxu0 %v1474
  %2582 = vmatmul.mubr.f32.gmra.mrb[0].mxu0 %v1473
  %v2583 = vpop.f32.mrb[0].mxu0
  %v2584 = vadd.f32 %v2199, %v2583
  %v2585 = vpop.f32.mrb[0].mxu0
  %2586 = vmatprep.mubr.f32.mxu0 %v1478
  %2587 = vmatmul.mubr.f32.gmra.mrb[0].mxu0 %v1477
  %v2588 = vpop.f32.mrb[0].mxu0
  %v2589 = vadd.f32 %v2204, %v2588
  %v2590 = vpop.f32.mrb[0].mxu0
  %2591 = vmatprep.mubr.f32.mxu0 %v1482
  %2592 = vmatmul.mubr.f32.gmra.mrb[0].mxu0 %v1481
  %v2593 = vpop.f32.mrb[0].mxu0
  %v2594 = vadd.f32 %v2209, %v2593
  %v2595 = vpop.f32.mrb[0].mxu0
  %2596 = vmatprep.mubr.f32.mxu0 %v1486
  %2597 = vmatmul.mubr.f32.gmra.mrb[0].mxu0 %v1485
  %v2598 = vpop.f32.mrb[0].mxu0
  %v2599 = vadd.f32 %v2214, %v2598
  %v2600 = vpop.f32.mrb[0].mxu0
  %2601 = vmatprep.mubr.f32.mxu0 %v1490
  %2602 = vmatmul.mubr.f32.gmra.mrb[0].mxu0 %v1489
  %v2603 = vpop.f32.mrb[0].mxu0
  %v2604 = vadd.f32 %v2219, %v2603
  %v2605 = vpop.f32.mrb[0].mxu0
  %2606 = vmatprep.mubr.f32.mxu0 %v1494
  %2607 = vmatmul.mubr.f32.gmra.mrb[0].mxu0 %v1493
  %v2608 = vpop.f32.mrb[0].mxu0
  %v2609 = vadd.f32 %v2224, %v2608
  %v2610 = vpop.f32.mrb[0].mxu0
  %2611 = vmatprep.mubr.f32.mxu0 %v1498
  %2612 = vmatmul.mubr.f32.gmra.mrb[0].mxu0 %v1497
  %v2613 = vpop.f32.mrb[0].mxu0
  %v2614 = vadd.f32 %v2229, %v2613
  %v2615 = vpop.f32.mrb[0].mxu0
  %2616 = vmatprep.mubr.f32.mxu0 %v1502
  %2617 = vmatmul.mubr.f32.gmra.mrb[0].mxu0 %v1501
  %v2618 = vpop.f32.mrb[0].mxu0
  %v2619 = vadd.f32 %v2234, %v2618
  %v2620 = vpop.f32.mrb[0].mxu0
  %2621 = vmatprep.mubr.f32.mxu0 %v1506
  %2622 = vmatmul.mubr.f32.gmra.mrb[0].mxu0 %v1505
  %v2623 = vpop.f32.mrb[0].mxu0
  %v2624 = vadd.f32 %v2239, %v2623
  %v2625 = vpop.f32.mrb[0].mxu0
  %2626 = vmatprep.mubr.f32.mxu0 %v1510
  %2627 = vmatmul.mubr.f32.gmra.mrb[0].mxu0 %v1509
  %v2628 = vpop.f32.mrb[0].mxu0
  %v2629 = vadd.f32 %v2244, %v2628
  %v2630 = vpop.f32.mrb[0].mxu0
  %2631 = vmatprep.mubr.f32.mxu0 %v1514
  %2632 = vmatmul.mubr.f32.gmra.mrb[0].mxu0 %v1513
  %v2633 = vpop.f32.mrb[0].mxu0
  %v2634 = vadd.f32 %v2249, %v2633
  %v2635 = vpop.f32.mrb[0].mxu0
  %2636 = vmatprep.mubr.f32.mxu0 %v1518
  %2637 = vmatmul.mubr.f32.gmra.mrb[0].mxu0 %v1517
  %v2638 = vpop.f32.mrb[0].mxu0
  %v2639 = vadd.f32 %v2254, %v2638
  %v2640 = vpop.f32.mrb[0].mxu0
  %2641 = vmatprep.mubr.f32.mxu0 %v1522
  %2642 = vmatmul.mubr.f32.gmra.mrb[0].mxu0 %v1521
  %v2643 = vpop.f32.mrb[0].mxu0
  %v2644 = vadd.f32 %v2259, %v2643
  %v2645 = vpop.f32.mrb[0].mxu0
  %2646 = vmatprep.mubr.f32.mxu0 %v1526
  %2647 = vmatmul.mubr.f32.gmra.mrb[0].mxu0 %v1525
  %v2648 = vpop.f32.mrb[0].mxu0
  %v2649 = vadd.f32 %v2264, %v2648
  %v2650 = vpop.f32.mrb[0].mxu0
  %2651 = vmatprep.mubr.f32.mxu0 %v1530
  %2652 = vmatmul.mubr.f32.gmra.mrb[0].mxu0 %v1529
  %v2653 = vpop.f32.mrb[0].mxu0
  %v2654 = vadd.f32 %v2269, %v2653
  %v2655 = vpop.f32.mrb[0].mxu0
  %2656 = vmatprep.mubr.f32.mxu0 %v1534
  %2657 = vmatmul.mubr.f32.gmra.mrb[0].mxu0 %v1533
  %v2658 = vpop.f32.mrb[0].mxu0
  %v2659 = vadd.f32 %v2274, %v2658
  %v2660 = vpop.f32.mrb[0].mxu0
  %2661 = vmatprep.mubr.f32.mxu0 %v1538
  %2662 = vmatmul.mubr.f32.gmra.mrb[0].mxu0 %v1537
  %v2663 = vpop.f32.mrb[0].mxu0
  %v2664 = vadd.f32 %v2279, %v2663
  %v2665 = vpop.f32.mrb[0].mxu0
  %2666 = vmatprep.mubr.f32.mxu0 %v1542
  %2667 = vmatmul.mubr.f32.gmra.mrb[0].mxu0 %v1541
  %v2668 = vpop.f32.mrb[0].mxu0
  %v2669 = vadd.f32 %v2284, %v2668
  %v2670 = vpop.f32.mrb[0].mxu0
  %2671 = vmatprep.mubr.f32.mxu0 %v1546
  %2672 = vmatmul.mubr.f32.gmra.mrb[0].mxu0 %v1545
  %v2673 = vpop.f32.mrb[0].mxu0
  %v2674 = vadd.f32 %v2289, %v2673
  %v2675 = vpop.f32.mrb[0].mxu0
  %2676 = vmatprep.mubr.f32.mxu0 %v1550
  %2677 = vmatmul.mubr.f32.gmra.mrb[0].mxu0 %v1549
  %v2678 = vpop.f32.mrb[0].mxu0
  %v2679 = vadd.f32 %v2294, %v2678
  %v2680 = vpop.f32.mrb[0].mxu0
  %2681 = vmatprep.mubr.f32.mxu0 %v1554
  %2682 = vmatmul.mubr.f32.gmra.mrb[0].mxu0 %v1553
  %v2683 = vpop.f32.mrb[0].mxu0
  %v2684 = vadd.f32 %v2299, %v2683
  %v2685 = vpop.f32.mrb[0].mxu0
  %2686 = vmatprep.mubr.f32.mxu0 %v1558
  %2687 = vmatmul.mubr.f32.gmra.mrb[0].mxu0 %v1557
  %v2688 = vpop.f32.mrb[0].mxu0
  %v2689 = vadd.f32 %v2304, %v2688
  %v2690 = vpop.f32.mrb[0].mxu0
  %2691 = vmatprep.mubr.f32.mxu0 %v1562
  %2692 = vmatmul.mubr.f32.gmra.mrb[0].mxu0 %v1561
  %v2693 = vpop.f32.mrb[0].mxu0
  %v2694 = vadd.f32 %v2309, %v2693
  %v2695 = vpop.f32.mrb[0].mxu0
  %2696 = vmatprep.mubr.f32.mxu0 %v1566
  %2697 = vmatmul.mubr.f32.gmra.mrb[0].mxu0 %v1565
  %v2698 = vpop.f32.mrb[0].mxu0
  %v2699 = vadd.f32 %v2314, %v2698
  %v2700 = vpop.f32.mrb[0].mxu0
  %2701 = vmatprep.mubr.f32.mxu0 %v1570
  %2702 = vmatmul.mubr.f32.gmra.mrb[0].mxu0 %v1569
  %v2703 = vpop.f32.mrb[0].mxu0
  %v2704 = vadd.f32 %v2319, %v2703
  %v2705 = vpop.f32.mrb[0].mxu0
  %2706 = vmatprep.mubr.f32.mxu0 %v1574
  %2707 = vmatmul.mubr.f32.gmra.mrb[0].mxu0 %v1573
  %v2708 = vpop.f32.mrb[0].mxu0
  %v2709 = vadd.f32 %v2324, %v2708
  %v2710 = vpop.f32.mrb[0].mxu0
  %2711 = vmatprep.mubr.f32.mxu0 %v1578
  %2712 = vmatmul.mubr.f32.gmra.mrb[0].mxu0 %v1577
  %v2713 = vpop.f32.mrb[0].mxu0
  %v2714 = vadd.f32 %v2329, %v2713
  %v2715 = vpop.f32.mrb[0].mxu0
  %2716 = vmatprep.mubr.f32.mxu0 %v1582
  %2717 = vmatmul.mubr.f32.gmra.mrb[0].mxu0 %v1581
  %v2718 = vpop.f32.mrb[0].mxu0
  %v2719 = vadd.f32 %v2334, %v2718
  %v2720 = vpop.f32.mrb[0].mxu0
  %2721 = vmatprep.mubr.f32.mxu0 %v1586
  %2722 = vmatmul.mubr.f32.gmra.mrb[0].mxu0 %v1585
  %v2723 = vpop.f32.mrb[0].mxu0
  %v2724 = vadd.f32 %v2339, %v2723
  %v2725 = vpop.f32.mrb[0].mxu0
  %2726 = vmatprep.mubr.f32.mxu0 %v1590
  %2727 = vmatmul.mubr.f32.gmra.mrb[0].mxu0 %v1589
  %v2728 = vpop.f32.mrb[0].mxu0
  %v2729 = vadd.f32 %v2344, %v2728
  %v2730 = vpop.f32.mrb[0].mxu0
  %2731 = vmatprep.mubr.f32.mxu0 %v1594
  %2732 = vmatmul.mubr.f32.gmra.mrb[0].mxu0 %v1593
  %v2733 = vpop.f32.mrb[0].mxu0
  %v2734 = vadd.f32 %v2349, %v2733
  %v2735 = vpop.f32.mrb[0].mxu0
  %2736 = vmatprep.mubr.f32.mxu0 %v1598
  %2737 = vmatmul.mubr.f32.gmra.mrb[0].mxu0 %v1597
  %v2738 = vpop.f32.mrb[0].mxu0
  %v2739 = vadd.f32 %v2354, %v2738
  %v2740 = vpop.f32.mrb[0].mxu0
  %2741 = vmatprep.mubr.f32.mxu0 %v1602
  %2742 = vmatmul.mubr.f32.gmra.mrb[0].mxu0 %v1601
  %v2743 = vpop.f32.mrb[0].mxu0
  %v2744 = vadd.f32 %v2359, %v2743
  %v2745 = vpop.f32.mrb[0].mxu0
  %2746 = vmatprep.mubr.f32.mxu0 %v1606
  %2747 = vmatmul.mubr.f32.gmra.mrb[0].mxu0 %v1605
  %v2748 = vpop.f32.mrb[0].mxu0
  %v2749 = vadd.f32 %v2364, %v2748
  %v2750 = vpop.f32.mrb[0].mxu0
  %2751 = vmatprep.mubr.f32.mxu0 %v1610
  %2752 = vmatmul.mubr.f32.gmra.mrb[0].mxu0 %v1609
  %v2753 = vpop.f32.mrb[0].mxu0
  %v2754 = vadd.f32 %v2369, %v2753
  %v2755 = vpop.f32.mrb[0].mxu0
  %2756 = vmatprep.mubr.f32.mxu0 %v1614
  %2757 = vmatmul.mubr.f32.gmra.mrb[0].mxu0 %v1613
  %v2758 = vpop.f32.mrb[0].mxu0
  %v2759 = vadd.f32 %v2374, %v2758
  %v2760 = vpop.f32.mrb[0].mxu0
  %2761 = vmatprep.mubr.f32.mxu0 %v1618
  %2762 = vmatmul.mubr.f32.gmra.mrb[0].mxu0 %v1617
  %v2763 = vpop.f32.mrb[0].mxu0
  %v2764 = vadd.f32 %v2379, %v2763
  %v2765 = vpop.f32.mrb[0].mxu0
  %2766 = vmatprep.mubr.f32.mxu0 %v1622
  %2767 = vmatmul.mubr.f32.gmra.mrb[0].mxu0 %v1621
  %v2768 = vpop.f32.mrb[0].mxu0
  %v2769 = vadd.f32 %v2384, %v2768
  %v2770 = vpop.f32.mrb[0].mxu0
  %2771 = vmatprep.mubr.f32.mxu0 %v1626
  %2772 = vmatmul.mubr.f32.gmra.mrb[0].mxu0 %v1625
  %v2773 = vpop.f32.mrb[0].mxu0
  %v2774 = vadd.f32 %v2389, %v2773
  %v2775 = vpop.f32.mrb[0].mxu0
  %2776 = vmatprep.mubr.f32.mxu0 %v1630
  %2777 = vmatmul.mubr.f32.gmra.mrb[0].mxu0 %v1629
  %v2778 = vpop.f32.mrb[0].mxu0
  %v2779 = vadd.f32 %v2394, %v2778
  %v2780 = vpop.f32.mrb[0].mxu0
  %2781 = vmatprep.mubr.f32.mxu0 %v1634
  %2782 = vmatmul.mubr.f32.gmra.mrb[0].mxu0 %v1633
  %v2783 = vpop.f32.mrb[0].mxu0
  %v2784 = vadd.f32 %v2399, %v2783
  %v2785 = vpop.f32.mrb[0].mxu0
  %2786 = vmatprep.mubr.f32.mxu0 %v1638
  %2787 = vmatmul.mubr.f32.gmra.mrb[0].mxu0 %v1637
  %v2788 = vpop.f32.mrb[0].mxu0
  %v2789 = vadd.f32 %v2404, %v2788
  %v2790 = vpop.f32.mrb[0].mxu0
  %2791 = vmatprep.mubr.f32.mxu0 %v1642
  %2792 = vmatmul.mubr.f32.gmra.mrb[0].mxu0 %v1641
  %v2793 = vpop.f32.mrb[0].mxu0
  %v2794 = vadd.f32 %v2409, %v2793
  %v2795 = vpop.f32.mrb[0].mxu0
  %2796 = vdwg.mxu0
  %v2797 = vmax.f32 %v2479, 0.0
  %v2798 = vmax.f32 %v2484, 0.0
  %v2799 = vmax.f32 %v2489, 0.0
  %v2800 = vmax.f32 %v2494, 0.0
  %v2801 = vmax.f32 %v2499, 0.0
  %v2802 = vmax.f32 %v2504, 0.0
  %v2803 = vmax.f32 %v2509, 0.0
  %v2804 = vmax.f32 %v2514, 0.0
  %v2805 = vmax.f32 %v2519, 0.0
  %v2806 = vmax.f32 %v2524, 0.0
  %v2807 = vmax.f32 %v2529, 0.0
  %v2808 = vmax.f32 %v2534, 0.0
  %v2809 = vmax.f32 %v2539, 0.0
  %v2810 = vmax.f32 %v2544, 0.0
  %v2811 = vmax.f32 %v2549, 0.0
  %v2812 = vmax.f32 %v2554, 0.0
  %v2813 = vmax.f32 %v2559, 0.0
  %v2814 = vmax.f32 %v2564, 0.0
  %v2815 = vmax.f32 %v2569, 0.0
  %v2816 = vmax.f32 %v2574, 0.0
  %v2817 = vmax.f32 %v2579, 0.0
  %v2818 = vmax.f32 %v2584, 0.0
  %v2819 = vmax.f32 %v2589, 0.0
  %v2820 = vmax.f32 %v2594, 0.0
  %v2821 = vmax.f32 %v2599, 0.0
  %v2822 = vmax.f32 %v2604, 0.0
  %v2823 = vmax.f32 %v2609, 0.0
  %v2824 = vmax.f32 %v2614, 0.0
  %v2825 = vmax.f32 %v2619, 0.0
  %v2826 = vmax.f32 %v2624, 0.0
  %v2827 = vmax.f32 %v2629, 0.0
  %v2828 = vmax.f32 %v2634, 0.0
  %v2829 = vmax.f32 %v2639, 0.0
  %v2830 = vmax.f32 %v2644, 0.0
  %v2831 = vmax.f32 %v2649, 0.0
  %v2832 = vmax.f32 %v2654, 0.0
  %v2833 = vmax.f32 %v2659, 0.0
  %v2834 = vmax.f32 %v2664, 0.0
  %v2835 = vmax.f32 %v2669, 0.0
  %v2836 = vmax.f32 %v2674, 0.0
  %v2837 = vmax.f32 %v2679, 0.0
  %v2838 = vmax.f32 %v2684, 0.0
  %v2839 = vmax.f32 %v2689, 0.0
  %v2840 = vmax.f32 %v2694, 0.0
  %v2841 = vmax.f32 %v2699, 0.0
  %v2842 = vmax.f32 %v2704, 0.0
  %v2843 = vmax.f32 %v2709, 0.0
  %v2844 = vmax.f32 %v2714, 0.0
  %v2845 = vmax.f32 %v2719, 0.0
  %v2846 = vmax.f32 %v2724, 0.0
  %v2847 = vmax.f32 %v2729, 0.0
  %v2848 = vmax.f32 %v2734, 0.0
  %v2849 = vmax.f32 %v2739, 0.0
  %v2850 = vmax.f32 %v2744, 0.0
  %v2851 = vmax.f32 %v2749, 0.0
  %v2852 = vmax.f32 %v2754, 0.0
  %v2853 = vmax.f32 %v2759, 0.0
  %v2854 = vmax.f32 %v2764, 0.0
  %v2855 = vmax.f32 %v2769, 0.0
  %v2856 = vmax.f32 %v2774, 0.0
  %v2857 = vmax.f32 %v2779, 0.0
  %v2858 = vmax.f32 %v2784, 0.0
  %v2859 = vmax.f32 %v2789, 0.0
  %v2860 = vmax.f32 %v2794, 0.0
  %v2861 = vld [vmem:[%s5] sm:$0xff]
  %v2862 = vld [vmem:[%s5 + $0x8] sm:$0xff]
  %v2863 = vld [vmem:[%s5 + $0x10] sm:$0xff]
  %v2864 = vld [vmem:[%s5 + $0x18] sm:$0xff]
  %v2865 = vld [vmem:[%s5 + $0x20] sm:$0xff]
  %v2866 = vld [vmem:[%s5 + $0x28] sm:$0xff]
  %v2867 = vld [vmem:[%s5 + $0x30] sm:$0xff]
  %v2868 = vld [vmem:[%s5 + $0x38] sm:$0xff]
  %v2869 = vld [vmem:[%s5 + $0x40] sm:$0xff]
  %v2870 = vld [vmem:[%s5 + $0x48] sm:$0xff]
  %v2871 = vld [vmem:[%s5 + $0x50] sm:$0xff]
  %v2872 = vld [vmem:[%s5 + $0x58] sm:$0xff]
  %v2873 = vld [vmem:[%s5 + $0x60] sm:$0xff]
  %v2874 = vld [vmem:[%s5 + $0x68] sm:$0xff]
  %v2875 = vld [vmem:[%s5 + $0x70] sm:$0xff]
  %v2876 = vld [vmem:[%s5 + $0x78] sm:$0xff]
  %v2877 = vld [vmem:[%s5 + $0x80] sm:$0xff]
  %v2878 = vld [vmem:[%s5 + $0x88] sm:$0xff]
  %v2879 = vld [vmem:[%s5 + $0x90] sm:$0xff]
  %v2880 = vld [vmem:[%s5 + $0x98] sm:$0xff]
  %v2881 = vld [vmem:[%s5 + $0xa0] sm:$0xff]
  %v2882 = vld [vmem:[%s5 + $0xa8] sm:$0xff]
  %v2883 = vld [vmem:[%s5 + $0xb0] sm:$0xff]
  %v2884 = vld [vmem:[%s5 + $0xb8] sm:$0xff]
  %v2885 = vld [vmem:[%s5 + $0xc0] sm:$0xff]
  %v2886 = vld [vmem:[%s5 + $0xc8] sm:$0xff]
  %v2887 = vld [vmem:[%s5 + $0xd0] sm:$0xff]
  %v2888 = vld [vmem:[%s5 + $0xd8] sm:$0xff]
  %v2889 = vld [vmem:[%s5 + $0xe0] sm:$0xff]
  %v2890 = vld [vmem:[%s5 + $0xe8] sm:$0xff]
  %v2891 = vld [vmem:[%s5 + $0xf0] sm:$0xff]
  %v2892 = vld [vmem:[%s5 + $0xf8] sm:$0xff]
  %v2893 = vld [vmem:[%s5 + $0x100] sm:$0xff]
  %v2894 = vld [vmem:[%s5 + $0x108] sm:$0xff]
  %v2895 = vld [vmem:[%s5 + $0x110] sm:$0xff]
  %v2896 = vld [vmem:[%s5 + $0x118] sm:$0xff]
  %v2897 = vld [vmem:[%s5 + $0x120] sm:$0xff]
  %v2898 = vld [vmem:[%s5 + $0x128] sm:$0xff]
  %v2899 = vld [vmem:[%s5 + $0x130] sm:$0xff]
  %v2900 = vld [vmem:[%s5 + $0x138] sm:$0xff]
  %v2901 = vld [vmem:[%s5 + $0x140] sm:$0xff]
  %v2902 = vld [vmem:[%s5 + $0x148] sm:$0xff]
  %v2903 = vld [vmem:[%s5 + $0x150] sm:$0xff]
  %v2904 = vld [vmem:[%s5 + $0x158] sm:$0xff]
  %v2905 = vld [vmem:[%s5 + $0x160] sm:$0xff]
  %v2906 = vld [vmem:[%s5 + $0x168] sm:$0xff]
  %v2907 = vld [vmem:[%s5 + $0x170] sm:$0xff]
  %v2908 = vld [vmem:[%s5 + $0x178] sm:$0xff]
  %v2909 = vld [vmem:[%s5 + $0x180] sm:$0xff]
  %v2910 = vld [vmem:[%s5 + $0x188] sm:$0xff]
  %v2911 = vld [vmem:[%s5 + $0x190] sm:$0xff]
  %v2912 = vld [vmem:[%s5 + $0x198] sm:$0xff]
  %v2913 = vld [vmem:[%s5 + $0x1a0] sm:$0xff]
  %v2914 = vld [vmem:[%s5 + $0x1a8] sm:$0xff]
  %v2915 = vld [vmem:[%s5 + $0x1b0] sm:$0xff]
  %v2916 = vld [vmem:[%s5 + $0x1b8] sm:$0xff]
  %v2917 = vld [vmem:[%s5 + $0x1c0] sm:$0xff]
  %v2918 = vld [vmem:[%s5 + $0x1c8] sm:$0xff]
  %v2919 = vld [vmem:[%s5 + $0x1d0] sm:$0xff]
  %v2920 = vld [vmem:[%s5 + $0x1d8] sm:$0xff]
  %v2921 = vld [vmem:[%s5 + $0x1e0] sm:$0xff]
  %v2922 = vld [vmem:[%s5 + $0x1e8] sm:$0xff]
  %v2923 = vld [vmem:[%s5 + $0x1f0] sm:$0xff]
  %v2924 = vld [vmem:[%s5 + $0x1f8] sm:$0xff]
  %v2925 = vld [vmem:[%s5 + $0x200] sm:$0xff]
  %v2926 = vld [vmem:[%s5 + $0x208] sm:$0xff]
  %v2927 = vld [vmem:[%s5 + $0x210] sm:$0xff]
  %v2928 = vld [vmem:[%s5 + $0x218] sm:$0xff]
  %v2929 = vld [vmem:[%s5 + $0x220] sm:$0xff]
  %v2930 = vld [vmem:[%s5 + $0x228] sm:$0xff]
  %v2931 = vld [vmem:[%s5 + $0x230] sm:$0xff]
  %v2932 = vld [vmem:[%s5 + $0x238] sm:$0xff]
  %v2933 = vld [vmem:[%s5 + $0x240] sm:$0xff]
  %v2934 = vld [vmem:[%s5 + $0x248] sm:$0xff]
  %v2935 = vld [vmem:[%s5 + $0x250] sm:$0xff]
  %v2936 = vld [vmem:[%s5 + $0x258] sm:$0xff]
  %v2937 = vld [vmem:[%s5 + $0x260] sm:$0xff]
  %v2938 = vld [vmem:[%s5 + $0x268] sm:$0xff]
  %v2939 = vld [vmem:[%s5 + $0x270] sm:$0xff]
  %v2940 = vld [vmem:[%s5 + $0x278] sm:$0xff]
  %v2941 = vld [vmem:[%s5 + $0x280] sm:$0xff]
  %v2942 = vld [vmem:[%s5 + $0x288] sm:$0xff]
  %v2943 = vld [vmem:[%s5 + $0x290] sm:$0xff]
  %v2944 = vld [vmem:[%s5 + $0x298] sm:$0xff]
  %v2945 = vld [vmem:[%s5 + $0x2a0] sm:$0xff]
  %v2946 = vld [vmem:[%s5 + $0x2a8] sm:$0xff]
  %v2947 = vld [vmem:[%s5 + $0x2b0] sm:$0xff]
  %v2948 = vld [vmem:[%s5 + $0x2b8] sm:$0xff]
  %v2949 = vld [vmem:[%s5 + $0x2c0] sm:$0xff]
  %v2950 = vld [vmem:[%s5 + $0x2c8] sm:$0xff]
  %v2951 = vld [vmem:[%s5 + $0x2d0] sm:$0xff]
  %v2952 = vld [vmem:[%s5 + $0x2d8] sm:$0xff]
  %v2953 = vld [vmem:[%s5 + $0x2e0] sm:$0xff]
  %v2954 = vld [vmem:[%s5 + $0x2e8] sm:$0xff]
  %v2955 = vld [vmem:[%s5 + $0x2f0] sm:$0xff]
  %v2956 = vld [vmem:[%s5 + $0x2f8] sm:$0xff]
  %v2957 = vld [vmem:[%s5 + $0x300] sm:$0xff]
  %v2958 = vld [vmem:[%s5 + $0x308] sm:$0xff]
  %v2959 = vld [vmem:[%s5 + $0x310] sm:$0xff]
  %v2960 = vld [vmem:[%s5 + $0x318] sm:$0xff]
  %v2961 = vld [vmem:[%s5 + $0x320] sm:$0xff]
  %v2962 = vld [vmem:[%s5 + $0x328] sm:$0xff]
  %v2963 = vld [vmem:[%s5 + $0x330] sm:$0xff]
  %v2964 = vld [vmem:[%s5 + $0x338] sm:$0xff]
  %v2965 = vld [vmem:[%s5 + $0x340] sm:$0xff]
  %v2966 = vld [vmem:[%s5 + $0x348] sm:$0xff]
  %v2967 = vld [vmem:[%s5 + $0x350] sm:$0xff]
  %v2968 = vld [vmem:[%s5 + $0x358] sm:$0xff]
  %v2969 = vld [vmem:[%s5 + $0x360] sm:$0xff]
  %v2970 = vld [vmem:[%s5 + $0x368] sm:$0xff]
  %v2971 = vld [vmem:[%s5 + $0x370] sm:$0xff]
  %v2972 = vld [vmem:[%s5 + $0x378] sm:$0xff]
  %v2973 = vld [vmem:[%s5 + $0x380] sm:$0xff]
  %v2974 = vld [vmem:[%s5 + $0x388] sm:$0xff]
  %v2975 = vld [vmem:[%s5 + $0x390] sm:$0xff]
  %v2976 = vld [vmem:[%s5 + $0x398] sm:$0xff]
  %v2977 = vld [vmem:[%s5 + $0x3a0] sm:$0xff]
  %v2978 = vld [vmem:[%s5 + $0x3a8] sm:$0xff]
  %v2979 = vld [vmem:[%s5 + $0x3b0] sm:$0xff]
  %v2980 = vld [vmem:[%s5 + $0x3b8] sm:$0xff]
  %v2981 = vld [vmem:[%s5 + $0x3c0] sm:$0xff]
  %v2982 = vld [vmem:[%s5 + $0x3c8] sm:$0xff]
  %v2983 = vld [vmem:[%s5 + $0x3d0] sm:$0xff]
  %v2984 = vld [vmem:[%s5 + $0x3d8] sm:$0xff]
  %v2985 = vld [vmem:[%s5 + $0x3e0] sm:$0xff]
  %v2986 = vld [vmem:[%s5 + $0x3e8] sm:$0xff]
  %v2987 = vld [vmem:[%s5 + $0x3f0] sm:$0xff]
  %v2988 = vld [vmem:[%s5 + $0x3f8] sm:$0xff]
  %v2989 = vld [vmem:[%s5 + $0x400] sm:$0xff]
  %v2990 = vld [vmem:[%s5 + $0x408] sm:$0xff]
  %v2991 = vld [vmem:[%s5 + $0x410] sm:$0xff]
  %v2992 = vld [vmem:[%s5 + $0x418] sm:$0xff]
  %v2993 = vld [vmem:[%s5 + $0x420] sm:$0xff]
  %v2994 = vld [vmem:[%s5 + $0x428] sm:$0xff]
  %v2995 = vld [vmem:[%s5 + $0x430] sm:$0xff]
  %v2996 = vld [vmem:[%s5 + $0x438] sm:$0xff]
  %v2997 = vld [vmem:[%s5 + $0x440] sm:$0xff]
  %v2998 = vld [vmem:[%s5 + $0x448] sm:$0xff]
  %v2999 = vld [vmem:[%s5 + $0x450] sm:$0xff]
  %v3000 = vld [vmem:[%s5 + $0x458] sm:$0xff]
  %v3001 = vld [vmem:[%s5 + $0x460] sm:$0xff]
  %v3002 = vld [vmem:[%s5 + $0x468] sm:$0xff]
  %v3003 = vld [vmem:[%s5 + $0x470] sm:$0xff]
  %v3004 = vld [vmem:[%s5 + $0x478] sm:$0xff]
  %v3005 = vld [vmem:[%s5 + $0x480] sm:$0xff]
  %v3006 = vld [vmem:[%s5 + $0x488] sm:$0xff]
  %v3007 = vld [vmem:[%s5 + $0x490] sm:$0xff]
  %v3008 = vld [vmem:[%s5 + $0x498] sm:$0xff]
  %v3009 = vld [vmem:[%s5 + $0x4a0] sm:$0xff]
  %v3010 = vld [vmem:[%s5 + $0x4a8] sm:$0xff]
  %v3011 = vld [vmem:[%s5 + $0x4b0] sm:$0xff]
  %v3012 = vld [vmem:[%s5 + $0x4b8] sm:$0xff]
  %v3013 = vld [vmem:[%s5 + $0x4c0] sm:$0xff]
  %v3014 = vld [vmem:[%s5 + $0x4c8] sm:$0xff]
  %v3015 = vld [vmem:[%s5 + $0x4d0] sm:$0xff]
  %v3016 = vld [vmem:[%s5 + $0x4d8] sm:$0xff]
  %v3017 = vld [vmem:[%s5 + $0x4e0] sm:$0xff]
  %v3018 = vld [vmem:[%s5 + $0x4e8] sm:$0xff]
  %v3019 = vld [vmem:[%s5 + $0x4f0] sm:$0xff]
  %v3020 = vld [vmem:[%s5 + $0x4f8] sm:$0xff]
  %v3021 = vld [vmem:[%s5 + $0x500] sm:$0xff]
  %v3022 = vld [vmem:[%s5 + $0x508] sm:$0xff]
  %v3023 = vld [vmem:[%s5 + $0x510] sm:$0xff]
  %v3024 = vld [vmem:[%s5 + $0x518] sm:$0xff]
  %v3025 = vld [vmem:[%s5 + $0x520] sm:$0xff]
  %v3026 = vld [vmem:[%s5 + $0x528] sm:$0xff]
  %v3027 = vld [vmem:[%s5 + $0x530] sm:$0xff]
  %v3028 = vld [vmem:[%s5 + $0x538] sm:$0xff]
  %v3029 = vld [vmem:[%s5 + $0x540] sm:$0xff]
  %v3030 = vld [vmem:[%s5 + $0x548] sm:$0xff]
  %v3031 = vld [vmem:[%s5 + $0x550] sm:$0xff]
  %v3032 = vld [vmem:[%s5 + $0x558] sm:$0xff]
  %v3033 = vld [vmem:[%s5 + $0x560] sm:$0xff]
  %v3034 = vld [vmem:[%s5 + $0x568] sm:$0xff]
  %v3035 = vld [vmem:[%s5 + $0x570] sm:$0xff]
  %v3036 = vld [vmem:[%s5 + $0x578] sm:$0xff]
  %v3037 = vld [vmem:[%s5 + $0x580] sm:$0xff]
  %v3038 = vld [vmem:[%s5 + $0x588] sm:$0xff]
  %v3039 = vld [vmem:[%s5 + $0x590] sm:$0xff]
  %v3040 = vld [vmem:[%s5 + $0x598] sm:$0xff]
  %v3041 = vld [vmem:[%s5 + $0x5a0] sm:$0xff]
  %v3042 = vld [vmem:[%s5 + $0x5a8] sm:$0xff]
  %v3043 = vld [vmem:[%s5 + $0x5b0] sm:$0xff]
  %v3044 = vld [vmem:[%s5 + $0x5b8] sm:$0xff]
  %v3045 = vld [vmem:[%s5 + $0x5c0] sm:$0xff]
  %v3046 = vld [vmem:[%s5 + $0x5c8] sm:$0xff]
  %v3047 = vld [vmem:[%s5 + $0x5d0] sm:$0xff]
  %v3048 = vld [vmem:[%s5 + $0x5d8] sm:$0xff]
  %v3049 = vld [vmem:[%s5 + $0x5e0] sm:$0xff]
  %v3050 = vld [vmem:[%s5 + $0x5e8] sm:$0xff]
  %v3051 = vld [vmem:[%s5 + $0x5f0] sm:$0xff]
  %v3052 = vld [vmem:[%s5 + $0x5f8] sm:$0xff]
  %v3053 = vld [vmem:[%s5 + $0x600] sm:$0xff]
  %v3054 = vld [vmem:[%s5 + $0x608] sm:$0xff]
  %v3055 = vld [vmem:[%s5 + $0x610] sm:$0xff]
  %v3056 = vld [vmem:[%s5 + $0x618] sm:$0xff]
  %v3057 = vld [vmem:[%s5 + $0x620] sm:$0xff]
  %v3058 = vld [vmem:[%s5 + $0x628] sm:$0xff]
  %v3059 = vld [vmem:[%s5 + $0x630] sm:$0xff]
  %v3060 = vld [vmem:[%s5 + $0x638] sm:$0xff]
  %v3061 = vld [vmem:[%s5 + $0x640] sm:$0xff]
  %v3062 = vld [vmem:[%s5 + $0x648] sm:$0xff]
  %v3063 = vld [vmem:[%s5 + $0x650] sm:$0xff]
  %v3064 = vld [vmem:[%s5 + $0x658] sm:$0xff]
  %v3065 = vld [vmem:[%s5 + $0x660] sm:$0xff]
  %v3066 = vld [vmem:[%s5 + $0x668] sm:$0xff]
  %v3067 = vld [vmem:[%s5 + $0x670] sm:$0xff]
  %v3068 = vld [vmem:[%s5 + $0x678] sm:$0xff]
  %v3069 = vld [vmem:[%s5 + $0x680] sm:$0xff]
  %v3070 = vld [vmem:[%s5 + $0x688] sm:$0xff]
  %v3071 = vld [vmem:[%s5 + $0x690] sm:$0xff]
  %v3072 = vld [vmem:[%s5 + $0x698] sm:$0xff]
  %v3073 = vld [vmem:[%s5 + $0x6a0] sm:$0xff]
  %v3074 = vld [vmem:[%s5 + $0x6a8] sm:$0xff]
  %v3075 = vld [vmem:[%s5 + $0x6b0] sm:$0xff]
  %v3076 = vld [vmem:[%s5 + $0x6b8] sm:$0xff]
  %v3077 = vld [vmem:[%s5 + $0x6c0] sm:$0xff]
  %v3078 = vld [vmem:[%s5 + $0x6c8] sm:$0xff]
  %v3079 = vld [vmem:[%s5 + $0x6d0] sm:$0xff]
  %v3080 = vld [vmem:[%s5 + $0x6d8] sm:$0xff]
  %v3081 = vld [vmem:[%s5 + $0x6e0] sm:$0xff]
  %v3082 = vld [vmem:[%s5 + $0x6e8] sm:$0xff]
  %v3083 = vld [vmem:[%s5 + $0x6f0] sm:$0xff]
  %v3084 = vld [vmem:[%s5 + $0x6f8] sm:$0xff]
  %v3085 = vld [vmem:[%s5 + $0x700] sm:$0xff]
  %v3086 = vld [vmem:[%s5 + $0x708] sm:$0xff]
  %v3087 = vld [vmem:[%s5 + $0x710] sm:$0xff]
  %v3088 = vld [vmem:[%s5 + $0x718] sm:$0xff]
  %v3089 = vld [vmem:[%s5 + $0x720] sm:$0xff]
  %v3090 = vld [vmem:[%s5 + $0x728] sm:$0xff]
  %v3091 = vld [vmem:[%s5 + $0x730] sm:$0xff]
  %v3092 = vld [vmem:[%s5 + $0x738] sm:$0xff]
  %v3093 = vld [vmem:[%s5 + $0x740] sm:$0xff]
  %v3094 = vld [vmem:[%s5 + $0x748] sm:$0xff]
  %v3095 = vld [vmem:[%s5 + $0x750] sm:$0xff]
  %v3096 = vld [vmem:[%s5 + $0x758] sm:$0xff]
  %v3097 = vld [vmem:[%s5 + $0x760] sm:$0xff]
  %v3098 = vld [vmem:[%s5 + $0x768] sm:$0xff]
  %v3099 = vld [vmem:[%s5 + $0x770] sm:$0xff]
  %v3100 = vld [vmem:[%s5 + $0x778] sm:$0xff]
  %v3101 = vld [vmem:[%s5 + $0x780] sm:$0xff]
  %v3102 = vld [vmem:[%s5 + $0x788] sm:$0xff]
  %v3103 = vld [vmem:[%s5 + $0x790] sm:$0xff]
  %v3104 = vld [vmem:[%s5 + $0x798] sm:$0xff]
  %v3105 = vld [vmem:[%s5 + $0x7a0] sm:$0xff]
  %v3106 = vld [vmem:[%s5 + $0x7a8] sm:$0xff]
  %v3107 = vld [vmem:[%s5 + $0x7b0] sm:$0xff]
  %v3108 = vld [vmem:[%s5 + $0x7b8] sm:$0xff]
  %v3109 = vld [vmem:[%s5 + $0x7c0] sm:$0xff]
  %v3110 = vld [vmem:[%s5 + $0x7c8] sm:$0xff]
  %v3111 = vld [vmem:[%s5 + $0x7d0] sm:$0xff]
  %v3112 = vld [vmem:[%s5 + $0x7d8] sm:$0xff]
  %v3113 = vld [vmem:[%s5 + $0x7e0] sm:$0xff]
  %v3114 = vld [vmem:[%s5 + $0x7e8] sm:$0xff]
  %v3115 = vld [vmem:[%s5 + $0x7f0] sm:$0xff]
  %v3116 = vld [vmem:[%s5 + $0x7f8] sm:$0xff]
  %v3117 = vld [vmem:[%s6] sm:$0xff]
  %v3118 = vld [vmem:[%s6 + $0x8] sm:$0xff]
  %v3119 = vld [vmem:[%s6 + $0x10] sm:$0xff]
  %v3120 = vld [vmem:[%s6 + $0x18] sm:$0xff]
  %v3121 = vld [vmem:[%s6 + $0x20] sm:$0xff]
  %v3122 = vld [vmem:[%s6 + $0x28] sm:$0xff]
  %v3123 = vld [vmem:[%s6 + $0x30] sm:$0xff]
  %v3124 = vld [vmem:[%s6 + $0x38] sm:$0xff]
  %v3125 = vld [vmem:[%s6 + $0x40] sm:$0xff]
  %v3126 = vld [vmem:[%s6 + $0x48] sm:$0xff]
  %v3127 = vld [vmem:[%s6 + $0x50] sm:$0xff]
  %v3128 = vld [vmem:[%s6 + $0x58] sm:$0xff]
  %v3129 = vld [vmem:[%s6 + $0x60] sm:$0xff]
  %v3130 = vld [vmem:[%s6 + $0x68] sm:$0xff]
  %v3131 = vld [vmem:[%s6 + $0x70] sm:$0xff]
  %v3132 = vld [vmem:[%s6 + $0x78] sm:$0xff]
  %v3133 = vld [vmem:[%s6 + $0x80] sm:$0xff]
  %v3134 = vld [vmem:[%s6 + $0x88] sm:$0xff]
  %v3135 = vld [vmem:[%s6 + $0x90] sm:$0xff]
  %v3136 = vld [vmem:[%s6 + $0x98] sm:$0xff]
  %v3137 = vld [vmem:[%s6 + $0xa0] sm:$0xff]
  %v3138 = vld [vmem:[%s6 + $0xa8] sm:$0xff]
  %v3139 = vld [vmem:[%s6 + $0xb0] sm:$0xff]
  %v3140 = vld [vmem:[%s6 + $0xb8] sm:$0xff]
  %v3141 = vld [vmem:[%s6 + $0xc0] sm:$0xff]
  %v3142 = vld [vmem:[%s6 + $0xc8] sm:$0xff]
  %v3143 = vld [vmem:[%s6 + $0xd0] sm:$0xff]
  %v3144 = vld [vmem:[%s6 + $0xd8] sm:$0xff]
  %v3145 = vld [vmem:[%s6 + $0xe0] sm:$0xff]
  %v3146 = vld [vmem:[%s6 + $0xe8] sm:$0xff]
  %v3147 = vld [vmem:[%s6 + $0xf0] sm:$0xff]
  %v3148 = vld [vmem:[%s6 + $0xf8] sm:$0xff]
  %v3149 = vld [vmem:[%s6 + $0x100] sm:$0xff]
  %v3150 = vld [vmem:[%s6 + $0x108] sm:$0xff]
  %v3151 = vld [vmem:[%s6 + $0x110] sm:$0xff]
  %v3152 = vld [vmem:[%s6 + $0x118] sm:$0xff]
  %v3153 = vld [vmem:[%s6 + $0x120] sm:$0xff]
  %v3154 = vld [vmem:[%s6 + $0x128] sm:$0xff]
  %v3155 = vld [vmem:[%s6 + $0x130] sm:$0xff]
  %v3156 = vld [vmem:[%s6 + $0x138] sm:$0xff]
  %v3157 = vld [vmem:[%s6 + $0x140] sm:$0xff]
  %v3158 = vld [vmem:[%s6 + $0x148] sm:$0xff]
  %v3159 = vld [vmem:[%s6 + $0x150] sm:$0xff]
  %v3160 = vld [vmem:[%s6 + $0x158] sm:$0xff]
  %v3161 = vld [vmem:[%s6 + $0x160] sm:$0xff]
  %v3162 = vld [vmem:[%s6 + $0x168] sm:$0xff]
  %v3163 = vld [vmem:[%s6 + $0x170] sm:$0xff]
  %v3164 = vld [vmem:[%s6 + $0x178] sm:$0xff]
  %v3165 = vld [vmem:[%s6 + $0x180] sm:$0xff]
  %v3166 = vld [vmem:[%s6 + $0x188] sm:$0xff]
  %v3167 = vld [vmem:[%s6 + $0x190] sm:$0xff]
  %v3168 = vld [vmem:[%s6 + $0x198] sm:$0xff]
  %v3169 = vld [vmem:[%s6 + $0x1a0] sm:$0xff]
  %v3170 = vld [vmem:[%s6 + $0x1a8] sm:$0xff]
  %v3171 = vld [vmem:[%s6 + $0x1b0] sm:$0xff]
  %v3172 = vld [vmem:[%s6 + $0x1b8] sm:$0xff]
  %v3173 = vld [vmem:[%s6 + $0x1c0] sm:$0xff]
  %v3174 = vld [vmem:[%s6 + $0x1c8] sm:$0xff]
  %v3175 = vld [vmem:[%s6 + $0x1d0] sm:$0xff]
  %v3176 = vld [vmem:[%s6 + $0x1d8] sm:$0xff]
  %v3177 = vld [vmem:[%s6 + $0x1e0] sm:$0xff]
  %v3178 = vld [vmem:[%s6 + $0x1e8] sm:$0xff]
  %v3179 = vld [vmem:[%s6 + $0x1f0] sm:$0xff]
  %v3180 = vld [vmem:[%s6 + $0x1f8] sm:$0xff]
  %3182 = vset.pattern.permute.xlu0 0
  %3183 = vperm.xlu0 %3182, %v3117
  %v3184 = vpop.permute.xlu0 %3183
  %3187 = vset.pattern.permute.xlu0 0
  %3188 = vperm.xlu0 %3187, %v3118
  %v3189 = vpop.permute.xlu0 %3188
  %3192 = vset.pattern.permute.xlu0 0
  %3193 = vperm.xlu0 %3192, %v3119
  %v3194 = vpop.permute.xlu0 %3193
  %3197 = vset.pattern.permute.xlu0 0
  %3198 = vperm.xlu0 %3197, %v3120
  %v3199 = vpop.permute.xlu0 %3198
  %3202 = vset.pattern.permute.xlu0 0
  %3203 = vperm.xlu0 %3202, %v3121
  %v3204 = vpop.permute.xlu0 %3203
  %3207 = vset.pattern.permute.xlu0 0
  %3208 = vperm.xlu0 %3207, %v3122
  %v3209 = vpop.permute.xlu0 %3208
  %3212 = vset.pattern.permute.xlu0 0
  %3213 = vperm.xlu0 %3212, %v3123
  %v3214 = vpop.permute.xlu0 %3213
  %3217 = vset.pattern.permute.xlu0 0
  %3218 = vperm.xlu0 %3217, %v3124
  %v3219 = vpop.permute.xlu0 %3218
  %3222 = vset.pattern.permute.xlu0 0
  %3223 = vperm.xlu0 %3222, %v3125
  %v3224 = vpop.permute.xlu0 %3223
  %3227 = vset.pattern.permute.xlu0 0
  %3228 = vperm.xlu0 %3227, %v3126
  %v3229 = vpop.permute.xlu0 %3228
  %3232 = vset.pattern.permute.xlu0 0
  %3233 = vperm.xlu0 %3232, %v3127
  %v3234 = vpop.permute.xlu0 %3233
  %3237 = vset.pattern.permute.xlu0 0
  %3238 = vperm.xlu0 %3237, %v3128
  %v3239 = vpop.permute.xlu0 %3238
  %3242 = vset.pattern.permute.xlu0 0
  %3243 = vperm.xlu0 %3242, %v3129
  %v3244 = vpop.permute.xlu0 %3243
  %3247 = vset.pattern.permute.xlu0 0
  %3248 = vperm.xlu0 %3247, %v3130
  %v3249 = vpop.permute.xlu0 %3248
  %3252 = vset.pattern.permute.xlu0 0
  %3253 = vperm.xlu0 %3252, %v3131
  %v3254 = vpop.permute.xlu0 %3253
  %3257 = vset.pattern.permute.xlu0 0
  %3258 = vperm.xlu0 %3257, %v3132
  %v3259 = vpop.permute.xlu0 %3258
  %3262 = vset.pattern.permute.xlu0 0
  %3263 = vperm.xlu0 %3262, %v3133
  %v3264 = vpop.permute.xlu0 %3263
  %3267 = vset.pattern.permute.xlu0 0
  %3268 = vperm.xlu0 %3267, %v3134
  %v3269 = vpop.permute.xlu0 %3268
  %3272 = vset.pattern.permute.xlu0 0
  %3273 = vperm.xlu0 %3272, %v3135
  %v3274 = vpop.permute.xlu0 %3273
  %3277 = vset.pattern.permute.xlu0 0
  %3278 = vperm.xlu0 %3277, %v3136
  %v3279 = vpop.permute.xlu0 %3278
  %3282 = vset.pattern.permute.xlu0 0
  %3283 = vperm.xlu0 %3282, %v3137
  %v3284 = vpop.permute.xlu0 %3283
  %3287 = vset.pattern.permute.xlu0 0
  %3288 = vperm.xlu0 %3287, %v3138
  %v3289 = vpop.permute.xlu0 %3288
  %3292 = vset.pattern.permute.xlu0 0
  %3293 = vperm.xlu0 %3292, %v3139
  %v3294 = vpop.permute.xlu0 %3293
  %3297 = vset.pattern.permute.xlu0 0
  %3298 = vperm.xlu0 %3297, %v3140
  %v3299 = vpop.permute.xlu0 %3298
  %3302 = vset.pattern.permute.xlu0 0
  %3303 = vperm.xlu0 %3302, %v3141
  %v3304 = vpop.permute.xlu0 %3303
  %3307 = vset.pattern.permute.xlu0 0
  %3308 = vperm.xlu0 %3307, %v3142
  %v3309 = vpop.permute.xlu0 %3308
  %3312 = vset.pattern.permute.xlu0 0
  %3313 = vperm.xlu0 %3312, %v3143
  %v3314 = vpop.permute.xlu0 %3313
  %3317 = vset.pattern.permute.xlu0 0
  %3318 = vperm.xlu0 %3317, %v3144
  %v3319 = vpop.permute.xlu0 %3318
  %3322 = vset.pattern.permute.xlu0 0
  %3323 = vperm.xlu0 %3322, %v3145
  %v3324 = vpop.permute.xlu0 %3323
  %3327 = vset.pattern.permute.xlu0 0
  %3328 = vperm.xlu0 %3327, %v3146
  %v3329 = vpop.permute.xlu0 %3328
  %3332 = vset.pattern.permute.xlu0 0
  %3333 = vperm.xlu0 %3332, %v3147
  %v3334 = vpop.permute.xlu0 %3333
  %3337 = vset.pattern.permute.xlu0 0
  %3338 = vperm.xlu0 %3337, %v3148
  %v3339 = vpop.permute.xlu0 %3338
  %3342 = vset.pattern.permute.xlu0 0
  %3343 = vperm.xlu0 %3342, %v3149
  %v3344 = vpop.permute.xlu0 %3343
  %3347 = vset.pattern.permute.xlu0 0
  %3348 = vperm.xlu0 %3347, %v3150
  %v3349 = vpop.permute.xlu0 %3348
  %3352 = vset.pattern.permute.xlu0 0
  %3353 = vperm.xlu0 %3352, %v3151
  %v3354 = vpop.permute.xlu0 %3353
  %3357 = vset.pattern.permute.xlu0 0
  %3358 = vperm.xlu0 %3357, %v3152
  %v3359 = vpop.permute.xlu0 %3358
  %3362 = vset.pattern.permute.xlu0 0
  %3363 = vperm.xlu0 %3362, %v3153
  %v3364 = vpop.permute.xlu0 %3363
  %3367 = vset.pattern.permute.xlu0 0
  %3368 = vperm.xlu0 %3367, %v3154
  %v3369 = vpop.permute.xlu0 %3368
  %3372 = vset.pattern.permute.xlu0 0
  %3373 = vperm.xlu0 %3372, %v3155
  %v3374 = vpop.permute.xlu0 %3373
  %3377 = vset.pattern.permute.xlu0 0
  %3378 = vperm.xlu0 %3377, %v3156
  %v3379 = vpop.permute.xlu0 %3378
  %3382 = vset.pattern.permute.xlu0 0
  %3383 = vperm.xlu0 %3382, %v3157
  %v3384 = vpop.permute.xlu0 %3383
  %3387 = vset.pattern.permute.xlu0 0
  %3388 = vperm.xlu0 %3387, %v3158
  %v3389 = vpop.permute.xlu0 %3388
  %3392 = vset.pattern.permute.xlu0 0
  %3393 = vperm.xlu0 %3392, %v3159
  %v3394 = vpop.permute.xlu0 %3393
  %3397 = vset.pattern.permute.xlu0 0
  %3398 = vperm.xlu0 %3397, %v3160
  %v3399 = vpop.permute.xlu0 %3398
  %3402 = vset.pattern.permute.xlu0 0
  %3403 = vperm.xlu0 %3402, %v3161
  %v3404 = vpop.permute.xlu0 %3403
  %3407 = vset.pattern.permute.xlu0 0
  %3408 = vperm.xlu0 %3407, %v3162
  %v3409 = vpop.permute.xlu0 %3408
  %3412 = vset.pattern.permute.xlu0 0
  %3413 = vperm.xlu0 %3412, %v3163
  %v3414 = vpop.permute.xlu0 %3413
  %3417 = vset.pattern.permute.xlu0 0
  %3418 = vperm.xlu0 %3417, %v3164
  %v3419 = vpop.permute.xlu0 %3418
  %3422 = vset.pattern.permute.xlu0 0
  %3423 = vperm.xlu0 %3422, %v3165
  %v3424 = vpop.permute.xlu0 %3423
  %3427 = vset.pattern.permute.xlu0 0
  %3428 = vperm.xlu0 %3427, %v3166
  %v3429 = vpop.permute.xlu0 %3428
  %3432 = vset.pattern.permute.xlu0 0
  %3433 = vperm.xlu0 %3432, %v3167
  %v3434 = vpop.permute.xlu0 %3433
  %3437 = vset.pattern.permute.xlu0 0
  %3438 = vperm.xlu0 %3437, %v3168
  %v3439 = vpop.permute.xlu0 %3438
  %3442 = vset.pattern.permute.xlu0 0
  %3443 = vperm.xlu0 %3442, %v3169
  %v3444 = vpop.permute.xlu0 %3443
  %3447 = vset.pattern.permute.xlu0 0
  %3448 = vperm.xlu0 %3447, %v3170
  %v3449 = vpop.permute.xlu0 %3448
  %3452 = vset.pattern.permute.xlu0 0
  %3453 = vperm.xlu0 %3452, %v3171
  %v3454 = vpop.permute.xlu0 %3453
  %3457 = vset.pattern.permute.xlu0 0
  %3458 = vperm.xlu0 %3457, %v3172
  %v3459 = vpop.permute.xlu0 %3458
  %3462 = vset.pattern.permute.xlu0 0
  %3463 = vperm.xlu0 %3462, %v3173
  %v3464 = vpop.permute.xlu0 %3463
  %3467 = vset.pattern.permute.xlu0 0
  %3468 = vperm.xlu0 %3467, %v3174
  %v3469 = vpop.permute.xlu0 %3468
  %3472 = vset.pattern.permute.xlu0 0
  %3473 = vperm.xlu0 %3472, %v3175
  %v3474 = vpop.permute.xlu0 %3473
  %3477 = vset.pattern.permute.xlu0 0
  %3478 = vperm.xlu0 %3477, %v3176
  %v3479 = vpop.permute.xlu0 %3478
  %3482 = vset.pattern.permute.xlu0 0
  %3483 = vperm.xlu0 %3482, %v3177
  %v3484 = vpop.permute.xlu0 %3483
  %3487 = vset.pattern.permute.xlu0 0
  %3488 = vperm.xlu0 %3487, %v3178
  %v3489 = vpop.permute.xlu0 %3488
  %3492 = vset.pattern.permute.xlu0 0
  %3493 = vperm.xlu0 %3492, %v3179
  %v3494 = vpop.permute.xlu0 %3493
  %3497 = vset.pattern.permute.xlu0 0
  %3498 = vperm.xlu0 %3497, %v3180
  %v3499 = vpop.permute.xlu0 %3498
  %3501 = vmatprep.subr.mxu0 0.0
  %3502 = vmatpush1.msra.mxu0 %v2797
  %3503 = vmatprep.subr.mxu0 0.0
  %3504 = vmatpush1.msra.mxu0 %v2798
  %3505 = vmatprep.subr.mxu0 0.0
  %3506 = vmatpush1.msra.mxu0 %v2799
  %3507 = vmatprep.subr.mxu0 0.0
  %3508 = vmatpush1.msra.mxu0 %v2800
  %3509 = vmatprep.subr.mxu0 0.0
  %3510 = vmatpush1.msra.mxu0 %v2801
  %3511 = vmatprep.subr.mxu0 0.0
  %3512 = vmatpush1.msra.mxu0 %v2802
  %3513 = vmatprep.subr.mxu0 0.0
  %3514 = vmatpush1.msra.mxu0 %v2803
  %3515 = vmatprep.subr.mxu0 0.0
  %3516 = vmatpush1.msra.mxu0 %v2804
  %3517 = vmatprep.subr.mxu0 0.0
  %3518 = vmatpush1.msra.mxu0 %v2805
  %3519 = vmatprep.subr.mxu0 0.0
  %3520 = vmatpush1.msra.mxu0 %v2806
  %3521 = vmatprep.subr.mxu0 0.0
  %3522 = vmatpush1.msra.mxu0 %v2807
  %3523 = vmatprep.subr.mxu0 0.0
  %3524 = vmatpush1.msra.mxu0 %v2808
  %3525 = vmatprep.subr.mxu0 0.0
  %3526 = vmatpush1.msra.mxu0 %v2809
  %3527 = vmatprep.subr.mxu0 0.0
  %3528 = vmatpush1.msra.mxu0 %v2810
  %3529 = vmatprep.subr.mxu0 0.0
  %3530 = vmatpush1.msra.mxu0 %v2811
  %3531 = vmatprep.subr.mxu0 0.0
  %3532 = vmatpush1.msra.mxu0 %v2812
  %3533 = vmatprep.subr.mxu0 0.0
  %3534 = vmatpush1.msra.mxu0 %v2813
  %3535 = vmatprep.subr.mxu0 0.0
  %3536 = vmatpush1.msra.mxu0 %v2814
  %3537 = vmatprep.subr.mxu0 0.0
  %3538 = vmatpush1.msra.mxu0 %v2815
  %3539 = vmatprep.subr.mxu0 0.0
  %3540 = vmatpush1.msra.mxu0 %v2816
  %3541 = vmatprep.subr.mxu0 0.0
  %3542 = vmatpush1.msra.mxu0 %v2817
  %3543 = vmatprep.subr.mxu0 0.0
  %3544 = vmatpush1.msra.mxu0 %v2818
  %3545 = vmatprep.subr.mxu0 0.0
  %3546 = vmatpush1.msra.mxu0 %v2819
  %3547 = vmatprep.subr.mxu0 0.0
  %3548 = vmatpush1.msra.mxu0 %v2820
  %3549 = vmatprep.subr.mxu0 0.0
  %3550 = vmatpush1.msra.mxu0 %v2821
  %3551 = vmatprep.subr.mxu0 0.0
  %3552 = vmatpush1.msra.mxu0 %v2822
  %3553 = vmatprep.subr.mxu0 0.0
  %3554 = vmatpush1.msra.mxu0 %v2823
  %3555 = vmatprep.subr.mxu0 0.0
  %3556 = vmatpush1.msra.mxu0 %v2824
  %3557 = vmatprep.subr.mxu0 0.0
  %3558 = vmatpush1.msra.mxu0 %v2825
  %3559 = vmatprep.subr.mxu0 0.0
  %3560 = vmatpush1.msra.mxu0 %v2826
  %3561 = vmatprep.subr.mxu0 0.0
  %3562 = vmatpush1.msra.mxu0 %v2827
  %3563 = vmatprep.subr.mxu0 0.0
  %3564 = vmatpush1.msra.mxu0 %v2828
  %3565 = vmatprep.mubr.f32.mxu0 %v2862
  %3566 = vmatmul.mubr.f32.gmra.mrb[0].mxu0 %v2861
  %v3567 = vpop.f32.mrb[0].mxu0
  %v3568 = vadd.f32 %v3184, %v3567
  %v3569 = vpop.f32.mrb[0].mxu0
  %3570 = vmatprep.mubr.f32.mxu0 %v2866
  %3571 = vmatmul.mubr.f32.gmra.mrb[0].mxu0 %v2865
  %v3572 = vpop.f32.mrb[0].mxu0
  %v3573 = vadd.f32 %v3189, %v3572
  %v3574 = vpop.f32.mrb[0].mxu0
  %3575 = vmatprep.mubr.f32.mxu0 %v2870
  %3576 = vmatmul.mubr.f32.gmra.mrb[0].mxu0 %v2869
  %v3577 = vpop.f32.mrb[0].mxu0
  %v3578 = vadd.f32 %v3194, %v3577
  %v3579 = vpop.f32.mrb[0].mxu0
  %3580 = vmatprep.mubr.f32.mxu0 %v2874
  %3581 = vmatmul.mubr.f32.gmra.mrb[0].mxu0 %v2873
  %v3582 = vpop.f32.mrb[0].mxu0
  %v3583 = vadd.f32 %v3199, %v3582
  %v3584 = vpop.f32.mrb[0].mxu0
  %3585 = vmatprep.mubr.f32.mxu0 %v2878
  %3586 = vmatmul.mubr.f32.gmra.mrb[0].mxu0 %v2877
  %v3587 = vpop.f32.mrb[0].mxu0
  %v3588 = vadd.f32 %v3204, %v3587
  %v3589 = vpop.f32.mrb[0].mxu0
  %3590 = vmatprep.mubr.f32.mxu0 %v2882
  %3591 = vmatmul.mubr.f32.gmra.mrb[0].mxu0 %v2881
  %v3592 = vpop.f32.mrb[0].mxu0
  %v3593 = vadd.f32 %v3209, %v3592
  %v3594 = vpop.f32.mrb[0].mxu0
  %3595 = vmatprep.mubr.f32.mxu0 %v2886
  %3596 = vmatmul.mubr.f32.gmra.mrb[0].mxu0 %v2885
  %v3597 = vpop.f32.mrb[0].mxu0
  %v3598 = vadd.f32 %v3214, %v3597
  %v3599 = vpop.f32.mrb[0].mxu0
  %3600 = vmatprep.mubr.f32.mxu0 %v2890
  %3601 = vmatmul.mubr.f32.gmra.mrb[0].mxu0 %v2889
  %v3602 = vpop.f32.mrb[0].mxu0
  %v3603 = vadd.f32 %v3219, %v3602
  %v3604 = vpop.f32.mrb[0].mxu0
  %3605 = vmatprep.mubr.f32.mxu0 %v2894
  %3606 = vmatmul.mubr.f32.gmra.mrb[0].mxu0 %v2893
  %v3607 = vpop.f32.mrb[0].mxu0
  %v3608 = vadd.f32 %v3224, %v3607
  %v3609 = vpop.f32.mrb[0].mxu0
  %3610 = vmatprep.mubr.f32.mxu0 %v2898
  %3611 = vmatmul.mubr.f32.gmra.mrb[0].mxu0 %v2897
  %v3612 = vpop.f32.mrb[0].mxu0
  %v3613 = vadd.f32 %v3229, %v3612
  %v3614 = vpop.f32.mrb[0].mxu0
  %3615 = vmatprep.mubr.f32.mxu0 %v2902
  %3616 = vmatmul.mubr.f32.gmra.mrb[0].mxu0 %v2901
  %v3617 = vpop.f32.mrb[0].mxu0
  %v3618 = vadd.f32 %v3234, %v3617
  %v3619 = vpop.f32.mrb[0].mxu0
  %3620 = vmatprep.mubr.f32.mxu0 %v2906
  %3621 = vmatmul.mubr.f32.gmra.mrb[0].mxu0 %v2905
  %v3622 = vpop.f32.mrb[0].mxu0
  %v3623 = vadd.f32 %v3239, %v3622
  %v3624 = vpop.f32.mrb[0].mxu0
  %3625 = vmatprep.mubr.f32.mxu0 %v2910
  %3626 = vmatmul.mubr.f32.gmra.mrb[0].mxu0 %v2909
  %v3627 = vpop.f32.mrb[0].mxu0
  %v3628 = vadd.f32 %v3244, %v3627
  %v3629 = vpop.f32.mrb[0].mxu0
  %3630 = vmatprep.mubr.f32.mxu0 %v2914
  %3631 = vmatmul.mubr.f32.gmra.mrb[0].mxu0 %v2913
  %v3632 = vpop.f32.mrb[0].mxu0
  %v3633 = vadd.f32 %v3249, %v3632
  %v3634 = vpop.f32.mrb[0].mxu0
  %3635 = vmatprep.mubr.f32.mxu0 %v2918
  %3636 = vmatmul.mubr.f32.gmra.mrb[0].mxu0 %v2917
  %v3637 = vpop.f32.mrb[0].mxu0
  %v3638 = vadd.f32 %v3254, %v3637
  %v3639 = vpop.f32.mrb[0].mxu0
  %3640 = vmatprep.mubr.f32.mxu0 %v2922
  %3641 = vmatmul.mubr.f32.gmra.mrb[0].mxu0 %v2921
  %v3642 = vpop.f32.mrb[0].mxu0
  %v3643 = vadd.f32 %v3259, %v3642
  %v3644 = vpop.f32.mrb[0].mxu0
  %3645 = vmatprep.mubr.f32.mxu0 %v2926
  %3646 = vmatmul.mubr.f32.gmra.mrb[0].mxu0 %v2925
  %v3647 = vpop.f32.mrb[0].mxu0
  %v3648 = vadd.f32 %v3264, %v3647
  %v3649 = vpop.f32.mrb[0].mxu0
  %3650 = vmatprep.mubr.f32.mxu0 %v2930
  %3651 = vmatmul.mubr.f32.gmra.mrb[0].mxu0 %v2929
  %v3652 = vpop.f32.mrb[0].mxu0
  %v3653 = vadd.f32 %v3269, %v3652
  %v3654 = vpop.f32.mrb[0].mxu0
  %3655 = vmatprep.mubr.f32.mxu0 %v2934
  %3656 = vmatmul.mubr.f32.gmra.mrb[0].mxu0 %v2933
  %v3657 = vpop.f32.mrb[0].mxu0
  %v3658 = vadd.f32 %v3274, %v3657
  %v3659 = vpop.f32.mrb[0].mxu0
  %3660 = vmatprep.mubr.f32.mxu0 %v2938
  %3661 = vmatmul.mubr.f32.gmra.mrb[0].mxu0 %v2937
  %v3662 = vpop.f32.mrb[0].mxu0
  %v3663 = vadd.f32 %v3279, %v3662
  %v3664 = vpop.f32.mrb[0].mxu0
  %3665 = vmatprep.mubr.f32.mxu0 %v2942
  %3666 = vmatmul.mubr.f32.gmra.mrb[0].mxu0 %v2941
  %v3667 = vpop.f32.mrb[0].mxu0
  %v3668 = vadd.f32 %v3284, %v3667
  %v3669 = vpop.f32.mrb[0].mxu0
  %3670 = vmatprep.mubr.f32.mxu0 %v2946
  %3671 = vmatmul.mubr.f32.gmra.mrb[0].mxu0 %v2945
  %v3672 = vpop.f32.mrb[0].mxu0
  %v3673 = vadd.f32 %v3289, %v3672
  %v3674 = vpop.f32.mrb[0].mxu0
  %3675 = vmatprep.mubr.f32.mxu0 %v2950
  %3676 = vmatmul.mubr.f32.gmra.mrb[0].mxu0 %v2949
  %v3677 = vpop.f32.mrb[0].mxu0
  %v3678 = vadd.f32 %v3294, %v3677
  %v3679 = vpop.f32.mrb[0].mxu0
  %3680 = vmatprep.mubr.f32.mxu0 %v2954
  %3681 = vmatmul.mubr.f32.gmra.mrb[0].mxu0 %v2953
  %v3682 = vpop.f32.mrb[0].mxu0
  %v3683 = vadd.f32 %v3299, %v3682
  %v3684 = vpop.f32.mrb[0].mxu0
  %3685 = vmatprep.mubr.f32.mxu0 %v2958
  %3686 = vmatmul.mubr.f32.gmra.mrb[0].mxu0 %v2957
  %v3687 = vpop.f32.mrb[0].mxu0
  %v3688 = vadd.f32 %v3304, %v3687
  %v3689 = vpop.f32.mrb[0].mxu0
  %3690 = vmatprep.mubr.f32.mxu0 %v2962
  %3691 = vmatmul.mubr.f32.gmra.mrb[0].mxu0 %v2961
  %v3692 = vpop.f32.mrb[0].mxu0
  %v3693 = vadd.f32 %v3309, %v3692
  %v3694 = vpop.f32.mrb[0].mxu0
  %3695 = vmatprep.mubr.f32.mxu0 %v2966
  %3696 = vmatmul.mubr.f32.gmra.mrb[0].mxu0 %v2965
  %v3697 = vpop.f32.mrb[0].mxu0
  %v3698 = vadd.f32 %v3314, %v3697
  %v3699 = vpop.f32.mrb[0].mxu0
  %3700 = vmatprep.mubr.f32.mxu0 %v2970
  %3701 = vmatmul.mubr.f32.gmra.mrb[0].mxu0 %v2969
  %v3702 = vpop.f32.mrb[0].mxu0
  %v3703 = vadd.f32 %v3319, %v3702
  %v3704 = vpop.f32.mrb[0].mxu0
  %3705 = vmatprep.mubr.f32.mxu0 %v2974
  %3706 = vmatmul.mubr.f32.gmra.mrb[0].mxu0 %v2973
  %v3707 = vpop.f32.mrb[0].mxu0
  %v3708 = vadd.f32 %v3324, %v3707
  %v3709 = vpop.f32.mrb[0].mxu0
  %3710 = vmatprep.mubr.f32.mxu0 %v2978
  %3711 = vmatmul.mubr.f32.gmra.mrb[0].mxu0 %v2977
  %v3712 = vpop.f32.mrb[0].mxu0
  %v3713 = vadd.f32 %v3329, %v3712
  %v3714 = vpop.f32.mrb[0].mxu0
  %3715 = vmatprep.mubr.f32.mxu0 %v2982
  %3716 = vmatmul.mubr.f32.gmra.mrb[0].mxu0 %v2981
  %v3717 = vpop.f32.mrb[0].mxu0
  %v3718 = vadd.f32 %v3334, %v3717
  %v3719 = vpop.f32.mrb[0].mxu0
  %3720 = vmatprep.mubr.f32.mxu0 %v2986
  %3721 = vmatmul.mubr.f32.gmra.mrb[0].mxu0 %v2985
  %v3722 = vpop.f32.mrb[0].mxu0
  %v3723 = vadd.f32 %v3339, %v3722
  %v3724 = vpop.f32.mrb[0].mxu0
  %3725 = vmatprep.mubr.f32.mxu0 %v2990
  %3726 = vmatmul.mubr.f32.gmra.mrb[0].mxu0 %v2989
  %v3727 = vpop.f32.mrb[0].mxu0
  %v3728 = vadd.f32 %v3344, %v3727
  %v3729 = vpop.f32.mrb[0].mxu0
  %3730 = vmatprep.mubr.f32.mxu0 %v2994
  %3731 = vmatmul.mubr.f32.gmra.mrb[0].mxu0 %v2993
  %v3732 = vpop.f32.mrb[0].mxu0
  %v3733 = vadd.f32 %v3349, %v3732
  %v3734 = vpop.f32.mrb[0].mxu0
  %3735 = vmatprep.mubr.f32.mxu0 %v2998
  %3736 = vmatmul.mubr.f32.gmra.mrb[0].mxu0 %v2997
  %v3737 = vpop.f32.mrb[0].mxu0
  %v3738 = vadd.f32 %v3354, %v3737
  %v3739 = vpop.f32.mrb[0].mxu0
  %3740 = vmatprep.mubr.f32.mxu0 %v3002
  %3741 = vmatmul.mubr.f32.gmra.mrb[0].mxu0 %v3001
  %v3742 = vpop.f32.mrb[0].mxu0
  %v3743 = vadd.f32 %v3359, %v3742
  %v3744 = vpop.f32.mrb[0].mxu0
  %3745 = vmatprep.mubr.f32.mxu0 %v3006
  %3746 = vmatmul.mubr.f32.gmra.mrb[0].mxu0 %v3005
  %v3747 = vpop.f32.mrb[0].mxu0
  %v3748 = vadd.f32 %v3364, %v3747
  %v3749 = vpop.f32.mrb[0].mxu0
  %3750 = vmatprep.mubr.f32.mxu0 %v3010
  %3751 = vmatmul.mubr.f32.gmra.mrb[0].mxu0 %v3009
  %v3752 = vpop.f32.mrb[0].mxu0
  %v3753 = vadd.f32 %v3369, %v3752
  %v3754 = vpop.f32.mrb[0].mxu0
  %3755 = vmatprep.mubr.f32.mxu0 %v3014
  %3756 = vmatmul.mubr.f32.gmra.mrb[0].mxu0 %v3013
  %v3757 = vpop.f32.mrb[0].mxu0
  %v3758 = vadd.f32 %v3374, %v3757
  %v3759 = vpop.f32.mrb[0].mxu0
  %3760 = vmatprep.mubr.f32.mxu0 %v3018
  %3761 = vmatmul.mubr.f32.gmra.mrb[0].mxu0 %v3017
  %v3762 = vpop.f32.mrb[0].mxu0
  %v3763 = vadd.f32 %v3379, %v3762
  %v3764 = vpop.f32.mrb[0].mxu0
  %3765 = vmatprep.mubr.f32.mxu0 %v3022
  %3766 = vmatmul.mubr.f32.gmra.mrb[0].mxu0 %v3021
  %v3767 = vpop.f32.mrb[0].mxu0
  %v3768 = vadd.f32 %v3384, %v3767
  %v3769 = vpop.f32.mrb[0].mxu0
  %3770 = vmatprep.mubr.f32.mxu0 %v3026
  %3771 = vmatmul.mubr.f32.gmra.mrb[0].mxu0 %v3025
  %v3772 = vpop.f32.mrb[0].mxu0
  %v3773 = vadd.f32 %v3389, %v3772
  %v3774 = vpop.f32.mrb[0].mxu0
  %3775 = vmatprep.mubr.f32.mxu0 %v3030
  %3776 = vmatmul.mubr.f32.gmra.mrb[0].mxu0 %v3029
  %v3777 = vpop.f32.mrb[0].mxu0
  %v3778 = vadd.f32 %v3394, %v3777
  %v3779 = vpop.f32.mrb[0].mxu0
  %3780 = vmatprep.mubr.f32.mxu0 %v3034
  %3781 = vmatmul.mubr.f32.gmra.mrb[0].mxu0 %v3033
  %v3782 = vpop.f32.mrb[0].mxu0
  %v3783 = vadd.f32 %v3399, %v3782
  %v3784 = vpop.f32.mrb[0].mxu0
  %3785 = vmatprep.mubr.f32.mxu0 %v3038
  %3786 = vmatmul.mubr.f32.gmra.mrb[0].mxu0 %v3037
  %v3787 = vpop.f32.mrb[0].mxu0
  %v3788 = vadd.f32 %v3404, %v3787
  %v3789 = vpop.f32.mrb[0].mxu0
  %3790 = vmatprep.mubr.f32.mxu0 %v3042
  %3791 = vmatmul.mubr.f32.gmra.mrb[0].mxu0 %v3041
  %v3792 = vpop.f32.mrb[0].mxu0
  %v3793 = vadd.f32 %v3409, %v3792
  %v3794 = vpop.f32.mrb[0].mxu0
  %3795 = vmatprep.mubr.f32.mxu0 %v3046
  %3796 = vmatmul.mubr.f32.gmra.mrb[0].mxu0 %v3045
  %v3797 = vpop.f32.mrb[0].mxu0
  %v3798 = vadd.f32 %v3414, %v3797
  %v3799 = vpop.f32.mrb[0].mxu0
  %3800 = vmatprep.mubr.f32.mxu0 %v3050
  %3801 = vmatmul.mubr.f32.gmra.mrb[0].mxu0 %v3049
  %v3802 = vpop.f32.mrb[0].mxu0
  %v3803 = vadd.f32 %v3419, %v3802
  %v3804 = vpop.f32.mrb[0].mxu0
  %3805 = vmatprep.mubr.f32.mxu0 %v3054
  %3806 = vmatmul.mubr.f32.gmra.mrb[0].mxu0 %v3053
  %v3807 = vpop.f32.mrb[0].mxu0
  %v3808 = vadd.f32 %v3424, %v3807
  %v3809 = vpop.f32.mrb[0].mxu0
  %3810 = vmatprep.mubr.f32.mxu0 %v3058
  %3811 = vmatmul.mubr.f32.gmra.mrb[0].mxu0 %v3057
  %v3812 = vpop.f32.mrb[0].mxu0
  %v3813 = vadd.f32 %v3429, %v3812
  %v3814 = vpop.f32.mrb[0].mxu0
  %3815 = vmatprep.mubr.f32.mxu0 %v3062
  %3816 = vmatmul.mubr.f32.gmra.mrb[0].mxu0 %v3061
  %v3817 = vpop.f32.mrb[0].mxu0
  %v3818 = vadd.f32 %v3434, %v3817
  %v3819 = vpop.f32.mrb[0].mxu0
  %3820 = vmatprep.mubr.f32.mxu0 %v3066
  %3821 = vmatmul.mubr.f32.gmra.mrb[0].mxu0 %v3065
  %v3822 = vpop.f32.mrb[0].mxu0
  %v3823 = vadd.f32 %v3439, %v3822
  %v3824 = vpop.f32.mrb[0].mxu0
  %3825 = vmatprep.mubr.f32.mxu0 %v3070
  %3826 = vmatmul.mubr.f32.gmra.mrb[0].mxu0 %v3069
  %v3827 = vpop.f32.mrb[0].mxu0
  %v3828 = vadd.f32 %v3444, %v3827
  %v3829 = vpop.f32.mrb[0].mxu0
  %3830 = vmatprep.mubr.f32.mxu0 %v3074
  %3831 = vmatmul.mubr.f32.gmra.mrb[0].mxu0 %v3073
  %v3832 = vpop.f32.mrb[0].mxu0
  %v3833 = vadd.f32 %v3449, %v3832
  %v3834 = vpop.f32.mrb[0].mxu0
  %3835 = vmatprep.mubr.f32.mxu0 %v3078
  %3836 = vmatmul.mubr.f32.gmra.mrb[0].mxu0 %v3077
  %v3837 = vpop.f32.mrb[0].mxu0
  %v3838 = vadd.f32 %v3454, %v3837
  %v3839 = vpop.f32.mrb[0].mxu0
  %3840 = vmatprep.mubr.f32.mxu0 %v3082
  %3841 = vmatmul.mubr.f32.gmra.mrb[0].mxu0 %v3081
  %v3842 = vpop.f32.mrb[0].mxu0
  %v3843 = vadd.f32 %v3459, %v3842
  %v3844 = vpop.f32.mrb[0].mxu0
  %3845 = vmatprep.mubr.f32.mxu0 %v3086
  %3846 = vmatmul.mubr.f32.gmra.mrb[0].mxu0 %v3085
  %v3847 = vpop.f32.mrb[0].mxu0
  %v3848 = vadd.f32 %v3464, %v3847
  %v3849 = vpop.f32.mrb[0].mxu0
  %3850 = vmatprep.mubr.f32.mxu0 %v3090
  %3851 = vmatmul.mubr.f32.gmra.mrb[0].mxu0 %v3089
  %v3852 = vpop.f32.mrb[0].mxu0
  %v3853 = vadd.f32 %v3469, %v3852
  %v3854 = vpop.f32.mrb[0].mxu0
  %3855 = vmatprep.mubr.f32.mxu0 %v3094
  %3856 = vmatmul.mubr.f32.gmra.mrb[0].mxu0 %v3093
  %v3857 = vpop.f32.mrb[0].mxu0
  %v3858 = vadd.f32 %v3474, %v3857
  %v3859 = vpop.f32.mrb[0].mxu0
  %3860 = vmatprep.mubr.f32.mxu0 %v3098
  %3861 = vmatmul.mubr.f32.gmra.mrb[0].mxu0 %v3097
  %v3862 = vpop.f32.mrb[0].mxu0
  %v3863 = vadd.f32 %v3479, %v3862
  %v3864 = vpop.f32.mrb[0].mxu0
  %3865 = vmatprep.mubr.f32.mxu0 %v3102
  %3866 = vmatmul.mubr.f32.gmra.mrb[0].mxu0 %v3101
  %v3867 = vpop.f32.mrb[0].mxu0
  %v3868 = vadd.f32 %v3484, %v3867
  %v3869 = vpop.f32.mrb[0].mxu0
  %3870 = vmatprep.mubr.f32.mxu0 %v3106
  %3871 = vmatmul.mubr.f32.gmra.mrb[0].mxu0 %v3105
  %v3872 = vpop.f32.mrb[0].mxu0
  %v3873 = vadd.f32 %v3489, %v3872
  %v3874 = vpop.f32.mrb[0].mxu0
  %3875 = vmatprep.mubr.f32.mxu0 %v3110
  %3876 = vmatmul.mubr.f32.gmra.mrb[0].mxu0 %v3109
  %v3877 = vpop.f32.mrb[0].mxu0
  %v3878 = vadd.f32 %v3494, %v3877
  %v3879 = vpop.f32.mrb[0].mxu0
  %3880 = vmatprep.mubr.f32.mxu0 %v3114
  %3881 = vmatmul.mubr.f32.gmra.mrb[0].mxu0 %v3113
  %v3882 = vpop.f32.mrb[0].mxu0
  %v3883 = vadd.f32 %v3499, %v3882
  %v3884 = vpop.f32.mrb[0].mxu0
  %3885 = vdwg.mxu0
  %3886 = vmatprep.subr.mxu0 0.0
  %3887 = vmatpush1.msra.mxu0 %v2829
  %3888 = vmatprep.subr.mxu0 0.0
  %3889 = vmatpush1.msra.mxu0 %v2830
  %3890 = vmatprep.subr.mxu0 0.0
  %3891 = vmatpush1.msra.mxu0 %v2831
  %3892 = vmatprep.subr.mxu0 0.0
  %3893 = vmatpush1.msra.mxu0 %v2832
  %3894 = vmatprep.subr.mxu0 0.0
  %3895 = vmatpush1.msra.mxu0 %v2833
  %3896 = vmatprep.subr.mxu0 0.0
  %3897 = vmatpush1.msra.mxu0 %v2834
  %3898 = vmatprep.subr.mxu0 0.0
  %3899 = vmatpush1.msra.mxu0 %v2835
  %3900 = vmatprep.subr.mxu0 0.0
  %3901 = vmatpush1.msra.mxu0 %v2836
  %3902 = vmatprep.subr.mxu0 0.0
  %3903 = vmatpush1.msra.mxu0 %v2837
  %3904 = vmatprep.subr.mxu0 0.0
  %3905 = vmatpush1.msra.mxu0 %v2838
  %3906 = vmatprep.subr.mxu0 0.0
  %3907 = vmatpush1.msra.mxu0 %v2839
  %3908 = vmatprep.subr.mxu0 0.0
  %3909 = vmatpush1.msra.mxu0 %v2840
  %3910 = vmatprep.subr.mxu0 0.0
  %3911 = vmatpush1.msra.mxu0 %v2841
  %3912 = vmatprep.subr.mxu0 0.0
  %3913 = vmatpush1.msra.mxu0 %v2842
  %3914 = vmatprep.subr.mxu0 0.0
  %3915 = vmatpush1.msra.mxu0 %v2843
  %3916 = vmatprep.subr.mxu0 0.0
  %3917 = vmatpush1.msra.mxu0 %v2844
  %3918 = vmatprep.subr.mxu0 0.0
  %3919 = vmatpush1.msra.mxu0 %v2845
  %3920 = vmatprep.subr.mxu0 0.0
  %3921 = vmatpush1.msra.mxu0 %v2846
  %3922 = vmatprep.subr.mxu0 0.0
  %3923 = vmatpush1.msra.mxu0 %v2847
  %3924 = vmatprep.subr.mxu0 0.0
  %3925 = vmatpush1.msra.mxu0 %v2848
  %3926 = vmatprep.subr.mxu0 0.0
  %3927 = vmatpush1.msra.mxu0 %v2849
  %3928 = vmatprep.subr.mxu0 0.0
  %3929 = vmatpush1.msra.mxu0 %v2850
  %3930 = vmatprep.subr.mxu0 0.0
  %3931 = vmatpush1.msra.mxu0 %v2851
  %3932 = vmatprep.subr.mxu0 0.0
  %3933 = vmatpush1.msra.mxu0 %v2852
  %3934 = vmatprep.subr.mxu0 0.0
  %3935 = vmatpush1.msra.mxu0 %v2853
  %3936 = vmatprep.subr.mxu0 0.0
  %3937 = vmatpush1.msra.mxu0 %v2854
  %3938 = vmatprep.subr.mxu0 0.0
  %3939 = vmatpush1.msra.mxu0 %v2855
  %3940 = vmatprep.subr.mxu0 0.0
  %3941 = vmatpush1.msra.mxu0 %v2856
  %3942 = vmatprep.subr.mxu0 0.0
  %3943 = vmatpush1.msra.mxu0 %v2857
  %3944 = vmatprep.subr.mxu0 0.0
  %3945 = vmatpush1.msra.mxu0 %v2858
  %3946 = vmatprep.subr.mxu0 0.0
  %3947 = vmatpush1.msra.mxu0 %v2859
  %3948 = vmatprep.subr.mxu0 0.0
  %3949 = vmatpush1.msra.mxu0 %v2860
  %3950 = vmatprep.mubr.f32.mxu0 %v2864
  %3951 = vmatmul.mubr.f32.gmra.mrb[0].mxu0 %v2863
  %v3952 = vpop.f32.mrb[0].mxu0
  %v3953 = vadd.f32 %v3568, %v3952
  %v3954 = vpop.f32.mrb[0].mxu0
  %3955 = vmatprep.mubr.f32.mxu0 %v2868
  %3956 = vmatmul.mubr.f32.gmra.mrb[0].mxu0 %v2867
  %v3957 = vpop.f32.mrb[0].mxu0
  %v3958 = vadd.f32 %v3573, %v3957
  %v3959 = vpop.f32.mrb[0].mxu0
  %3960 = vmatprep.mubr.f32.mxu0 %v2872
  %3961 = vmatmul.mubr.f32.gmra.mrb[0].mxu0 %v2871
  %v3962 = vpop.f32.mrb[0].mxu0
  %v3963 = vadd.f32 %v3578, %v3962
  %v3964 = vpop.f32.mrb[0].mxu0
  %3965 = vmatprep.mubr.f32.mxu0 %v2876
  %3966 = vmatmul.mubr.f32.gmra.mrb[0].mxu0 %v2875
  %v3967 = vpop.f32.mrb[0].mxu0
  %v3968 = vadd.f32 %v3583, %v3967
  %v3969 = vpop.f32.mrb[0].mxu0
  %3970 = vmatprep.mubr.f32.mxu0 %v2880
  %3971 = vmatmul.mubr.f32.gmra.mrb[0].mxu0 %v2879
  %v3972 = vpop.f32.mrb[0].mxu0
  %v3973 = vadd.f32 %v3588, %v3972
  %v3974 = vpop.f32.mrb[0].mxu0
  %3975 = vmatprep.mubr.f32.mxu0 %v2884
  %3976 = vmatmul.mubr.f32.gmra.mrb[0].mxu0 %v2883
  %v3977 = vpop.f32.mrb[0].mxu0
  %v3978 = vadd.f32 %v3593, %v3977
  %v3979 = vpop.f32.mrb[0].mxu0
  %3980 = vmatprep.mubr.f32.mxu0 %v2888
  %3981 = vmatmul.mubr.f32.gmra.mrb[0].mxu0 %v2887
  %v3982 = vpop.f32.mrb[0].mxu0
  %v3983 = vadd.f32 %v3598, %v3982
  %v3984 = vpop.f32.mrb[0].mxu0
  %3985 = vmatprep.mubr.f32.mxu0 %v2892
  %3986 = vmatmul.mubr.f32.gmra.mrb[0].mxu0 %v2891
  %v3987 = vpop.f32.mrb[0].mxu0
  %v3988 = vadd.f32 %v3603, %v3987
  %v3989 = vpop.f32.mrb[0].mxu0
  %3990 = vmatprep.mubr.f32.mxu0 %v2896
  %3991 = vmatmul.mubr.f32.gmra.mrb[0].mxu0 %v2895
  %v3992 = vpop.f32.mrb[0].mxu0
  %v3993 = vadd.f32 %v3608, %v3992
  %v3994 = vpop.f32.mrb[0].mxu0
  %3995 = vmatprep.mubr.f32.mxu0 %v2900
  %3996 = vmatmul.mubr.f32.gmra.mrb[0].mxu0 %v2899
  %v3997 = vpop.f32.mrb[0].mxu0
  %v3998 = vadd.f32 %v3613, %v3997
  %v3999 = vpop.f32.mrb[0].mxu0
  %4000 = vmatprep.mubr.f32.mxu0 %v2904
  %4001 = vmatmul.mubr.f32.gmra.mrb[0].mxu0 %v2903
  %v4002 = vpop.f32.mrb[0].mxu0
  %v4003 = vadd.f32 %v3618, %v4002
  %v4004 = vpop.f32.mrb[0].mxu0
  %4005 = vmatprep.mubr.f32.mxu0 %v2908
  %4006 = vmatmul.mubr.f32.gmra.mrb[0].mxu0 %v2907
  %v4007 = vpop.f32.mrb[0].mxu0
  %v4008 = vadd.f32 %v3623, %v4007
  %v4009 = vpop.f32.mrb[0].mxu0
  %4010 = vmatprep.mubr.f32.mxu0 %v2912
  %4011 = vmatmul.mubr.f32.gmra.mrb[0].mxu0 %v2911
  %v4012 = vpop.f32.mrb[0].mxu0
  %v4013 = vadd.f32 %v3628, %v4012
  %v4014 = vpop.f32.mrb[0].mxu0
  %4015 = vmatprep.mubr.f32.mxu0 %v2916
  %4016 = vmatmul.mubr.f32.gmra.mrb[0].mxu0 %v2915
  %v4017 = vpop.f32.mrb[0].mxu0
  %v4018 = vadd.f32 %v3633, %v4017
  %v4019 = vpop.f32.mrb[0].mxu0
  %4020 = vmatprep.mubr.f32.mxu0 %v2920
  %4021 = vmatmul.mubr.f32.gmra.mrb[0].mxu0 %v2919
  %v4022 = vpop.f32.mrb[0].mxu0
  %v4023 = vadd.f32 %v3638, %v4022
  %v4024 = vpop.f32.mrb[0].mxu0
  %4025 = vmatprep.mubr.f32.mxu0 %v2924
  %4026 = vmatmul.mubr.f32.gmra.mrb[0].mxu0 %v2923
  %v4027 = vpop.f32.mrb[0].mxu0
  %v4028 = vadd.f32 %v3643, %v4027
  %v4029 = vpop.f32.mrb[0].mxu0
  %4030 = vmatprep.mubr.f32.mxu0 %v2928
  %4031 = vmatmul.mubr.f32.gmra.mrb[0].mxu0 %v2927
  %v4032 = vpop.f32.mrb[0].mxu0
  %v4033 = vadd.f32 %v3648, %v4032
  %v4034 = vpop.f32.mrb[0].mxu0
  %4035 = vmatprep.mubr.f32.mxu0 %v2932
  %4036 = vmatmul.mubr.f32.gmra.mrb[0].mxu0 %v2931
  %v4037 = vpop.f32.mrb[0].mxu0
  %v4038 = vadd.f32 %v3653, %v4037
  %v4039 = vpop.f32.mrb[0].mxu0
  %4040 = vmatprep.mubr.f32.mxu0 %v2936
  %4041 = vmatmul.mubr.f32.gmra.mrb[0].mxu0 %v2935
  %v4042 = vpop.f32.mrb[0].mxu0
  %v4043 = vadd.f32 %v3658, %v4042
  %v4044 = vpop.f32.mrb[0].mxu0
  %4045 = vmatprep.mubr.f32.mxu0 %v2940
  %4046 = vmatmul.mubr.f32.gmra.mrb[0].mxu0 %v2939
  %v4047 = vpop.f32.mrb[0].mxu0
  %v4048 = vadd.f32 %v3663, %v4047
  %v4049 = vpop.f32.mrb[0].mxu0
  %4050 = vmatprep.mubr.f32.mxu0 %v2944
  %4051 = vmatmul.mubr.f32.gmra.mrb[0].mxu0 %v2943
  %v4052 = vpop.f32.mrb[0].mxu0
  %v4053 = vadd.f32 %v3668, %v4052
  %v4054 = vpop.f32.mrb[0].mxu0
  %4055 = vmatprep.mubr.f32.mxu0 %v2948
  %4056 = vmatmul.mubr.f32.gmra.mrb[0].mxu0 %v2947
  %v4057 = vpop.f32.mrb[0].mxu0
  %v4058 = vadd.f32 %v3673, %v4057
  %v4059 = vpop.f32.mrb[0].mxu0
  %4060 = vmatprep.mubr.f32.mxu0 %v2952
  %4061 = vmatmul.mubr.f32.gmra.mrb[0].mxu0 %v2951
  %v4062 = vpop.f32.mrb[0].mxu0
  %v4063 = vadd.f32 %v3678, %v4062
  %v4064 = vpop.f32.mrb[0].mxu0
  %4065 = vmatprep.mubr.f32.mxu0 %v2956
  %4066 = vmatmul.mubr.f32.gmra.mrb[0].mxu0 %v2955
  %v4067 = vpop.f32.mrb[0].mxu0
  %v4068 = vadd.f32 %v3683, %v4067
  %v4069 = vpop.f32.mrb[0].mxu0
  %4070 = vmatprep.mubr.f32.mxu0 %v2960
  %4071 = vmatmul.mubr.f32.gmra.mrb[0].mxu0 %v2959
  %v4072 = vpop.f32.mrb[0].mxu0
  %v4073 = vadd.f32 %v3688, %v4072
  %v4074 = vpop.f32.mrb[0].mxu0
  %4075 = vmatprep.mubr.f32.mxu0 %v2964
  %4076 = vmatmul.mubr.f32.gmra.mrb[0].mxu0 %v2963
  %v4077 = vpop.f32.mrb[0].mxu0
  %v4078 = vadd.f32 %v3693, %v4077
  %v4079 = vpop.f32.mrb[0].mxu0
  %4080 = vmatprep.mubr.f32.mxu0 %v2968
  %4081 = vmatmul.mubr.f32.gmra.mrb[0].mxu0 %v2967
  %v4082 = vpop.f32.mrb[0].mxu0
  %v4083 = vadd.f32 %v3698, %v4082
  %v4084 = vpop.f32.mrb[0].mxu0
  %4085 = vmatprep.mubr.f32.mxu0 %v2972
  %4086 = vmatmul.mubr.f32.gmra.mrb[0].mxu0 %v2971
  %v4087 = vpop.f32.mrb[0].mxu0
  %v4088 = vadd.f32 %v3703, %v4087
  %v4089 = vpop.f32.mrb[0].mxu0
  %4090 = vmatprep.mubr.f32.mxu0 %v2976
  %4091 = vmatmul.mubr.f32.gmra.mrb[0].mxu0 %v2975
  %v4092 = vpop.f32.mrb[0].mxu0
  %v4093 = vadd.f32 %v3708, %v4092
  %v4094 = vpop.f32.mrb[0].mxu0
  %4095 = vmatprep.mubr.f32.mxu0 %v2980
  %4096 = vmatmul.mubr.f32.gmra.mrb[0].mxu0 %v2979
  %v4097 = vpop.f32.mrb[0].mxu0
  %v4098 = vadd.f32 %v3713, %v4097
  %v4099 = vpop.f32.mrb[0].mxu0
  %4100 = vmatprep.mubr.f32.mxu0 %v2984
  %4101 = vmatmul.mubr.f32.gmra.mrb[0].mxu0 %v2983
  %v4102 = vpop.f32.mrb[0].mxu0
  %v4103 = vadd.f32 %v3718, %v4102
  %v4104 = vpop.f32.mrb[0].mxu0
  %4105 = vmatprep.mubr.f32.mxu0 %v2988
  %4106 = vmatmul.mubr.f32.gmra.mrb[0].mxu0 %v2987
  %v4107 = vpop.f32.mrb[0].mxu0
  %v4108 = vadd.f32 %v3723, %v4107
  %v4109 = vpop.f32.mrb[0].mxu0
  %4110 = vmatprep.mubr.f32.mxu0 %v2992
  %4111 = vmatmul.mubr.f32.gmra.mrb[0].mxu0 %v2991
  %v4112 = vpop.f32.mrb[0].mxu0
  %v4113 = vadd.f32 %v3728, %v4112
  %v4114 = vpop.f32.mrb[0].mxu0
  %4115 = vmatprep.mubr.f32.mxu0 %v2996
  %4116 = vmatmul.mubr.f32.gmra.mrb[0].mxu0 %v2995
  %v4117 = vpop.f32.mrb[0].mxu0
  %v4118 = vadd.f32 %v3733, %v4117
  %v4119 = vpop.f32.mrb[0].mxu0
  %4120 = vmatprep.mubr.f32.mxu0 %v3000
  %4121 = vmatmul.mubr.f32.gmra.mrb[0].mxu0 %v2999
  %v4122 = vpop.f32.mrb[0].mxu0
  %v4123 = vadd.f32 %v3738, %v4122
  %v4124 = vpop.f32.mrb[0].mxu0
  %4125 = vmatprep.mubr.f32.mxu0 %v3004
  %4126 = vmatmul.mubr.f32.gmra.mrb[0].mxu0 %v3003
  %v4127 = vpop.f32.mrb[0].mxu0
  %v4128 = vadd.f32 %v3743, %v4127
  %v4129 = vpop.f32.mrb[0].mxu0
  %4130 = vmatprep.mubr.f32.mxu0 %v3008
  %4131 = vmatmul.mubr.f32.gmra.mrb[0].mxu0 %v3007
  %v4132 = vpop.f32.mrb[0].mxu0
  %v4133 = vadd.f32 %v3748, %v4132
  %v4134 = vpop.f32.mrb[0].mxu0
  %4135 = vmatprep.mubr.f32.mxu0 %v3012
  %4136 = vmatmul.mubr.f32.gmra.mrb[0].mxu0 %v3011
  %v4137 = vpop.f32.mrb[0].mxu0
  %v4138 = vadd.f32 %v3753, %v4137
  %v4139 = vpop.f32.mrb[0].mxu0
  %4140 = vmatprep.mubr.f32.mxu0 %v3016
  %4141 = vmatmul.mubr.f32.gmra.mrb[0].mxu0 %v3015
  %v4142 = vpop.f32.mrb[0].mxu0
  %v4143 = vadd.f32 %v3758, %v4142
  %v4144 = vpop.f32.mrb[0].mxu0
  %4145 = vmatprep.mubr.f32.mxu0 %v3020
  %4146 = vmatmul.mubr.f32.gmra.mrb[0].mxu0 %v3019
  %v4147 = vpop.f32.mrb[0].mxu0
  %v4148 = vadd.f32 %v3763, %v4147
  %v4149 = vpop.f32.mrb[0].mxu0
  %4150 = vmatprep.mubr.f32.mxu0 %v3024
  %4151 = vmatmul.mubr.f32.gmra.mrb[0].mxu0 %v3023
  %v4152 = vpop.f32.mrb[0].mxu0
  %v4153 = vadd.f32 %v3768, %v4152
  %v4154 = vpop.f32.mrb[0].mxu0
  %4155 = vmatprep.mubr.f32.mxu0 %v3028
  %4156 = vmatmul.mubr.f32.gmra.mrb[0].mxu0 %v3027
  %v4157 = vpop.f32.mrb[0].mxu0
  %v4158 = vadd.f32 %v3773, %v4157
  %v4159 = vpop.f32.mrb[0].mxu0
  %4160 = vmatprep.mubr.f32.mxu0 %v3032
  %4161 = vmatmul.mubr.f32.gmra.mrb[0].mxu0 %v3031
  %v4162 = vpop.f32.mrb[0].mxu0
  %v4163 = vadd.f32 %v3778, %v4162
  %v4164 = vpop.f32.mrb[0].mxu0
  %4165 = vmatprep.mubr.f32.mxu0 %v3036
  %4166 = vmatmul.mubr.f32.gmra.mrb[0].mxu0 %v3035
  %v4167 = vpop.f32.mrb[0].mxu0
  %v4168 = vadd.f32 %v3783, %v4167
  %v4169 = vpop.f32.mrb[0].mxu0
  %4170 = vmatprep.mubr.f32.mxu0 %v3040
  %4171 = vmatmul.mubr.f32.gmra.mrb[0].mxu0 %v3039
  %v4172 = vpop.f32.mrb[0].mxu0
  %v4173 = vadd.f32 %v3788, %v4172
  %v4174 = vpop.f32.mrb[0].mxu0
  %4175 = vmatprep.mubr.f32.mxu0 %v3044
  %4176 = vmatmul.mubr.f32.gmra.mrb[0].mxu0 %v3043
  %v4177 = vpop.f32.mrb[0].mxu0
  %v4178 = vadd.f32 %v3793, %v4177
  %v4179 = vpop.f32.mrb[0].mxu0
  %4180 = vmatprep.mubr.f32.mxu0 %v3048
  %4181 = vmatmul.mubr.f32.gmra.mrb[0].mxu0 %v3047
  %v4182 = vpop.f32.mrb[0].mxu0
  %v4183 = vadd.f32 %v3798, %v4182
  %v4184 = vpop.f32.mrb[0].mxu0
  %4185 = vmatprep.mubr.f32.mxu0 %v3052
  %4186 = vmatmul.mubr.f32.gmra.mrb[0].mxu0 %v3051
  %v4187 = vpop.f32.mrb[0].mxu0
  %v4188 = vadd.f32 %v3803, %v4187
  %v4189 = vpop.f32.mrb[0].mxu0
  %4190 = vmatprep.mubr.f32.mxu0 %v3056
  %4191 = vmatmul.mubr.f32.gmra.mrb[0].mxu0 %v3055
  %v4192 = vpop.f32.mrb[0].mxu0
  %v4193 = vadd.f32 %v3808, %v4192
  %v4194 = vpop.f32.mrb[0].mxu0
  %4195 = vmatprep.mubr.f32.mxu0 %v3060
  %4196 = vmatmul.mubr.f32.gmra.mrb[0].mxu0 %v3059
  %v4197 = vpop.f32.mrb[0].mxu0
  %v4198 = vadd.f32 %v3813, %v4197
  %v4199 = vpop.f32.mrb[0].mxu0
  %4200 = vmatprep.mubr.f32.mxu0 %v3064
  %4201 = vmatmul.mubr.f32.gmra.mrb[0].mxu0 %v3063
  %v4202 = vpop.f32.mrb[0].mxu0
  %v4203 = vadd.f32 %v3818, %v4202
  %v4204 = vpop.f32.mrb[0].mxu0
  %4205 = vmatprep.mubr.f32.mxu0 %v3068
  %4206 = vmatmul.mubr.f32.gmra.mrb[0].mxu0 %v3067
  %v4207 = vpop.f32.mrb[0].mxu0
  %v4208 = vadd.f32 %v3823, %v4207
  %v4209 = vpop.f32.mrb[0].mxu0
  %4210 = vmatprep.mubr.f32.mxu0 %v3072
  %4211 = vmatmul.mubr.f32.gmra.mrb[0].mxu0 %v3071
  %v4212 = vpop.f32.mrb[0].mxu0
  %v4213 = vadd.f32 %v3828, %v4212
  %v4214 = vpop.f32.mrb[0].mxu0
  %4215 = vmatprep.mubr.f32.mxu0 %v3076
  %4216 = vmatmul.mubr.f32.gmra.mrb[0].mxu0 %v3075
  %v4217 = vpop.f32.mrb[0].mxu0
  %v4218 = vadd.f32 %v3833, %v4217
  %v4219 = vpop.f32.mrb[0].mxu0
  %4220 = vmatprep.mubr.f32.mxu0 %v3080
  %4221 = vmatmul.mubr.f32.gmra.mrb[0].mxu0 %v3079
  %v4222 = vpop.f32.mrb[0].mxu0
  %v4223 = vadd.f32 %v3838, %v4222
  %v4224 = vpop.f32.mrb[0].mxu0
  %4225 = vmatprep.mubr.f32.mxu0 %v3084
  %4226 = vmatmul.mubr.f32.gmra.mrb[0].mxu0 %v3083
  %v4227 = vpop.f32.mrb[0].mxu0
  %v4228 = vadd.f32 %v3843, %v4227
  %v4229 = vpop.f32.mrb[0].mxu0
  %4230 = vmatprep.mubr.f32.mxu0 %v3088
  %4231 = vmatmul.mubr.f32.gmra.mrb[0].mxu0 %v3087
  %v4232 = vpop.f32.mrb[0].mxu0
  %v4233 = vadd.f32 %v3848, %v4232
  %v4234 = vpop.f32.mrb[0].mxu0
  %4235 = vmatprep.mubr.f32.mxu0 %v3092
  %4236 = vmatmul.mubr.f32.gmra.mrb[0].mxu0 %v3091
  %v4237 = vpop.f32.mrb[0].mxu0
  %v4238 = vadd.f32 %v3853, %v4237
  %v4239 = vpop.f32.mrb[0].mxu0
  %4240 = vmatprep.mubr.f32.mxu0 %v3096
  %4241 = vmatmul.mubr.f32.gmra.mrb[0].mxu0 %v3095
  %v4242 = vpop.f32.mrb[0].mxu0
  %v4243 = vadd.f32 %v3858, %v4242
  %v4244 = vpop.f32.mrb[0].mxu0
  %4245 = vmatprep.mubr.f32.mxu0 %v3100
  %4246 = vmatmul.mubr.f32.gmra.mrb[0].mxu0 %v3099
  %v4247 = vpop.f32.mrb[0].mxu0
  %v4248 = vadd.f32 %v3863, %v4247
  %v4249 = vpop.f32.mrb[0].mxu0
  %4250 = vmatprep.mubr.f32.mxu0 %v3104
  %4251 = vmatmul.mubr.f32.gmra.mrb[0].mxu0 %v3103
  %v4252 = vpop.f32.mrb[0].mxu0
  %v4253 = vadd.f32 %v3868, %v4252
  %v4254 = vpop.f32.mrb[0].mxu0
  %4255 = vmatprep.mubr.f32.mxu0 %v3108
  %4256 = vmatmul.mubr.f32.gmra.mrb[0].mxu0 %v3107
  %v4257 = vpop.f32.mrb[0].mxu0
  %v4258 = vadd.f32 %v3873, %v4257
  %v4259 = vpop.f32.mrb[0].mxu0
  %4260 = vmatprep.mubr.f32.mxu0 %v3112
  %4261 = vmatmul.mubr.f32.gmra.mrb[0].mxu0 %v3111
  %v4262 = vpop.f32.mrb[0].mxu0
  %v4263 = vadd.f32 %v3878, %v4262
  %v4264 = vpop.f32.mrb[0].mxu0
  %4265 = vmatprep.mubr.f32.mxu0 %v3116
  %4266 = vmatmul.mubr.f32.gmra.mrb[0].mxu0 %v3115
  %v4267 = vpop.f32.mrb[0].mxu0
  %v4268 = vadd.f32 %v3883, %v4267
  %v4269 = vpop.f32.mrb[0].mxu0
  %4270 = vdwg.mxu0
  %v4271 = vmax.f32 %v3953, 0.0
  %v4272 = vmax.f32 %v3958, 0.0
  %v4273 = vmax.f32 %v3963, 0.0
  %v4274 = vmax.f32 %v3968, 0.0
  %v4275 = vmax.f32 %v3973, 0.0
  %v4276 = vmax.f32 %v3978, 0.0
  %v4277 = vmax.f32 %v3983, 0.0
  %v4278 = vmax.f32 %v3988, 0.0
  %v4279 = vmax.f32 %v3993, 0.0
  %v4280 = vmax.f32 %v3998, 0.0
  %v4281 = vmax.f32 %v4003, 0.0
  %v4282 = vmax.f32 %v4008, 0.0
  %v4283 = vmax.f32 %v4013, 0.0
  %v4284 = vmax.f32 %v4018, 0.0
  %v4285 = vmax.f32 %v4023, 0.0
  %v4286 = vmax.f32 %v4028, 0.0
  %v4287 = vmax.f32 %v4033, 0.0
  %v4288 = vmax.f32 %v4038, 0.0
  %v4289 = vmax.f32 %v4043, 0.0
  %v4290 = vmax.f32 %v4048, 0.0
  %v4291 = vmax.f32 %v4053, 0.0
  %v4292 = vmax.f32 %v4058, 0.0
  %v4293 = vmax.f32 %v4063, 0.0
  %v4294 = vmax.f32 %v4068, 0.0
  %v4295 = vmax.f32 %v4073, 0.0
  %v4296 = vmax.f32 %v4078, 0.0
  %v4297 = vmax.f32 %v4083, 0.0
  %v4298 = vmax.f32 %v4088, 0.0
  %v4299 = vmax.f32 %v4093, 0.0
  %v4300 = vmax.f32 %v4098, 0.0
  %v4301 = vmax.f32 %v4103, 0.0
  %v4302 = vmax.f32 %v4108, 0.0
  %v4303 = vmax.f32 %v4113, 0.0
  %v4304 = vmax.f32 %v4118, 0.0
  %v4305 = vmax.f32 %v4123, 0.0
  %v4306 = vmax.f32 %v4128, 0.0
  %v4307 = vmax.f32 %v4133, 0.0
  %v4308 = vmax.f32 %v4138, 0.0
  %v4309 = vmax.f32 %v4143, 0.0
  %v4310 = vmax.f32 %v4148, 0.0
  %v4311 = vmax.f32 %v4153, 0.0
  %v4312 = vmax.f32 %v4158, 0.0
  %v4313 = vmax.f32 %v4163, 0.0
  %v4314 = vmax.f32 %v4168, 0.0
  %v4315 = vmax.f32 %v4173, 0.0
  %v4316 = vmax.f32 %v4178, 0.0
  %v4317 = vmax.f32 %v4183, 0.0
  %v4318 = vmax.f32 %v4188, 0.0
  %v4319 = vmax.f32 %v4193, 0.0
  %v4320 = vmax.f32 %v4198, 0.0
  %v4321 = vmax.f32 %v4203, 0.0
  %v4322 = vmax.f32 %v4208, 0.0
  %v4323 = vmax.f32 %v4213, 0.0
  %v4324 = vmax.f32 %v4218, 0.0
  %v4325 = vmax.f32 %v4223, 0.0
  %v4326 = vmax.f32 %v4228, 0.0
  %v4327 = vmax.f32 %v4233, 0.0
  %v4328 = vmax.f32 %v4238, 0.0
  %v4329 = vmax.f32 %v4243, 0.0
  %v4330 = vmax.f32 %v4248, 0.0
  %v4331 = vmax.f32 %v4253, 0.0
  %v4332 = vmax.f32 %v4258, 0.0
  %v4333 = vmax.f32 %v4263, 0.0
  %v4334 = vmax.f32 %v4268, 0.0
  %v4335 = vld [vmem:[%s7] sm:$0xff]
  %v4336 = vld [vmem:[%s7 + $0x8] sm:$0xff]
  %v4337 = vld [vmem:[%s7 + $0x10] sm:$0xff]
  %v4338 = vld [vmem:[%s7 + $0x18] sm:$0xff]
  %v4339 = vld [vmem:[%s7 + $0x20] sm:$0xff]
  %v4340 = vld [vmem:[%s7 + $0x28] sm:$0xff]
  %v4341 = vld [vmem:[%s7 + $0x30] sm:$0xff]
  %v4342 = vld [vmem:[%s7 + $0x38] sm:$0xff]
  %v4343 = vld [vmem:[%s7 + $0x40] sm:$0xff]
  %v4344 = vld [vmem:[%s7 + $0x48] sm:$0xff]
  %v4345 = vld [vmem:[%s7 + $0x50] sm:$0xff]
  %v4346 = vld [vmem:[%s7 + $0x58] sm:$0xff]
  %v4347 = vld [vmem:[%s7 + $0x60] sm:$0xff]
  %v4348 = vld [vmem:[%s7 + $0x68] sm:$0xff]
  %v4349 = vld [vmem:[%s7 + $0x70] sm:$0xff]
  %v4350 = vld [vmem:[%s7 + $0x78] sm:$0xff]
  %v4351 = vld [vmem:[%s7 + $0x80] sm:$0xff]
  %v4352 = vld [vmem:[%s7 + $0x88] sm:$0xff]
  %v4353 = vld [vmem:[%s7 + $0x90] sm:$0xff]
  %v4354 = vld [vmem:[%s7 + $0x98] sm:$0xff]
  %v4355 = vld [vmem:[%s7 + $0xa0] sm:$0xff]
  %v4356 = vld [vmem:[%s7 + $0xa8] sm:$0xff]
  %v4357 = vld [vmem:[%s7 + $0xb0] sm:$0xff]
  %v4358 = vld [vmem:[%s7 + $0xb8] sm:$0xff]
  %v4359 = vld [vmem:[%s7 + $0xc0] sm:$0xff]
  %v4360 = vld [vmem:[%s7 + $0xc8] sm:$0xff]
  %v4361 = vld [vmem:[%s7 + $0xd0] sm:$0xff]
  %v4362 = vld [vmem:[%s7 + $0xd8] sm:$0xff]
  %v4363 = vld [vmem:[%s7 + $0xe0] sm:$0xff]
  %v4364 = vld [vmem:[%s7 + $0xe8] sm:$0xff]
  %v4365 = vld [vmem:[%s7 + $0xf0] sm:$0xff]
  %v4366 = vld [vmem:[%s7 + $0xf8] sm:$0xff]
  %v4367 = vld [vmem:[%s7 + $0x100] sm:$0xff]
  %v4368 = vld [vmem:[%s7 + $0x108] sm:$0xff]
  %v4369 = vld [vmem:[%s7 + $0x110] sm:$0xff]
  %v4370 = vld [vmem:[%s7 + $0x118] sm:$0xff]
  %v4371 = vld [vmem:[%s7 + $0x120] sm:$0xff]
  %v4372 = vld [vmem:[%s7 + $0x128] sm:$0xff]
  %v4373 = vld [vmem:[%s7 + $0x130] sm:$0xff]
  %v4374 = vld [vmem:[%s7 + $0x138] sm:$0xff]
  %v4375 = vld [vmem:[%s7 + $0x140] sm:$0xff]
  %v4376 = vld [vmem:[%s7 + $0x148] sm:$0xff]
  %v4377 = vld [vmem:[%s7 + $0x150] sm:$0xff]
  %v4378 = vld [vmem:[%s7 + $0x158] sm:$0xff]
  %v4379 = vld [vmem:[%s7 + $0x160] sm:$0xff]
  %v4380 = vld [vmem:[%s7 + $0x168] sm:$0xff]
  %v4381 = vld [vmem:[%s7 + $0x170] sm:$0xff]
  %v4382 = vld [vmem:[%s7 + $0x178] sm:$0xff]
  %v4383 = vld [vmem:[%s7 + $0x180] sm:$0xff]
  %v4384 = vld [vmem:[%s7 + $0x188] sm:$0xff]
  %v4385 = vld [vmem:[%s7 + $0x190] sm:$0xff]
  %v4386 = vld [vmem:[%s7 + $0x198] sm:$0xff]
  %v4387 = vld [vmem:[%s7 + $0x1a0] sm:$0xff]
  %v4388 = vld [vmem:[%s7 + $0x1a8] sm:$0xff]
  %v4389 = vld [vmem:[%s7 + $0x1b0] sm:$0xff]
  %v4390 = vld [vmem:[%s7 + $0x1b8] sm:$0xff]
  %v4391 = vld [vmem:[%s7 + $0x1c0] sm:$0xff]
  %v4392 = vld [vmem:[%s7 + $0x1c8] sm:$0xff]
  %v4393 = vld [vmem:[%s7 + $0x1d0] sm:$0xff]
  %v4394 = vld [vmem:[%s7 + $0x1d8] sm:$0xff]
  %v4395 = vld [vmem:[%s7 + $0x1e0] sm:$0xff]
  %v4396 = vld [vmem:[%s7 + $0x1e8] sm:$0xff]
  %v4397 = vld [vmem:[%s7 + $0x1f0] sm:$0xff]
  %v4398 = vld [vmem:[%s7 + $0x1f8] sm:$0xff]
  %4400 = vset.pattern.permute.xlu0 0
  %4401 = vperm.xlu0 %4400, %v4335
  %v4402 = vpop.permute.xlu0 %4401
  %4405 = vset.pattern.permute.xlu0 0
  %4406 = vperm.xlu0 %4405, %v4336
  %v4407 = vpop.permute.xlu0 %4406
  %4410 = vset.pattern.permute.xlu0 0
  %4411 = vperm.xlu0 %4410, %v4337
  %v4412 = vpop.permute.xlu0 %4411
  %4415 = vset.pattern.permute.xlu0 0
  %4416 = vperm.xlu0 %4415, %v4338
  %v4417 = vpop.permute.xlu0 %4416
  %4420 = vset.pattern.permute.xlu0 0
  %4421 = vperm.xlu0 %4420, %v4339
  %v4422 = vpop.permute.xlu0 %4421
  %4425 = vset.pattern.permute.xlu0 0
  %4426 = vperm.xlu0 %4425, %v4340
  %v4427 = vpop.permute.xlu0 %4426
  %4430 = vset.pattern.permute.xlu0 0
  %4431 = vperm.xlu0 %4430, %v4341
  %v4432 = vpop.permute.xlu0 %4431
  %4435 = vset.pattern.permute.xlu0 0
  %4436 = vperm.xlu0 %4435, %v4342
  %v4437 = vpop.permute.xlu0 %4436
  %4440 = vset.pattern.permute.xlu0 0
  %4441 = vperm.xlu0 %4440, %v4343
  %v4442 = vpop.permute.xlu0 %4441
  %4445 = vset.pattern.permute.xlu0 0
  %4446 = vperm.xlu0 %4445, %v4344
  %v4447 = vpop.permute.xlu0 %4446
  %4450 = vset.pattern.permute.xlu0 0
  %4451 = vperm.xlu0 %4450, %v4345
  %v4452 = vpop.permute.xlu0 %4451
  %4455 = vset.pattern.permute.xlu0 0
  %4456 = vperm.xlu0 %4455, %v4346
  %v4457 = vpop.permute.xlu0 %4456
  %4460 = vset.pattern.permute.xlu0 0
  %4461 = vperm.xlu0 %4460, %v4347
  %v4462 = vpop.permute.xlu0 %4461
  %4465 = vset.pattern.permute.xlu0 0
  %4466 = vperm.xlu0 %4465, %v4348
  %v4467 = vpop.permute.xlu0 %4466
  %4470 = vset.pattern.permute.xlu0 0
  %4471 = vperm.xlu0 %4470, %v4349
  %v4472 = vpop.permute.xlu0 %4471
  %4475 = vset.pattern.permute.xlu0 0
  %4476 = vperm.xlu0 %4475, %v4350
  %v4477 = vpop.permute.xlu0 %4476
  %4480 = vset.pattern.permute.xlu0 0
  %4481 = vperm.xlu0 %4480, %v4351
  %v4482 = vpop.permute.xlu0 %4481
  %4485 = vset.pattern.permute.xlu0 0
  %4486 = vperm.xlu0 %4485, %v4352
  %v4487 = vpop.permute.xlu0 %4486
  %4490 = vset.pattern.permute.xlu0 0
  %4491 = vperm.xlu0 %4490, %v4353
  %v4492 = vpop.permute.xlu0 %4491
  %4495 = vset.pattern.permute.xlu0 0
  %4496 = vperm.xlu0 %4495, %v4354
  %v4497 = vpop.permute.xlu0 %4496
  %4500 = vset.pattern.permute.xlu0 0
  %4501 = vperm.xlu0 %4500, %v4355
  %v4502 = vpop.permute.xlu0 %4501
  %4505 = vset.pattern.permute.xlu0 0
  %4506 = vperm.xlu0 %4505, %v4356
  %v4507 = vpop.permute.xlu0 %4506
  %4510 = vset.pattern.permute.xlu0 0
  %4511 = vperm.xlu0 %4510, %v4357
  %v4512 = vpop.permute.xlu0 %4511
  %4515 = vset.pattern.permute.xlu0 0
  %4516 = vperm.xlu0 %4515, %v4358
  %v4517 = vpop.permute.xlu0 %4516
  %4520 = vset.pattern.permute.xlu0 0
  %4521 = vperm.xlu0 %4520, %v4359
  %v4522 = vpop.permute.xlu0 %4521
  %4525 = vset.pattern.permute.xlu0 0
  %4526 = vperm.xlu0 %4525, %v4360
  %v4527 = vpop.permute.xlu0 %4526
  %4530 = vset.pattern.permute.xlu0 0
  %4531 = vperm.xlu0 %4530, %v4361
  %v4532 = vpop.permute.xlu0 %4531
  %4535 = vset.pattern.permute.xlu0 0
  %4536 = vperm.xlu0 %4535, %v4362
  %v4537 = vpop.permute.xlu0 %4536
  %4540 = vset.pattern.permute.xlu0 0
  %4541 = vperm.xlu0 %4540, %v4363
  %v4542 = vpop.permute.xlu0 %4541
  %4545 = vset.pattern.permute.xlu0 0
  %4546 = vperm.xlu0 %4545, %v4364
  %v4547 = vpop.permute.xlu0 %4546
  %4550 = vset.pattern.permute.xlu0 0
  %4551 = vperm.xlu0 %4550, %v4365
  %v4552 = vpop.permute.xlu0 %4551
  %4555 = vset.pattern.permute.xlu0 0
  %4556 = vperm.xlu0 %4555, %v4366
  %v4557 = vpop.permute.xlu0 %4556
  %4560 = vset.pattern.permute.xlu0 0
  %4561 = vperm.xlu0 %4560, %v4367
  %v4562 = vpop.permute.xlu0 %4561
  %4565 = vset.pattern.permute.xlu0 0
  %4566 = vperm.xlu0 %4565, %v4368
  %v4567 = vpop.permute.xlu0 %4566
  %4570 = vset.pattern.permute.xlu0 0
  %4571 = vperm.xlu0 %4570, %v4369
  %v4572 = vpop.permute.xlu0 %4571
  %4575 = vset.pattern.permute.xlu0 0
  %4576 = vperm.xlu0 %4575, %v4370
  %v4577 = vpop.permute.xlu0 %4576
  %4580 = vset.pattern.permute.xlu0 0
  %4581 = vperm.xlu0 %4580, %v4371
  %v4582 = vpop.permute.xlu0 %4581
  %4585 = vset.pattern.permute.xlu0 0
  %4586 = vperm.xlu0 %4585, %v4372
  %v4587 = vpop.permute.xlu0 %4586
  %4590 = vset.pattern.permute.xlu0 0
  %4591 = vperm.xlu0 %4590, %v4373
  %v4592 = vpop.permute.xlu0 %4591
  %4595 = vset.pattern.permute.xlu0 0
  %4596 = vperm.xlu0 %4595, %v4374
  %v4597 = vpop.permute.xlu0 %4596
  %4600 = vset.pattern.permute.xlu0 0
  %4601 = vperm.xlu0 %4600, %v4375
  %v4602 = vpop.permute.xlu0 %4601
  %4605 = vset.pattern.permute.xlu0 0
  %4606 = vperm.xlu0 %4605, %v4376
  %v4607 = vpop.permute.xlu0 %4606
  %4610 = vset.pattern.permute.xlu0 0
  %4611 = vperm.xlu0 %4610, %v4377
  %v4612 = vpop.permute.xlu0 %4611
  %4615 = vset.pattern.permute.xlu0 0
  %4616 = vperm.xlu0 %4615, %v4378
  %v4617 = vpop.permute.xlu0 %4616
  %4620 = vset.pattern.permute.xlu0 0
  %4621 = vperm.xlu0 %4620, %v4379
  %v4622 = vpop.permute.xlu0 %4621
  %4625 = vset.pattern.permute.xlu0 0
  %4626 = vperm.xlu0 %4625, %v4380
  %v4627 = vpop.permute.xlu0 %4626
  %4630 = vset.pattern.permute.xlu0 0
  %4631 = vperm.xlu0 %4630, %v4381
  %v4632 = vpop.permute.xlu0 %4631
  %4635 = vset.pattern.permute.xlu0 0
  %4636 = vperm.xlu0 %4635, %v4382
  %v4637 = vpop.permute.xlu0 %4636
  %4640 = vset.pattern.permute.xlu0 0
  %4641 = vperm.xlu0 %4640, %v4383
  %v4642 = vpop.permute.xlu0 %4641
  %4645 = vset.pattern.permute.xlu0 0
  %4646 = vperm.xlu0 %4645, %v4384
  %v4647 = vpop.permute.xlu0 %4646
  %4650 = vset.pattern.permute.xlu0 0
  %4651 = vperm.xlu0 %4650, %v4385
  %v4652 = vpop.permute.xlu0 %4651
  %4655 = vset.pattern.permute.xlu0 0
  %4656 = vperm.xlu0 %4655, %v4386
  %v4657 = vpop.permute.xlu0 %4656
  %4660 = vset.pattern.permute.xlu0 0
  %4661 = vperm.xlu0 %4660, %v4387
  %v4662 = vpop.permute.xlu0 %4661
  %4665 = vset.pattern.permute.xlu0 0
  %4666 = vperm.xlu0 %4665, %v4388
  %v4667 = vpop.permute.xlu0 %4666
  %4670 = vset.pattern.permute.xlu0 0
  %4671 = vperm.xlu0 %4670, %v4389
  %v4672 = vpop.permute.xlu0 %4671
  %4675 = vset.pattern.permute.xlu0 0
  %4676 = vperm.xlu0 %4675, %v4390
  %v4677 = vpop.permute.xlu0 %4676
  %4680 = vset.pattern.permute.xlu0 0
  %4681 = vperm.xlu0 %4680, %v4391
  %v4682 = vpop.permute.xlu0 %4681
  %4685 = vset.pattern.permute.xlu0 0
  %4686 = vperm.xlu0 %4685, %v4392
  %v4687 = vpop.permute.xlu0 %4686
  %4690 = vset.pattern.permute.xlu0 0
  %4691 = vperm.xlu0 %4690, %v4393
  %v4692 = vpop.permute.xlu0 %4691
  %4695 = vset.pattern.permute.xlu0 0
  %4696 = vperm.xlu0 %4695, %v4394
  %v4697 = vpop.permute.xlu0 %4696
  %4700 = vset.pattern.permute.xlu0 0
  %4701 = vperm.xlu0 %4700, %v4395
  %v4702 = vpop.permute.xlu0 %4701
  %4705 = vset.pattern.permute.xlu0 0
  %4706 = vperm.xlu0 %4705, %v4396
  %v4707 = vpop.permute.xlu0 %4706
  %4710 = vset.pattern.permute.xlu0 0
  %4711 = vperm.xlu0 %4710, %v4397
  %v4712 = vpop.permute.xlu0 %4711
  %4715 = vset.pattern.permute.xlu0 0
  %4716 = vperm.xlu0 %4715, %v4398
  %v4717 = vpop.permute.xlu0 %4716
  %v4719 = vmul.f32 %v4271, %v4402
  %v4720 = vmul.f32 %v4272, %v4407
  %v4721 = vmul.f32 %v4273, %v4412
  %v4722 = vmul.f32 %v4274, %v4417
  %v4723 = vmul.f32 %v4275, %v4422
  %v4724 = vmul.f32 %v4276, %v4427
  %v4725 = vmul.f32 %v4277, %v4432
  %v4726 = vmul.f32 %v4278, %v4437
  %v4727 = vmul.f32 %v4279, %v4442
  %v4728 = vmul.f32 %v4280, %v4447
  %v4729 = vmul.f32 %v4281, %v4452
  %v4730 = vmul.f32 %v4282, %v4457
  %v4731 = vmul.f32 %v4283, %v4462
  %v4732 = vmul.f32 %v4284, %v4467
  %v4733 = vmul.f32 %v4285, %v4472
  %v4734 = vmul.f32 %v4286, %v4477
  %v4735 = vmul.f32 %v4287, %v4482
  %v4736 = vmul.f32 %v4288, %v4487
  %v4737 = vmul.f32 %v4289, %v4492
  %v4738 = vmul.f32 %v4290, %v4497
  %v4739 = vmul.f32 %v4291, %v4502
  %v4740 = vmul.f32 %v4292, %v4507
  %v4741 = vmul.f32 %v4293, %v4512
  %v4742 = vmul.f32 %v4294, %v4517
  %v4743 = vmul.f32 %v4295, %v4522
  %v4744 = vmul.f32 %v4296, %v4527
  %v4745 = vmul.f32 %v4297, %v4532
  %v4746 = vmul.f32 %v4298, %v4537
  %v4747 = vmul.f32 %v4299, %v4542
  %v4748 = vmul.f32 %v4300, %v4547
  %v4749 = vmul.f32 %v4301, %v4552
  %v4750 = vmul.f32 %v4302, %v4557
  %v4751 = vmul.f32 %v4303, %v4562
  %v4752 = vmul.f32 %v4304, %v4567
  %v4753 = vmul.f32 %v4305, %v4572
  %v4754 = vmul.f32 %v4306, %v4577
  %v4755 = vmul.f32 %v4307, %v4582
  %v4756 = vmul.f32 %v4308, %v4587
  %v4757 = vmul.f32 %v4309, %v4592
  %v4758 = vmul.f32 %v4310, %v4597
  %v4759 = vmul.f32 %v4311, %v4602
  %v4760 = vmul.f32 %v4312, %v4607
  %v4761 = vmul.f32 %v4313, %v4612
  %v4762 = vmul.f32 %v4314, %v4617
  %v4763 = vmul.f32 %v4315, %v4622
  %v4764 = vmul.f32 %v4316, %v4627
  %v4765 = vmul.f32 %v4317, %v4632
  %v4766 = vmul.f32 %v4318, %v4637
  %v4767 = vmul.f32 %v4319, %v4642
  %v4768 = vmul.f32 %v4320, %v4647
  %v4769 = vmul.f32 %v4321, %v4652
  %v4770 = vmul.f32 %v4322, %v4657
  %v4771 = vmul.f32 %v4323, %v4662
  %v4772 = vmul.f32 %v4324, %v4667
  %v4773 = vmul.f32 %v4325, %v4672
  %v4774 = vmul.f32 %v4326, %v4677
  %v4775 = vmul.f32 %v4327, %v4682
  %v4776 = vmul.f32 %v4328, %v4687
  %v4777 = vmul.f32 %v4329, %v4692
  %v4778 = vmul.f32 %v4330, %v4697
  %v4779 = vmul.f32 %v4331, %v4702
  %v4780 = vmul.f32 %v4332, %v4707
  %v4781 = vmul.f32 %v4333, %v4712
  %v4782 = vmul.f32 %v4334, %v4717
  %v4783 = vadd.f32 %v4719, %v4720
  %v4784 = vadd.f32 %v4783, %v4721
  %v4785 = vadd.f32 %v4784, %v4722
  %v4786 = vadd.f32 %v4785, %v4723
  %v4787 = vadd.f32 %v4786, %v4724
  %v4788 = vadd.f32 %v4787, %v4725
  %v4789 = vadd.f32 %v4788, %v4726
  %v4790 = vadd.f32 %v4789, %v4727
  %v4791 = vadd.f32 %v4790, %v4728
  %v4792 = vadd.f32 %v4791, %v4729
  %v4793 = vadd.f32 %v4792, %v4730
  %v4794 = vadd.f32 %v4793, %v4731
  %v4795 = vadd.f32 %v4794, %v4732
  %v4796 = vadd.f32 %v4795, %v4733
  %v4797 = vadd.f32 %v4796, %v4734
  %v4798 = vadd.f32 %v4797, %v4735
  %v4799 = vadd.f32 %v4798, %v4736
  %v4800 = vadd.f32 %v4799, %v4737
  %v4801 = vadd.f32 %v4800, %v4738
  %v4802 = vadd.f32 %v4801, %v4739
  %v4803 = vadd.f32 %v4802, %v4740
  %v4804 = vadd.f32 %v4803, %v4741
  %v4805 = vadd.f32 %v4804, %v4742
  %v4806 = vadd.f32 %v4805, %v4743
  %v4807 = vadd.f32 %v4806, %v4744
  %v4808 = vadd.f32 %v4807, %v4745
  %v4809 = vadd.f32 %v4808, %v4746
  %v4810 = vadd.f32 %v4809, %v4747
  %v4811 = vadd.f32 %v4810, %v4748
  %v4812 = vadd.f32 %v4811, %v4749
  %v4813 = vadd.f32 %v4812, %v4750
  %v4814 = vadd.f32 %v4813, %v4751
  %v4815 = vadd.f32 %v4814, %v4752
  %v4816 = vadd.f32 %v4815, %v4753
  %v4817 = vadd.f32 %v4816, %v4754
  %v4818 = vadd.f32 %v4817, %v4755
  %v4819 = vadd.f32 %v4818, %v4756
  %v4820 = vadd.f32 %v4819, %v4757
  %v4821 = vadd.f32 %v4820, %v4758
  %v4822 = vadd.f32 %v4821, %v4759
  %v4823 = vadd.f32 %v4822, %v4760
  %v4824 = vadd.f32 %v4823, %v4761
  %v4825 = vadd.f32 %v4824, %v4762
  %v4826 = vadd.f32 %v4825, %v4763
  %v4827 = vadd.f32 %v4826, %v4764
  %v4828 = vadd.f32 %v4827, %v4765
  %v4829 = vadd.f32 %v4828, %v4766
  %v4830 = vadd.f32 %v4829, %v4767
  %v4831 = vadd.f32 %v4830, %v4768
  %v4832 = vadd.f32 %v4831, %v4769
  %v4833 = vadd.f32 %v4832, %v4770
  %v4834 = vadd.f32 %v4833, %v4771
  %v4835 = vadd.f32 %v4834, %v4772
  %v4836 = vadd.f32 %v4835, %v4773
  %v4837 = vadd.f32 %v4836, %v4774
  %v4838 = vadd.f32 %v4837, %v4775
  %v4839 = vadd.f32 %v4838, %v4776
  %v4840 = vadd.f32 %v4839, %v4777
  %v4841 = vadd.f32 %v4840, %v4778
  %v4842 = vadd.f32 %v4841, %v4779
  %v4843 = vadd.f32 %v4842, %v4780
  %v4844 = vadd.f32 %v4843, %v4781
  %v4845 = vadd.f32 %v4844, %v4782
  %v4846 = vrot.slane %v4845, 4
  %v4847 = vadd.f32 %v4845, %v4846
  %v4848 = vrot.slane %v4847, 2
  %v4849 = vadd.f32 %v4847, %v4848
  %v4850 = vrot.slane %v4849, 1
  %v4851 = vadd.f32 %v4849, %v4850
  %v4852 = vld [vmem:[#allocation2] sm:$0x1]
  %4854 = vset.pattern.permute.xlu0 0
  %4855 = vperm.xlu0 %4854, %v4852
  %v4856 = vpop.permute.xlu0 %4855
  %v4858 = vlaneseq
  %v4859 = vshrl.u32 %v4858, 7
  %v4860 = vsub.s32 0, %v4859
  %v4861 = vrot.slane %v4856, %v4860
  %v4862 = vadd.f32 %v4851, %v4861
  %v4863 = vxor.u32 %v4862, 2147483648
  %v4864 = vmul.f32 %v4863, 1.442695
  %v4865 = vpow.pop %v4864
  %v4866 = vadd.f32 %v4865, 1.0
  %v4867 = vrcp.pop %v4866
  %v4868 = vmul.f32 1.0, %v4867
  %4869 = vst [vmem:[%s9] sm:$0x1] %v4868
  // Predicated region
  $region38: #{discriminator_forward.1} parent=0 // pred_check
    _
  $region39: #{discriminator_forward.1} parent=0 // pred_check_branch
    %4871 = sbr.rel (0) target = $region41
  $region40: #{discriminator_forward.1} parent=0 // pred_region
    _
  $region41: #{discriminator_forward.1} parent=0 // pred_fallthru
    _
  // Predicated region
  $region42: #{discriminator_forward.1} parent=0 // pred_check
    _
  $region43: #{discriminator_forward.1} parent=0 // pred_check_branch
    %4873 = sbr.rel (0) target = $region45
  $region44: #{discriminator_forward.1} parent=0 // pred_region
    _
  $region45: #{discriminator_forward.1} parent=0 // pred_fallthru
    _

</llo_original>
